<compile_context>
chip_gen: v5e
topology: v5e:2x2
jax: 0.10.0
libtpu: 0.0.40
codegen_flags: <defaults>
</compile_context>

<pallas_src>
import math
import numpy as np

import jax
import jax.numpy as jnp
from jax import lax
from jax.experimental import pallas as pl
from jax.experimental.pallas import tpu as pltpu

DEG2RAD = math.pi / 180.0


# ---------------------------------------------------------------------------
# Host-side helpers (ported verbatim from the PyTorch module, pure numpy/math)
# ---------------------------------------------------------------------------
def SH_renormalization(l, m):
    return math.sqrt((2.0 * l + 1.0) * math.factorial(l - m)
                     / (4 * math.pi * math.factorial(l + m)))


def cartesian_to_euler(x, y, z):
    r = np.sqrt(x ** 2 + y ** 2 + z ** 2)
    theta = np.arccos(z / r)
    phi = np.arctan2(y, x)
    psi = phi
    phi = 0
    return (np.degrees(psi), np.degrees(theta), np.degrees(phi))


def fibonacci_sphere(num_points):
    points = []
    phi = np.pi * (3.0 - np.sqrt(5.0))
    for i in range(num_points):
        y = 1 - i / float(num_points - 1) * 2
        radius = np.sqrt(1 - y * y)
        theta = phi * i
        x = np.cos(theta) * radius
        z = np.sin(theta) * radius
        points.append((x, y, z))
    return np.array(points)


def generate_sphere_grid(num_points):
    points = fibonacci_sphere(num_points)
    return [cartesian_to_euler(x, y, z) for x, y, z in points]


def euler_zyz_matrix(alpha_deg, beta_deg, gamma_deg):
    """R = Rz(alpha) @ Ry(beta) @ Rz(gamma), angles in degrees (static constants)."""
    a, b, g = np.radians([alpha_deg, beta_deg, gamma_deg])

    def rz(t):
        c, s = np.cos(t), np.sin(t)
        return np.array([[c, -s, 0.0], [s, c, 0.0], [0.0, 0.0, 1.0]])

    def ry(t):
        c, s = np.cos(t), np.sin(t)
        return np.array([[c, 0.0, s], [0.0, 1.0, 0.0], [-s, 0.0, c]])

    return (rz(a) @ ry(b) @ rz(g)).astype(np.float32)


def _round_up(x, m):
    return ((x + m - 1) // m) * m


# ---------------------------------------------------------------------------
# In-kernel math (traced jnp; Python loops unroll at trace time -> VPU/EUP ops)
# ---------------------------------------------------------------------------
def _assoc_legendre_all(l_max, x, somx2):
    """All P_l^m(x) for 0 <= m <= l <= l_max, sharing a single somx2 and the
    upward recurrences (same math as the PyTorch associated_legendre_polynomial,
    but each (l, m) is computed exactly once)."""
    P = {(0, 0): jnp.ones_like(x)}
    pmm = P[(0, 0)]
    fact = 1.0
    for m in range(l_max + 1):
        if m > 0:
            pmm = pmm * (-fact) * somx2
            fact += 2.0
            P[(m, m)] = pmm
        if m < l_max:
            pmmp1 = x * (2.0 * m + 1.0) * pmm
            P[(m + 1, m)] = pmmp1
            pm2, pm1 = pmm, pmmp1
            for ll in range(m + 2, l_max + 1):
                pll = ((2.0 * ll - 1.0) * x * pm1
                       - (ll + m - 1.0) * pm2) * (1.0 / (ll - m))
                P[(ll, m)] = pll
                pm2, pm1 = pm1, pll
    return P


def _sh_sum(l_max, cos_theta, cos_phi, sin_phi):
    """sum_{l=0..l_max} sum_{m=-l..l} Y_lm.  cos(m*phi)/sin(m*phi) are built by
    the Chebyshev recurrence (identical math to torch.cos(m*phi)); P_l^|m| is
    computed once and reused for the +m / -m terms."""
    somx2 = jnp.sqrt(jnp.maximum((1.0 - cos_theta) * (1.0 + cos_theta), 0.0))
    P = _assoc_legendre_all(l_max, cos_theta, somx2)

    cos_m = [jnp.ones_like(cos_phi)]
    sin_m = [jnp.zeros_like(sin_phi)]
    for _ in range(l_max):
        c_new = cos_m[-1] * cos_phi - sin_m[-1] * sin_phi
        s_new = sin_m[-1] * cos_phi + cos_m[-1] * sin_phi
        cos_m.append(c_new)
        sin_m.append(s_new)

    total = jnp.zeros_like(cos_theta)
    for l in range(l_max + 1):
        total = total + SH_renormalization(l, 0) * P[(l, 0)]
        for m in range(1, l + 1):
            c = math.sqrt(2.0) * SH_renormalization(l, m)
            # +m term carries cos(m*phi), -m term carries sin(m*phi); same P_l^m.
            total = total + c * P[(l, m)] * (cos_m[m] + sin_m[m])
    return total


# ---------------------------------------------------------------------------
# Wavelets module (Pallas implementation)
# ---------------------------------------------------------------------------
class WaveletsPallas:
    def __init__(self, hparams, max_rows_per_tile=64):
        wp = hparams["embedding"]
        self.time = hparams["data"]["time_idx"]
        self.max_scale = wp["max_scale"]
        self.max_rotations = wp["max_rotations"]
        self.embedding_dim = self.max_scale * self.max_rotations
        if self.time:
            # TODO(synk): the reference forward() never emits a time feature
            # either; embedding_dim bookkeeping only.
            self.embedding_dim += 1
        self.k_val = wp["k_val"]
        self.scale_factor = wp["scale_factor"]
        self.scale_shift = wp["scale_shift"]
        self.dilation_step = wp["dilation_step"]

        self.rotation_vals = generate_sphere_grid(self.max_rotations)
        self.rotation_mats = [euler_zyz_matrix(a, b, g)
                              for (a, b, g) in self.rotation_vals]
        self.scales = [2.0 ** (-(j + self.scale_shift) / self.dilation_step)
                       for j in range(self.max_scale)]
        # scale_factor * s * (...) / s**3  ->  (scale_factor / s**2) * (...)
        self.coefs = [self.scale_factor / (s * s) for s in self.scales]
        self.num_feats = self.max_scale * self.max_rotations

        # Points per grid step = max_rows_per_tile * 128 (sweepable; VMEM use at
        # 64 rows, F=32: ~1 MiB output block, trivially within budget on v5e/v6e/v7x).
        self._max_rows_per_tile = max_rows_per_tile

    # ------------------------- the Pallas kernel -------------------------
    def _kernel(self, ll_ref, out_ref):
        # ll_ref : (2, TR, 128)  plane 0 = lon, plane 1 = lat  (degrees)
        # out_ref: (F, TR, 128)
        lon = ll_ref[0]                      # (TR, 128) -- full vregs
        lat = ll_ref[1]

        phi = (lon + 180.0) * DEG2RAD
        theta = (90.0 + lat) * DEG2RAD

        st = jnp.sin(theta)
        x = st * jnp.cos(phi)
        y = st * jnp.sin(phi)
        z = jnp.cos(theta)

        # Per-rotation spherical-harmonic sums (independent of scale).
        rot_Y = []
        for R in self.rotation_mats:
            xr = R[0, 0] * x + R[0, 1] * y + R[0, 2] * z
            yr = R[1, 0] * x + R[1, 1] * y + R[1, 2] * z
            zr = R[2, 0] * x + R[2, 1] * y + R[2, 2] * z
            cos_tr = jnp.clip(zr, -1.0, 1.0)
            inv_rho = lax.rsqrt(jnp.maximum(xr * xr + yr * yr, 1e-20))
            cos_pr = xr * inv_rho
            sin_pr = yr * inv_rho
            rot_Y.append(_sh_sum(self.k_val, cos_tr, cos_pr, sin_pr))

        # Feature rows: outer loop scales, inner loop rotations (matches forward()).
        # Write each feature slab directly -- no concatenate epilogue.
        f = 0
        for s, coef in zip(self.scales, self.coefs):
            mod = coef * jnp.sin(s * (np.pi - theta))      # shared over rotations
            for Ysum in rot_Y:
                out_ref[f] = (Ysum * mod).astype(out_ref.dtype)
                f += 1

    # ---------------------------- wrapper --------------------------------
    def __call__(self, lonlat):
        # lonlat: (N, 2) float32 degrees -> (N, F), like the torch module.
        N = lonlat.shape[0]
        F = self.num_feats

        rows_needed = -(-N // 128)                         # ceil(N / 128)
        TR = min(self._max_rows_per_tile, _round_up(rows_needed, 8))
        # Give the grid >= 2 steps when there is enough work (v7x megacore).
        if rows_needed >= 16 and rows_needed <= TR:
            TR = _round_up(-(-rows_needed // 2), 8)
        rows = _round_up(rows_needed, TR)
        n_pad = rows * 128

        ll = lonlat
        if n_pad != N:
            ll = jnp.pad(lonlat, ((0, n_pad - N), (0, 0)))  # pad with (0, 0) deg
        # coords on leading axis, points folded to (rows, 128) lane-dense planes
        x_t = ll.T.reshape(2, rows, 128)

        out = pl.pallas_call(
            self._kernel,
            out_shape=jax.ShapeDtypeStruct((F, rows, 128), lonlat.dtype),
            grid=(rows // TR,),
            in_specs=[pl.BlockSpec((2, TR, 128), lambda i: (0, i, 0))],
            out_specs=pl.BlockSpec((F, TR, 128), lambda i: (0, i, 0)),
            compiler_params=pltpu.CompilerParams(
                dimension_semantics=("parallel",)),
        )(x_t)

        # Back to the PyTorch (N, F) convention.  (If a downstream consumer can
        # take (F, N) directly, drop this transpose -- it costs a full HBM
        # round trip of the result outside the kernel.)
        return out.reshape(F, n_pad)[:, :N].T


# ---------------------------------------------------------------------------
if __name__ == "__main__":
    hparams = {
        "data": {"time_idx": False},
        "embedding": {
            "max_scale": 4,
            "max_rotations": 8,
            "k_val": 2,
            "scale_factor": 1.0,
            "scale_shift": 0.0,
            "dilation_step": 1.0,
        },
    }

    model = WaveletsPallas(hparams)

    key = jax.random.PRNGKey(0)
    k1, k2 = jax.random.split(key)
    N = 256
    lon = jax.random.uniform(k1, (N, 1), minval=-180.0, maxval=180.0)
    lat = jax.random.uniform(k2, (N, 1), minval=-90.0, maxval=90.0)
    lonlat = jnp.concatenate([lon, lat], axis=1).astype(jnp.float32)  # (N, 2)

    out = model(lonlat)
    out = jax.block_until_ready(out)

    assert out.shape == (N, model.num_feats), out.shape
    assert bool(jnp.all(jnp.isfinite(out)))
    print("KERNEL_OK")
</pallas_src>

<mosaic_0001>
module attributes {stable_mosaic.version = 11 : i64} {
  func.func @_kernel(%arg0: i32, %arg1: memref<2x8x128xf32, #tpu.memory_space<vmem>>, %arg2: memref<32x8x128xf32, #tpu.memory_space<vmem>>) attributes {dimension_semantics = [#tpu.dimension_semantics<parallel>], iteration_bounds = array<i64: 1>, scalar_prefetch = 0 : i64, scratch_operands = 0 : i64, tpu.core_type = #tpu.core_type<tc>, window_params = [{transform_indices = @transform_0, window_bounds = array<i64: 2, 8, 128>}, {transform_indices = @transform_1, window_bounds = array<i64: 32, 8, 128>}]} {
    %c0 = arith.constant 0 : index
    %c0_0 = arith.constant 0 : index
    %c0_1 = arith.constant 0 : index
    %0 = vector.load %arg1[%c0, %c0_0, %c0_1] : memref<2x8x128xf32, #tpu.memory_space<vmem>>, vector<1x8x128xf32>
    %1 = vector.shape_cast %0 : vector<1x8x128xf32> to vector<8x128xf32>
    %c1 = arith.constant 1 : index
    %c0_2 = arith.constant 0 : index
    %c0_3 = arith.constant 0 : index
    %2 = vector.load %arg1[%c1, %c0_2, %c0_3] : memref<2x8x128xf32, #tpu.memory_space<vmem>>, vector<1x8x128xf32>
    %3 = vector.shape_cast %2 : vector<1x8x128xf32> to vector<8x128xf32>
    %cst = arith.constant 1.800000e+02 : f32
    %4 = vector.broadcast %cst : f32 to vector<8x128xf32>
    %5 = arith.addf %1, %4 : vector<8x128xf32>
    %cst_4 = arith.constant 0.0174532924 : f32
    %6 = vector.broadcast %cst_4 : f32 to vector<8x128xf32>
    %7 = arith.mulf %5, %6 : vector<8x128xf32>
    %cst_5 = arith.constant 9.000000e+01 : f32
    %8 = vector.broadcast %cst_5 : f32 to vector<8x128xf32>
    %9 = arith.addf %8, %3 : vector<8x128xf32>
    %cst_6 = arith.constant 0.0174532924 : f32
    %10 = vector.broadcast %cst_6 : f32 to vector<8x128xf32>
    %11 = arith.mulf %9, %10 : vector<8x128xf32>
    %12 = math.sin %11 : vector<8x128xf32>
    %13 = math.cos %7 : vector<8x128xf32>
    %14 = arith.mulf %12, %13 : vector<8x128xf32>
    %15 = math.sin %7 : vector<8x128xf32>
    %16 = arith.mulf %12, %15 : vector<8x128xf32>
    %17 = math.cos %11 : vector<8x128xf32>
    %cst_7 = arith.constant 3.74939939E-33 : f32
    %18 = vector.broadcast %cst_7 : f32 to vector<8x128xf32>
    %19 = arith.mulf %18, %14 : vector<8x128xf32>
    %cst_8 = arith.constant -1.000000e+00 : f32
    %20 = vector.broadcast %cst_8 : f32 to vector<8x128xf32>
    %21 = arith.mulf %20, %16 : vector<8x128xf32>
    %22 = arith.addf %19, %21 : vector<8x128xf32>
    %cst_9 = arith.constant 6.12323426E-17 : f32
    %23 = vector.broadcast %cst_9 : f32 to vector<8x128xf32>
    %24 = arith.mulf %23, %17 : vector<8x128xf32>
    %25 = arith.addf %22, %24 : vector<8x128xf32>
    %cst_10 = arith.constant 6.12323426E-17 : f32
    %26 = vector.broadcast %cst_10 : f32 to vector<8x128xf32>
    %27 = arith.mulf %26, %14 : vector<8x128xf32>
    %cst_11 = arith.constant 6.12323426E-17 : f32
    %28 = vector.broadcast %cst_11 : f32 to vector<8x128xf32>
    %29 = arith.mulf %28, %16 : vector<8x128xf32>
    %30 = arith.addf %27, %29 : vector<8x128xf32>
    %cst_12 = arith.constant 1.000000e+00 : f32
    %31 = vector.broadcast %cst_12 : f32 to vector<8x128xf32>
    %32 = arith.mulf %31, %17 : vector<8x128xf32>
    %33 = arith.addf %30, %32 : vector<8x128xf32>
    %cst_13 = arith.constant -1.000000e+00 : f32
    %34 = vector.broadcast %cst_13 : f32 to vector<8x128xf32>
    %35 = arith.mulf %34, %14 : vector<8x128xf32>
    %cst_14 = arith.constant 0.000000e+00 : f32
    %36 = vector.broadcast %cst_14 : f32 to vector<8x128xf32>
    %37 = arith.mulf %36, %16 : vector<8x128xf32>
    %38 = arith.addf %35, %37 : vector<8x128xf32>
    %cst_15 = arith.constant 6.12323426E-17 : f32
    %39 = vector.broadcast %cst_15 : f32 to vector<8x128xf32>
    %40 = arith.mulf %39, %17 : vector<8x128xf32>
    %41 = arith.addf %38, %40 : vector<8x128xf32>
    %cst_16 = arith.constant -1.000000e+00 : f32
    %cst_17 = arith.constant 1.000000e+00 : f32
    %42 = vector.broadcast %cst_16 : f32 to vector<8x128xf32>
    %43 = arith.maximumf %42, %41 : vector<8x128xf32>
    %44 = vector.broadcast %cst_17 : f32 to vector<8x128xf32>
    %45 = arith.minimumf %44, %43 : vector<8x128xf32>
    %46 = arith.mulf %25, %25 : vector<8x128xf32>
    %47 = arith.mulf %33, %33 : vector<8x128xf32>
    %48 = arith.addf %46, %47 : vector<8x128xf32>
    %cst_18 = arith.constant 9.99999968E-21 : f32
    %49 = vector.broadcast %cst_18 : f32 to vector<8x128xf32>
    %50 = arith.maximumf %48, %49 : vector<8x128xf32>
    %51 = math.rsqrt %50 : vector<8x128xf32>
    %52 = arith.mulf %25, %51 : vector<8x128xf32>
    %53 = arith.mulf %33, %51 : vector<8x128xf32>
    %cst_19 = arith.constant 1.000000e+00 : f32
    %54 = vector.broadcast %cst_19 : f32 to vector<8x128xf32>
    %55 = arith.subf %54, %45 : vector<8x128xf32>
    %cst_20 = arith.constant 1.000000e+00 : f32
    %56 = vector.broadcast %cst_20 : f32 to vector<8x128xf32>
    %57 = arith.addf %56, %45 : vector<8x128xf32>
    %58 = arith.mulf %55, %57 : vector<8x128xf32>
    %cst_21 = arith.constant 0.000000e+00 : f32
    %59 = vector.broadcast %cst_21 : f32 to vector<8x128xf32>
    %60 = arith.maximumf %58, %59 : vector<8x128xf32>
    %61 = math.sqrt %60 : vector<8x128xf32>
    %cst_22 = arith.constant 1.000000e+00 : f32
    %62 = vector.broadcast %cst_22 : f32 to vector<8x128xf32>
    %cst_23 = arith.constant 1.000000e+00 : f32
    %63 = vector.broadcast %cst_23 : f32 to vector<8x128xf32>
    %64 = arith.mulf %45, %63 : vector<8x128xf32>
    %65 = arith.mulf %64, %62 : vector<8x128xf32>
    %cst_24 = arith.constant 3.000000e+00 : f32
    %66 = vector.broadcast %cst_24 : f32 to vector<8x128xf32>
    %67 = arith.mulf %66, %45 : vector<8x128xf32>
    %68 = arith.mulf %67, %65 : vector<8x128xf32>
    %cst_25 = arith.constant 1.000000e+00 : f32
    %69 = vector.broadcast %cst_25 : f32 to vector<8x128xf32>
    %70 = arith.mulf %69, %62 : vector<8x128xf32>
    %71 = arith.subf %68, %70 : vector<8x128xf32>
    %cst_26 = arith.constant 5.000000e-01 : f32
    %72 = vector.broadcast %cst_26 : f32 to vector<8x128xf32>
    %73 = arith.mulf %71, %72 : vector<8x128xf32>
    %cst_27 = arith.constant -1.000000e+00 : f32
    %74 = vector.broadcast %cst_27 : f32 to vector<8x128xf32>
    %75 = arith.mulf %62, %74 : vector<8x128xf32>
    %76 = arith.mulf %75, %61 : vector<8x128xf32>
    %cst_28 = arith.constant 3.000000e+00 : f32
    %77 = vector.broadcast %cst_28 : f32 to vector<8x128xf32>
    %78 = arith.mulf %45, %77 : vector<8x128xf32>
    %79 = arith.mulf %78, %76 : vector<8x128xf32>
    %cst_29 = arith.constant -3.000000e+00 : f32
    %80 = vector.broadcast %cst_29 : f32 to vector<8x128xf32>
    %81 = arith.mulf %76, %80 : vector<8x128xf32>
    %82 = arith.mulf %81, %61 : vector<8x128xf32>
    %cst_30 = arith.constant 1.000000e+00 : f32
    %83 = vector.broadcast %cst_30 : f32 to vector<8x128xf32>
    %cst_31 = arith.constant 0.000000e+00 : f32
    %84 = vector.broadcast %cst_31 : f32 to vector<8x128xf32>
    %85 = arith.mulf %83, %52 : vector<8x128xf32>
    %86 = arith.mulf %84, %53 : vector<8x128xf32>
    %87 = arith.subf %85, %86 : vector<8x128xf32>
    %88 = arith.mulf %84, %52 : vector<8x128xf32>
    %89 = arith.mulf %83, %53 : vector<8x128xf32>
    %90 = arith.addf %88, %89 : vector<8x128xf32>
    %91 = arith.mulf %87, %52 : vector<8x128xf32>
    %92 = arith.mulf %90, %53 : vector<8x128xf32>
    %93 = arith.subf %91, %92 : vector<8x128xf32>
    %94 = arith.mulf %90, %52 : vector<8x128xf32>
    %95 = arith.mulf %87, %53 : vector<8x128xf32>
    %96 = arith.addf %94, %95 : vector<8x128xf32>
    %cst_32 = arith.constant 0.000000e+00 : f32
    %97 = vector.broadcast %cst_32 : f32 to vector<8x128xf32>
    %cst_33 = arith.constant 0.282094806 : f32
    %98 = vector.broadcast %cst_33 : f32 to vector<8x128xf32>
    %99 = arith.mulf %98, %62 : vector<8x128xf32>
    %100 = arith.addf %97, %99 : vector<8x128xf32>
    %cst_34 = arith.constant 0.488602519 : f32
    %101 = vector.broadcast %cst_34 : f32 to vector<8x128xf32>
    %102 = arith.mulf %101, %65 : vector<8x128xf32>
    %103 = arith.addf %100, %102 : vector<8x128xf32>
    %cst_35 = arith.constant 0.488602519 : f32
    %104 = vector.broadcast %cst_35 : f32 to vector<8x128xf32>
    %105 = arith.mulf %104, %76 : vector<8x128xf32>
    %106 = arith.addf %87, %90 : vector<8x128xf32>
    %107 = arith.mulf %105, %106 : vector<8x128xf32>
    %108 = arith.addf %103, %107 : vector<8x128xf32>
    %cst_36 = arith.constant 0.63078314 : f32
    %109 = vector.broadcast %cst_36 : f32 to vector<8x128xf32>
    %110 = arith.mulf %109, %73 : vector<8x128xf32>
    %111 = arith.addf %108, %110 : vector<8x128xf32>
    %cst_37 = arith.constant 0.3641828 : f32
    %112 = vector.broadcast %cst_37 : f32 to vector<8x128xf32>
    %113 = arith.mulf %112, %79 : vector<8x128xf32>
    %114 = arith.addf %87, %90 : vector<8x128xf32>
    %115 = arith.mulf %113, %114 : vector<8x128xf32>
    %116 = arith.addf %111, %115 : vector<8x128xf32>
    %cst_38 = arith.constant 0.1820914 : f32
    %117 = vector.broadcast %cst_38 : f32 to vector<8x128xf32>
    %118 = arith.mulf %117, %82 : vector<8x128xf32>
    %119 = arith.addf %93, %96 : vector<8x128xf32>
    %120 = arith.mulf %118, %119 : vector<8x128xf32>
    %121 = arith.addf %116, %120 : vector<8x128xf32>
    %cst_39 = arith.constant -0.276850224 : f32
    %122 = vector.broadcast %cst_39 : f32 to vector<8x128xf32>
    %123 = arith.mulf %122, %14 : vector<8x128xf32>
    %cst_40 = arith.constant -0.810583531 : f32
    %124 = vector.broadcast %cst_40 : f32 to vector<8x128xf32>
    %125 = arith.mulf %124, %16 : vector<8x128xf32>
    %126 = arith.addf %123, %125 : vector<8x128xf32>
    %cst_41 = arith.constant -0.516050696 : f32
    %127 = vector.broadcast %cst_41 : f32 to vector<8x128xf32>
    %128 = arith.mulf %127, %17 : vector<8x128xf32>
    %129 = arith.addf %126, %128 : vector<8x128xf32>
    %cst_42 = arith.constant 0.383199066 : f32
    %130 = vector.broadcast %cst_42 : f32 to vector<8x128xf32>
    %131 = arith.mulf %130, %14 : vector<8x128xf32>
    %cst_43 = arith.constant -0.585623085 : f32
    %132 = vector.broadcast %cst_43 : f32 to vector<8x128xf32>
    %133 = arith.mulf %132, %16 : vector<8x128xf32>
    %134 = arith.addf %131, %133 : vector<8x128xf32>
    %cst_44 = arith.constant 0.714285731 : f32
    %135 = vector.broadcast %cst_44 : f32 to vector<8x128xf32>
    %136 = arith.mulf %135, %17 : vector<8x128xf32>
    %137 = arith.addf %134, %136 : vector<8x128xf32>
    %cst_45 = arith.constant -0.881199419 : f32
    %138 = vector.broadcast %cst_45 : f32 to vector<8x128xf32>
    %139 = arith.mulf %138, %14 : vector<8x128xf32>
    %cst_46 = arith.constant 0.000000e+00 : f32
    %140 = vector.broadcast %cst_46 : f32 to vector<8x128xf32>
    %141 = arith.mulf %140, %16 : vector<8x128xf32>
    %142 = arith.addf %139, %141 : vector<8x128xf32>
    %cst_47 = arith.constant 0.472744733 : f32
    %143 = vector.broadcast %cst_47 : f32 to vector<8x128xf32>
    %144 = arith.mulf %143, %17 : vector<8x128xf32>
    %145 = arith.addf %142, %144 : vector<8x128xf32>
    %cst_48 = arith.constant -1.000000e+00 : f32
    %cst_49 = arith.constant 1.000000e+00 : f32
    %146 = vector.broadcast %cst_48 : f32 to vector<8x128xf32>
    %147 = arith.maximumf %146, %145 : vector<8x128xf32>
    %148 = vector.broadcast %cst_49 : f32 to vector<8x128xf32>
    %149 = arith.minimumf %148, %147 : vector<8x128xf32>
    %150 = arith.mulf %129, %129 : vector<8x128xf32>
    %151 = arith.mulf %137, %137 : vector<8x128xf32>
    %152 = arith.addf %150, %151 : vector<8x128xf32>
    %cst_50 = arith.constant 9.99999968E-21 : f32
    %153 = vector.broadcast %cst_50 : f32 to vector<8x128xf32>
    %154 = arith.maximumf %152, %153 : vector<8x128xf32>
    %155 = math.rsqrt %154 : vector<8x128xf32>
    %156 = arith.mulf %129, %155 : vector<8x128xf32>
    %157 = arith.mulf %137, %155 : vector<8x128xf32>
    %cst_51 = arith.constant 1.000000e+00 : f32
    %158 = vector.broadcast %cst_51 : f32 to vector<8x128xf32>
    %159 = arith.subf %158, %149 : vector<8x128xf32>
    %cst_52 = arith.constant 1.000000e+00 : f32
    %160 = vector.broadcast %cst_52 : f32 to vector<8x128xf32>
    %161 = arith.addf %160, %149 : vector<8x128xf32>
    %162 = arith.mulf %159, %161 : vector<8x128xf32>
    %cst_53 = arith.constant 0.000000e+00 : f32
    %163 = vector.broadcast %cst_53 : f32 to vector<8x128xf32>
    %164 = arith.maximumf %162, %163 : vector<8x128xf32>
    %165 = math.sqrt %164 : vector<8x128xf32>
    %cst_54 = arith.constant 1.000000e+00 : f32
    %166 = vector.broadcast %cst_54 : f32 to vector<8x128xf32>
    %cst_55 = arith.constant 1.000000e+00 : f32
    %167 = vector.broadcast %cst_55 : f32 to vector<8x128xf32>
    %168 = arith.mulf %149, %167 : vector<8x128xf32>
    %169 = arith.mulf %168, %166 : vector<8x128xf32>
    %cst_56 = arith.constant 3.000000e+00 : f32
    %170 = vector.broadcast %cst_56 : f32 to vector<8x128xf32>
    %171 = arith.mulf %170, %149 : vector<8x128xf32>
    %172 = arith.mulf %171, %169 : vector<8x128xf32>
    %cst_57 = arith.constant 1.000000e+00 : f32
    %173 = vector.broadcast %cst_57 : f32 to vector<8x128xf32>
    %174 = arith.mulf %173, %166 : vector<8x128xf32>
    %175 = arith.subf %172, %174 : vector<8x128xf32>
    %cst_58 = arith.constant 5.000000e-01 : f32
    %176 = vector.broadcast %cst_58 : f32 to vector<8x128xf32>
    %177 = arith.mulf %175, %176 : vector<8x128xf32>
    %cst_59 = arith.constant -1.000000e+00 : f32
    %178 = vector.broadcast %cst_59 : f32 to vector<8x128xf32>
    %179 = arith.mulf %166, %178 : vector<8x128xf32>
    %180 = arith.mulf %179, %165 : vector<8x128xf32>
    %cst_60 = arith.constant 3.000000e+00 : f32
    %181 = vector.broadcast %cst_60 : f32 to vector<8x128xf32>
    %182 = arith.mulf %149, %181 : vector<8x128xf32>
    %183 = arith.mulf %182, %180 : vector<8x128xf32>
    %cst_61 = arith.constant -3.000000e+00 : f32
    %184 = vector.broadcast %cst_61 : f32 to vector<8x128xf32>
    %185 = arith.mulf %180, %184 : vector<8x128xf32>
    %186 = arith.mulf %185, %165 : vector<8x128xf32>
    %cst_62 = arith.constant 1.000000e+00 : f32
    %187 = vector.broadcast %cst_62 : f32 to vector<8x128xf32>
    %cst_63 = arith.constant 0.000000e+00 : f32
    %188 = vector.broadcast %cst_63 : f32 to vector<8x128xf32>
    %189 = arith.mulf %187, %156 : vector<8x128xf32>
    %190 = arith.mulf %188, %157 : vector<8x128xf32>
    %191 = arith.subf %189, %190 : vector<8x128xf32>
    %192 = arith.mulf %188, %156 : vector<8x128xf32>
    %193 = arith.mulf %187, %157 : vector<8x128xf32>
    %194 = arith.addf %192, %193 : vector<8x128xf32>
    %195 = arith.mulf %191, %156 : vector<8x128xf32>
    %196 = arith.mulf %194, %157 : vector<8x128xf32>
    %197 = arith.subf %195, %196 : vector<8x128xf32>
    %198 = arith.mulf %194, %156 : vector<8x128xf32>
    %199 = arith.mulf %191, %157 : vector<8x128xf32>
    %200 = arith.addf %198, %199 : vector<8x128xf32>
    %cst_64 = arith.constant 0.000000e+00 : f32
    %201 = vector.broadcast %cst_64 : f32 to vector<8x128xf32>
    %cst_65 = arith.constant 0.282094806 : f32
    %202 = vector.broadcast %cst_65 : f32 to vector<8x128xf32>
    %203 = arith.mulf %202, %166 : vector<8x128xf32>
    %204 = arith.addf %201, %203 : vector<8x128xf32>
    %cst_66 = arith.constant 0.488602519 : f32
    %205 = vector.broadcast %cst_66 : f32 to vector<8x128xf32>
    %206 = arith.mulf %205, %169 : vector<8x128xf32>
    %207 = arith.addf %204, %206 : vector<8x128xf32>
    %cst_67 = arith.constant 0.488602519 : f32
    %208 = vector.broadcast %cst_67 : f32 to vector<8x128xf32>
    %209 = arith.mulf %208, %180 : vector<8x128xf32>
    %210 = arith.addf %191, %194 : vector<8x128xf32>
    %211 = arith.mulf %209, %210 : vector<8x128xf32>
    %212 = arith.addf %207, %211 : vector<8x128xf32>
    %cst_68 = arith.constant 0.63078314 : f32
    %213 = vector.broadcast %cst_68 : f32 to vector<8x128xf32>
    %214 = arith.mulf %213, %177 : vector<8x128xf32>
    %215 = arith.addf %212, %214 : vector<8x128xf32>
    %cst_69 = arith.constant 0.3641828 : f32
    %216 = vector.broadcast %cst_69 : f32 to vector<8x128xf32>
    %217 = arith.mulf %216, %183 : vector<8x128xf32>
    %218 = arith.addf %191, %194 : vector<8x128xf32>
    %219 = arith.mulf %217, %218 : vector<8x128xf32>
    %220 = arith.addf %215, %219 : vector<8x128xf32>
    %cst_70 = arith.constant 0.1820914 : f32
    %221 = vector.broadcast %cst_70 : f32 to vector<8x128xf32>
    %222 = arith.mulf %221, %186 : vector<8x128xf32>
    %223 = arith.addf %197, %200 : vector<8x128xf32>
    %224 = arith.mulf %222, %223 : vector<8x128xf32>
    %225 = arith.addf %220, %224 : vector<8x128xf32>
    %cst_71 = arith.constant -0.163139775 : f32
    %226 = vector.broadcast %cst_71 : f32 to vector<8x128xf32>
    %227 = arith.mulf %226, %14 : vector<8x128xf32>
    %cst_72 = arith.constant -0.983435809 : f32
    %228 = vector.broadcast %cst_72 : f32 to vector<8x128xf32>
    %229 = arith.mulf %228, %16 : vector<8x128xf32>
    %230 = arith.addf %227, %229 : vector<8x128xf32>
    %cst_73 = arith.constant 0.0789898335 : f32
    %231 = vector.broadcast %cst_73 : f32 to vector<8x128xf32>
    %232 = arith.mulf %231, %17 : vector<8x128xf32>
    %233 = arith.addf %230, %232 : vector<8x128xf32>
    %cst_74 = arith.constant -0.885139822 : f32
    %234 = vector.broadcast %cst_74 : f32 to vector<8x128xf32>
    %235 = arith.mulf %234, %14 : vector<8x128xf32>
    %cst_75 = arith.constant 0.181256667 : f32
    %236 = vector.broadcast %cst_75 : f32 to vector<8x128xf32>
    %237 = arith.mulf %236, %16 : vector<8x128xf32>
    %238 = arith.addf %235, %237 : vector<8x128xf32>
    %cst_76 = arith.constant 0.428571433 : f32
    %239 = vector.broadcast %cst_76 : f32 to vector<8x128xf32>
    %240 = arith.mulf %239, %17 : vector<8x128xf32>
    %241 = arith.addf %238, %240 : vector<8x128xf32>
    %cst_77 = arith.constant -0.435789943 : f32
    %242 = vector.broadcast %cst_77 : f32 to vector<8x128xf32>
    %243 = arith.mulf %242, %14 : vector<8x128xf32>
    %cst_78 = arith.constant 0.000000e+00 : f32
    %244 = vector.broadcast %cst_78 : f32 to vector<8x128xf32>
    %245 = arith.mulf %244, %16 : vector<8x128xf32>
    %246 = arith.addf %243, %245 : vector<8x128xf32>
    %cst_79 = arith.constant -0.900048434 : f32
    %247 = vector.broadcast %cst_79 : f32 to vector<8x128xf32>
    %248 = arith.mulf %247, %17 : vector<8x128xf32>
    %249 = arith.addf %246, %248 : vector<8x128xf32>
    %cst_80 = arith.constant -1.000000e+00 : f32
    %cst_81 = arith.constant 1.000000e+00 : f32
    %250 = vector.broadcast %cst_80 : f32 to vector<8x128xf32>
    %251 = arith.maximumf %250, %249 : vector<8x128xf32>
    %252 = vector.broadcast %cst_81 : f32 to vector<8x128xf32>
    %253 = arith.minimumf %252, %251 : vector<8x128xf32>
    %254 = arith.mulf %233, %233 : vector<8x128xf32>
    %255 = arith.mulf %241, %241 : vector<8x128xf32>
    %256 = arith.addf %254, %255 : vector<8x128xf32>
    %cst_82 = arith.constant 9.99999968E-21 : f32
    %257 = vector.broadcast %cst_82 : f32 to vector<8x128xf32>
    %258 = arith.maximumf %256, %257 : vector<8x128xf32>
    %259 = math.rsqrt %258 : vector<8x128xf32>
    %260 = arith.mulf %233, %259 : vector<8x128xf32>
    %261 = arith.mulf %241, %259 : vector<8x128xf32>
    %cst_83 = arith.constant 1.000000e+00 : f32
    %262 = vector.broadcast %cst_83 : f32 to vector<8x128xf32>
    %263 = arith.subf %262, %253 : vector<8x128xf32>
    %cst_84 = arith.constant 1.000000e+00 : f32
    %264 = vector.broadcast %cst_84 : f32 to vector<8x128xf32>
    %265 = arith.addf %264, %253 : vector<8x128xf32>
    %266 = arith.mulf %263, %265 : vector<8x128xf32>
    %cst_85 = arith.constant 0.000000e+00 : f32
    %267 = vector.broadcast %cst_85 : f32 to vector<8x128xf32>
    %268 = arith.maximumf %266, %267 : vector<8x128xf32>
    %269 = math.sqrt %268 : vector<8x128xf32>
    %cst_86 = arith.constant 1.000000e+00 : f32
    %270 = vector.broadcast %cst_86 : f32 to vector<8x128xf32>
    %cst_87 = arith.constant 1.000000e+00 : f32
    %271 = vector.broadcast %cst_87 : f32 to vector<8x128xf32>
    %272 = arith.mulf %253, %271 : vector<8x128xf32>
    %273 = arith.mulf %272, %270 : vector<8x128xf32>
    %cst_88 = arith.constant 3.000000e+00 : f32
    %274 = vector.broadcast %cst_88 : f32 to vector<8x128xf32>
    %275 = arith.mulf %274, %253 : vector<8x128xf32>
    %276 = arith.mulf %275, %273 : vector<8x128xf32>
    %cst_89 = arith.constant 1.000000e+00 : f32
    %277 = vector.broadcast %cst_89 : f32 to vector<8x128xf32>
    %278 = arith.mulf %277, %270 : vector<8x128xf32>
    %279 = arith.subf %276, %278 : vector<8x128xf32>
    %cst_90 = arith.constant 5.000000e-01 : f32
    %280 = vector.broadcast %cst_90 : f32 to vector<8x128xf32>
    %281 = arith.mulf %279, %280 : vector<8x128xf32>
    %cst_91 = arith.constant -1.000000e+00 : f32
    %282 = vector.broadcast %cst_91 : f32 to vector<8x128xf32>
    %283 = arith.mulf %270, %282 : vector<8x128xf32>
    %284 = arith.mulf %283, %269 : vector<8x128xf32>
    %cst_92 = arith.constant 3.000000e+00 : f32
    %285 = vector.broadcast %cst_92 : f32 to vector<8x128xf32>
    %286 = arith.mulf %253, %285 : vector<8x128xf32>
    %287 = arith.mulf %286, %284 : vector<8x128xf32>
    %cst_93 = arith.constant -3.000000e+00 : f32
    %288 = vector.broadcast %cst_93 : f32 to vector<8x128xf32>
    %289 = arith.mulf %284, %288 : vector<8x128xf32>
    %290 = arith.mulf %289, %269 : vector<8x128xf32>
    %cst_94 = arith.constant 1.000000e+00 : f32
    %291 = vector.broadcast %cst_94 : f32 to vector<8x128xf32>
    %cst_95 = arith.constant 0.000000e+00 : f32
    %292 = vector.broadcast %cst_95 : f32 to vector<8x128xf32>
    %293 = arith.mulf %291, %260 : vector<8x128xf32>
    %294 = arith.mulf %292, %261 : vector<8x128xf32>
    %295 = arith.subf %293, %294 : vector<8x128xf32>
    %296 = arith.mulf %292, %260 : vector<8x128xf32>
    %297 = arith.mulf %291, %261 : vector<8x128xf32>
    %298 = arith.addf %296, %297 : vector<8x128xf32>
    %299 = arith.mulf %295, %260 : vector<8x128xf32>
    %300 = arith.mulf %298, %261 : vector<8x128xf32>
    %301 = arith.subf %299, %300 : vector<8x128xf32>
    %302 = arith.mulf %298, %260 : vector<8x128xf32>
    %303 = arith.mulf %295, %261 : vector<8x128xf32>
    %304 = arith.addf %302, %303 : vector<8x128xf32>
    %cst_96 = arith.constant 0.000000e+00 : f32
    %305 = vector.broadcast %cst_96 : f32 to vector<8x128xf32>
    %cst_97 = arith.constant 0.282094806 : f32
    %306 = vector.broadcast %cst_97 : f32 to vector<8x128xf32>
    %307 = arith.mulf %306, %270 : vector<8x128xf32>
    %308 = arith.addf %305, %307 : vector<8x128xf32>
    %cst_98 = arith.constant 0.488602519 : f32
    %309 = vector.broadcast %cst_98 : f32 to vector<8x128xf32>
    %310 = arith.mulf %309, %273 : vector<8x128xf32>
    %311 = arith.addf %308, %310 : vector<8x128xf32>
    %cst_99 = arith.constant 0.488602519 : f32
    %312 = vector.broadcast %cst_99 : f32 to vector<8x128xf32>
    %313 = arith.mulf %312, %284 : vector<8x128xf32>
    %314 = arith.addf %295, %298 : vector<8x128xf32>
    %315 = arith.mulf %313, %314 : vector<8x128xf32>
    %316 = arith.addf %311, %315 : vector<8x128xf32>
    %cst_100 = arith.constant 0.63078314 : f32
    %317 = vector.broadcast %cst_100 : f32 to vector<8x128xf32>
    %318 = arith.mulf %317, %281 : vector<8x128xf32>
    %319 = arith.addf %316, %318 : vector<8x128xf32>
    %cst_101 = arith.constant 0.3641828 : f32
    %320 = vector.broadcast %cst_101 : f32 to vector<8x128xf32>
    %321 = arith.mulf %320, %287 : vector<8x128xf32>
    %322 = arith.addf %295, %298 : vector<8x128xf32>
    %323 = arith.mulf %321, %322 : vector<8x128xf32>
    %324 = arith.addf %319, %323 : vector<8x128xf32>
    %cst_102 = arith.constant 0.1820914 : f32
    %325 = vector.broadcast %cst_102 : f32 to vector<8x128xf32>
    %326 = arith.mulf %325, %290 : vector<8x128xf32>
    %327 = arith.addf %301, %304 : vector<8x128xf32>
    %328 = arith.mulf %326, %327 : vector<8x128xf32>
    %329 = arith.addf %324, %328 : vector<8x128xf32>
    %cst_103 = arith.constant 0.764250814 : f32
    %330 = vector.broadcast %cst_103 : f32 to vector<8x128xf32>
    %331 = arith.mulf %330, %14 : vector<8x128xf32>
    %cst_104 = arith.constant -0.230820134 : f32
    %332 = vector.broadcast %cst_104 : f32 to vector<8x128xf32>
    %333 = arith.mulf %332, %16 : vector<8x128xf32>
    %334 = arith.addf %331, %333 : vector<8x128xf32>
    %cst_105 = arith.constant 0.602198303 : f32
    %335 = vector.broadcast %cst_105 : f32 to vector<8x128xf32>
    %336 = arith.mulf %335, %17 : vector<8x128xf32>
    %337 = arith.addf %334, %336 : vector<8x128xf32>
    %cst_106 = arith.constant 0.181300223 : f32
    %338 = vector.broadcast %cst_106 : f32 to vector<8x128xf32>
    %339 = arith.mulf %338, %14 : vector<8x128xf32>
    %cst_107 = arith.constant 0.972996413 : f32
    %340 = vector.broadcast %cst_107 : f32 to vector<8x128xf32>
    %341 = arith.mulf %340, %16 : vector<8x128xf32>
    %342 = arith.addf %339, %341 : vector<8x128xf32>
    %cst_108 = arith.constant 0.142857149 : f32
    %343 = vector.broadcast %cst_108 : f32 to vector<8x128xf32>
    %344 = arith.mulf %343, %17 : vector<8x128xf32>
    %345 = arith.addf %342, %344 : vector<8x128xf32>
    %cst_109 = arith.constant -0.618911087 : f32
    %346 = vector.broadcast %cst_109 : f32 to vector<8x128xf32>
    %347 = arith.mulf %346, %14 : vector<8x128xf32>
    %cst_110 = arith.constant 0.000000e+00 : f32
    %348 = vector.broadcast %cst_110 : f32 to vector<8x128xf32>
    %349 = arith.mulf %348, %16 : vector<8x128xf32>
    %350 = arith.addf %347, %349 : vector<8x128xf32>
    %cst_111 = arith.constant 0.785461068 : f32
    %351 = vector.broadcast %cst_111 : f32 to vector<8x128xf32>
    %352 = arith.mulf %351, %17 : vector<8x128xf32>
    %353 = arith.addf %350, %352 : vector<8x128xf32>
    %cst_112 = arith.constant -1.000000e+00 : f32
    %cst_113 = arith.constant 1.000000e+00 : f32
    %354 = vector.broadcast %cst_112 : f32 to vector<8x128xf32>
    %355 = arith.maximumf %354, %353 : vector<8x128xf32>
    %356 = vector.broadcast %cst_113 : f32 to vector<8x128xf32>
    %357 = arith.minimumf %356, %355 : vector<8x128xf32>
    %358 = arith.mulf %337, %337 : vector<8x128xf32>
    %359 = arith.mulf %345, %345 : vector<8x128xf32>
    %360 = arith.addf %358, %359 : vector<8x128xf32>
    %cst_114 = arith.constant 9.99999968E-21 : f32
    %361 = vector.broadcast %cst_114 : f32 to vector<8x128xf32>
    %362 = arith.maximumf %360, %361 : vector<8x128xf32>
    %363 = math.rsqrt %362 : vector<8x128xf32>
    %364 = arith.mulf %337, %363 : vector<8x128xf32>
    %365 = arith.mulf %345, %363 : vector<8x128xf32>
    %cst_115 = arith.constant 1.000000e+00 : f32
    %366 = vector.broadcast %cst_115 : f32 to vector<8x128xf32>
    %367 = arith.subf %366, %357 : vector<8x128xf32>
    %cst_116 = arith.constant 1.000000e+00 : f32
    %368 = vector.broadcast %cst_116 : f32 to vector<8x128xf32>
    %369 = arith.addf %368, %357 : vector<8x128xf32>
    %370 = arith.mulf %367, %369 : vector<8x128xf32>
    %cst_117 = arith.constant 0.000000e+00 : f32
    %371 = vector.broadcast %cst_117 : f32 to vector<8x128xf32>
    %372 = arith.maximumf %370, %371 : vector<8x128xf32>
    %373 = math.sqrt %372 : vector<8x128xf32>
    %cst_118 = arith.constant 1.000000e+00 : f32
    %374 = vector.broadcast %cst_118 : f32 to vector<8x128xf32>
    %cst_119 = arith.constant 1.000000e+00 : f32
    %375 = vector.broadcast %cst_119 : f32 to vector<8x128xf32>
    %376 = arith.mulf %357, %375 : vector<8x128xf32>
    %377 = arith.mulf %376, %374 : vector<8x128xf32>
    %cst_120 = arith.constant 3.000000e+00 : f32
    %378 = vector.broadcast %cst_120 : f32 to vector<8x128xf32>
    %379 = arith.mulf %378, %357 : vector<8x128xf32>
    %380 = arith.mulf %379, %377 : vector<8x128xf32>
    %cst_121 = arith.constant 1.000000e+00 : f32
    %381 = vector.broadcast %cst_121 : f32 to vector<8x128xf32>
    %382 = arith.mulf %381, %374 : vector<8x128xf32>
    %383 = arith.subf %380, %382 : vector<8x128xf32>
    %cst_122 = arith.constant 5.000000e-01 : f32
    %384 = vector.broadcast %cst_122 : f32 to vector<8x128xf32>
    %385 = arith.mulf %383, %384 : vector<8x128xf32>
    %cst_123 = arith.constant -1.000000e+00 : f32
    %386 = vector.broadcast %cst_123 : f32 to vector<8x128xf32>
    %387 = arith.mulf %374, %386 : vector<8x128xf32>
    %388 = arith.mulf %387, %373 : vector<8x128xf32>
    %cst_124 = arith.constant 3.000000e+00 : f32
    %389 = vector.broadcast %cst_124 : f32 to vector<8x128xf32>
    %390 = arith.mulf %357, %389 : vector<8x128xf32>
    %391 = arith.mulf %390, %388 : vector<8x128xf32>
    %cst_125 = arith.constant -3.000000e+00 : f32
    %392 = vector.broadcast %cst_125 : f32 to vector<8x128xf32>
    %393 = arith.mulf %388, %392 : vector<8x128xf32>
    %394 = arith.mulf %393, %373 : vector<8x128xf32>
    %cst_126 = arith.constant 1.000000e+00 : f32
    %395 = vector.broadcast %cst_126 : f32 to vector<8x128xf32>
    %cst_127 = arith.constant 0.000000e+00 : f32
    %396 = vector.broadcast %cst_127 : f32 to vector<8x128xf32>
    %397 = arith.mulf %395, %364 : vector<8x128xf32>
    %398 = arith.mulf %396, %365 : vector<8x128xf32>
    %399 = arith.subf %397, %398 : vector<8x128xf32>
    %400 = arith.mulf %396, %364 : vector<8x128xf32>
    %401 = arith.mulf %395, %365 : vector<8x128xf32>
    %402 = arith.addf %400, %401 : vector<8x128xf32>
    %403 = arith.mulf %399, %364 : vector<8x128xf32>
    %404 = arith.mulf %402, %365 : vector<8x128xf32>
    %405 = arith.subf %403, %404 : vector<8x128xf32>
    %406 = arith.mulf %402, %364 : vector<8x128xf32>
    %407 = arith.mulf %399, %365 : vector<8x128xf32>
    %408 = arith.addf %406, %407 : vector<8x128xf32>
    %cst_128 = arith.constant 0.000000e+00 : f32
    %409 = vector.broadcast %cst_128 : f32 to vector<8x128xf32>
    %cst_129 = arith.constant 0.282094806 : f32
    %410 = vector.broadcast %cst_129 : f32 to vector<8x128xf32>
    %411 = arith.mulf %410, %374 : vector<8x128xf32>
    %412 = arith.addf %409, %411 : vector<8x128xf32>
    %cst_130 = arith.constant 0.488602519 : f32
    %413 = vector.broadcast %cst_130 : f32 to vector<8x128xf32>
    %414 = arith.mulf %413, %377 : vector<8x128xf32>
    %415 = arith.addf %412, %414 : vector<8x128xf32>
    %cst_131 = arith.constant 0.488602519 : f32
    %416 = vector.broadcast %cst_131 : f32 to vector<8x128xf32>
    %417 = arith.mulf %416, %388 : vector<8x128xf32>
    %418 = arith.addf %399, %402 : vector<8x128xf32>
    %419 = arith.mulf %417, %418 : vector<8x128xf32>
    %420 = arith.addf %415, %419 : vector<8x128xf32>
    %cst_132 = arith.constant 0.63078314 : f32
    %421 = vector.broadcast %cst_132 : f32 to vector<8x128xf32>
    %422 = arith.mulf %421, %385 : vector<8x128xf32>
    %423 = arith.addf %420, %422 : vector<8x128xf32>
    %cst_133 = arith.constant 0.3641828 : f32
    %424 = vector.broadcast %cst_133 : f32 to vector<8x128xf32>
    %425 = arith.mulf %424, %391 : vector<8x128xf32>
    %426 = arith.addf %399, %402 : vector<8x128xf32>
    %427 = arith.mulf %425, %426 : vector<8x128xf32>
    %428 = arith.addf %423, %427 : vector<8x128xf32>
    %cst_134 = arith.constant 0.1820914 : f32
    %429 = vector.broadcast %cst_134 : f32 to vector<8x128xf32>
    %430 = arith.mulf %429, %394 : vector<8x128xf32>
    %431 = arith.addf %405, %408 : vector<8x128xf32>
    %432 = arith.mulf %430, %431 : vector<8x128xf32>
    %433 = arith.addf %428, %432 : vector<8x128xf32>
    %cst_135 = arith.constant 0.170572773 : f32
    %434 = vector.broadcast %cst_135 : f32 to vector<8x128xf32>
    %435 = arith.mulf %434, %14 : vector<8x128xf32>
    %cst_136 = arith.constant 0.145028532 : f32
    %436 = vector.broadcast %cst_136 : f32 to vector<8x128xf32>
    %437 = arith.mulf %436, %16 : vector<8x128xf32>
    %438 = arith.addf %435, %437 : vector<8x128xf32>
    %cst_137 = arith.constant -0.974613606 : f32
    %439 = vector.broadcast %cst_137 : f32 to vector<8x128xf32>
    %440 = arith.mulf %439, %17 : vector<8x128xf32>
    %441 = arith.addf %438, %440 : vector<8x128xf32>
    %cst_138 = arith.constant 0.025002256 : f32
    %442 = vector.broadcast %cst_138 : f32 to vector<8x128xf32>
    %443 = arith.mulf %442, %14 : vector<8x128xf32>
    %cst_139 = arith.constant -0.989427447 : f32
    %444 = vector.broadcast %cst_139 : f32 to vector<8x128xf32>
    %445 = arith.mulf %444, %16 : vector<8x128xf32>
    %446 = arith.addf %443, %445 : vector<8x128xf32>
    %cst_140 = arith.constant -0.142857149 : f32
    %447 = vector.broadcast %cst_140 : f32 to vector<8x128xf32>
    %448 = arith.mulf %447, %17 : vector<8x128xf32>
    %449 = arith.addf %446, %448 : vector<8x128xf32>
    %cst_141 = arith.constant -0.985027849 : f32
    %450 = vector.broadcast %cst_141 : f32 to vector<8x128xf32>
    %451 = arith.mulf %450, %14 : vector<8x128xf32>
    %cst_142 = arith.constant 0.000000e+00 : f32
    %452 = vector.broadcast %cst_142 : f32 to vector<8x128xf32>
    %453 = arith.mulf %452, %16 : vector<8x128xf32>
    %454 = arith.addf %451, %453 : vector<8x128xf32>
    %cst_143 = arith.constant -0.172395423 : f32
    %455 = vector.broadcast %cst_143 : f32 to vector<8x128xf32>
    %456 = arith.mulf %455, %17 : vector<8x128xf32>
    %457 = arith.addf %454, %456 : vector<8x128xf32>
    %cst_144 = arith.constant -1.000000e+00 : f32
    %cst_145 = arith.constant 1.000000e+00 : f32
    %458 = vector.broadcast %cst_144 : f32 to vector<8x128xf32>
    %459 = arith.maximumf %458, %457 : vector<8x128xf32>
    %460 = vector.broadcast %cst_145 : f32 to vector<8x128xf32>
    %461 = arith.minimumf %460, %459 : vector<8x128xf32>
    %462 = arith.mulf %441, %441 : vector<8x128xf32>
    %463 = arith.mulf %449, %449 : vector<8x128xf32>
    %464 = arith.addf %462, %463 : vector<8x128xf32>
    %cst_146 = arith.constant 9.99999968E-21 : f32
    %465 = vector.broadcast %cst_146 : f32 to vector<8x128xf32>
    %466 = arith.maximumf %464, %465 : vector<8x128xf32>
    %467 = math.rsqrt %466 : vector<8x128xf32>
    %468 = arith.mulf %441, %467 : vector<8x128xf32>
    %469 = arith.mulf %449, %467 : vector<8x128xf32>
    %cst_147 = arith.constant 1.000000e+00 : f32
    %470 = vector.broadcast %cst_147 : f32 to vector<8x128xf32>
    %471 = arith.subf %470, %461 : vector<8x128xf32>
    %cst_148 = arith.constant 1.000000e+00 : f32
    %472 = vector.broadcast %cst_148 : f32 to vector<8x128xf32>
    %473 = arith.addf %472, %461 : vector<8x128xf32>
    %474 = arith.mulf %471, %473 : vector<8x128xf32>
    %cst_149 = arith.constant 0.000000e+00 : f32
    %475 = vector.broadcast %cst_149 : f32 to vector<8x128xf32>
    %476 = arith.maximumf %474, %475 : vector<8x128xf32>
    %477 = math.sqrt %476 : vector<8x128xf32>
    %cst_150 = arith.constant 1.000000e+00 : f32
    %478 = vector.broadcast %cst_150 : f32 to vector<8x128xf32>
    %cst_151 = arith.constant 1.000000e+00 : f32
    %479 = vector.broadcast %cst_151 : f32 to vector<8x128xf32>
    %480 = arith.mulf %461, %479 : vector<8x128xf32>
    %481 = arith.mulf %480, %478 : vector<8x128xf32>
    %cst_152 = arith.constant 3.000000e+00 : f32
    %482 = vector.broadcast %cst_152 : f32 to vector<8x128xf32>
    %483 = arith.mulf %482, %461 : vector<8x128xf32>
    %484 = arith.mulf %483, %481 : vector<8x128xf32>
    %cst_153 = arith.constant 1.000000e+00 : f32
    %485 = vector.broadcast %cst_153 : f32 to vector<8x128xf32>
    %486 = arith.mulf %485, %478 : vector<8x128xf32>
    %487 = arith.subf %484, %486 : vector<8x128xf32>
    %cst_154 = arith.constant 5.000000e-01 : f32
    %488 = vector.broadcast %cst_154 : f32 to vector<8x128xf32>
    %489 = arith.mulf %487, %488 : vector<8x128xf32>
    %cst_155 = arith.constant -1.000000e+00 : f32
    %490 = vector.broadcast %cst_155 : f32 to vector<8x128xf32>
    %491 = arith.mulf %478, %490 : vector<8x128xf32>
    %492 = arith.mulf %491, %477 : vector<8x128xf32>
    %cst_156 = arith.constant 3.000000e+00 : f32
    %493 = vector.broadcast %cst_156 : f32 to vector<8x128xf32>
    %494 = arith.mulf %461, %493 : vector<8x128xf32>
    %495 = arith.mulf %494, %492 : vector<8x128xf32>
    %cst_157 = arith.constant -3.000000e+00 : f32
    %496 = vector.broadcast %cst_157 : f32 to vector<8x128xf32>
    %497 = arith.mulf %492, %496 : vector<8x128xf32>
    %498 = arith.mulf %497, %477 : vector<8x128xf32>
    %cst_158 = arith.constant 1.000000e+00 : f32
    %499 = vector.broadcast %cst_158 : f32 to vector<8x128xf32>
    %cst_159 = arith.constant 0.000000e+00 : f32
    %500 = vector.broadcast %cst_159 : f32 to vector<8x128xf32>
    %501 = arith.mulf %499, %468 : vector<8x128xf32>
    %502 = arith.mulf %500, %469 : vector<8x128xf32>
    %503 = arith.subf %501, %502 : vector<8x128xf32>
    %504 = arith.mulf %500, %468 : vector<8x128xf32>
    %505 = arith.mulf %499, %469 : vector<8x128xf32>
    %506 = arith.addf %504, %505 : vector<8x128xf32>
    %507 = arith.mulf %503, %468 : vector<8x128xf32>
    %508 = arith.mulf %506, %469 : vector<8x128xf32>
    %509 = arith.subf %507, %508 : vector<8x128xf32>
    %510 = arith.mulf %506, %468 : vector<8x128xf32>
    %511 = arith.mulf %503, %469 : vector<8x128xf32>
    %512 = arith.addf %510, %511 : vector<8x128xf32>
    %cst_160 = arith.constant 0.000000e+00 : f32
    %513 = vector.broadcast %cst_160 : f32 to vector<8x128xf32>
    %cst_161 = arith.constant 0.282094806 : f32
    %514 = vector.broadcast %cst_161 : f32 to vector<8x128xf32>
    %515 = arith.mulf %514, %478 : vector<8x128xf32>
    %516 = arith.addf %513, %515 : vector<8x128xf32>
    %cst_162 = arith.constant 0.488602519 : f32
    %517 = vector.broadcast %cst_162 : f32 to vector<8x128xf32>
    %518 = arith.mulf %517, %481 : vector<8x128xf32>
    %519 = arith.addf %516, %518 : vector<8x128xf32>
    %cst_163 = arith.constant 0.488602519 : f32
    %520 = vector.broadcast %cst_163 : f32 to vector<8x128xf32>
    %521 = arith.mulf %520, %492 : vector<8x128xf32>
    %522 = arith.addf %503, %506 : vector<8x128xf32>
    %523 = arith.mulf %521, %522 : vector<8x128xf32>
    %524 = arith.addf %519, %523 : vector<8x128xf32>
    %cst_164 = arith.constant 0.63078314 : f32
    %525 = vector.broadcast %cst_164 : f32 to vector<8x128xf32>
    %526 = arith.mulf %525, %489 : vector<8x128xf32>
    %527 = arith.addf %524, %526 : vector<8x128xf32>
    %cst_165 = arith.constant 0.3641828 : f32
    %528 = vector.broadcast %cst_165 : f32 to vector<8x128xf32>
    %529 = arith.mulf %528, %495 : vector<8x128xf32>
    %530 = arith.addf %503, %506 : vector<8x128xf32>
    %531 = arith.mulf %529, %530 : vector<8x128xf32>
    %532 = arith.addf %527, %531 : vector<8x128xf32>
    %cst_166 = arith.constant 0.1820914 : f32
    %533 = vector.broadcast %cst_166 : f32 to vector<8x128xf32>
    %534 = arith.mulf %533, %498 : vector<8x128xf32>
    %535 = arith.addf %509, %512 : vector<8x128xf32>
    %536 = arith.mulf %534, %535 : vector<8x128xf32>
    %537 = arith.addf %532, %536 : vector<8x128xf32>
    %cst_167 = arith.constant -0.422718078 : f32
    %538 = vector.broadcast %cst_167 : f32 to vector<8x128xf32>
    %539 = arith.mulf %538, %14 : vector<8x128xf32>
    %cst_168 = arith.constant 0.490048766 : f32
    %540 = vector.broadcast %cst_168 : f32 to vector<8x128xf32>
    %541 = arith.mulf %540, %16 : vector<8x128xf32>
    %542 = arith.addf %539, %541 : vector<8x128xf32>
    %cst_169 = arith.constant 0.762339591 : f32
    %543 = vector.broadcast %cst_169 : f32 to vector<8x128xf32>
    %544 = arith.mulf %543, %17 : vector<8x128xf32>
    %545 = arith.addf %542, %544 : vector<8x128xf32>
    %cst_170 = arith.constant 0.237643287 : f32
    %546 = vector.broadcast %cst_170 : f32 to vector<8x128xf32>
    %547 = arith.mulf %546, %14 : vector<8x128xf32>
    %cst_171 = arith.constant 0.871695041 : f32
    %548 = vector.broadcast %cst_171 : f32 to vector<8x128xf32>
    %549 = arith.mulf %548, %16 : vector<8x128xf32>
    %550 = arith.addf %547, %549 : vector<8x128xf32>
    %cst_172 = arith.constant -0.428571433 : f32
    %551 = vector.broadcast %cst_172 : f32 to vector<8x128xf32>
    %552 = arith.mulf %551, %17 : vector<8x128xf32>
    %553 = arith.addf %550, %552 : vector<8x128xf32>
    %cst_173 = arith.constant -0.874548494 : f32
    %554 = vector.broadcast %cst_173 : f32 to vector<8x128xf32>
    %555 = arith.mulf %554, %14 : vector<8x128xf32>
    %cst_174 = arith.constant 0.000000e+00 : f32
    %556 = vector.broadcast %cst_174 : f32 to vector<8x128xf32>
    %557 = arith.mulf %556, %16 : vector<8x128xf32>
    %558 = arith.addf %555, %557 : vector<8x128xf32>
    %cst_175 = arith.constant -0.484938025 : f32
    %559 = vector.broadcast %cst_175 : f32 to vector<8x128xf32>
    %560 = arith.mulf %559, %17 : vector<8x128xf32>
    %561 = arith.addf %558, %560 : vector<8x128xf32>
    %cst_176 = arith.constant -1.000000e+00 : f32
    %cst_177 = arith.constant 1.000000e+00 : f32
    %562 = vector.broadcast %cst_176 : f32 to vector<8x128xf32>
    %563 = arith.maximumf %562, %561 : vector<8x128xf32>
    %564 = vector.broadcast %cst_177 : f32 to vector<8x128xf32>
    %565 = arith.minimumf %564, %563 : vector<8x128xf32>
    %566 = arith.mulf %545, %545 : vector<8x128xf32>
    %567 = arith.mulf %553, %553 : vector<8x128xf32>
    %568 = arith.addf %566, %567 : vector<8x128xf32>
    %cst_178 = arith.constant 9.99999968E-21 : f32
    %569 = vector.broadcast %cst_178 : f32 to vector<8x128xf32>
    %570 = arith.maximumf %568, %569 : vector<8x128xf32>
    %571 = math.rsqrt %570 : vector<8x128xf32>
    %572 = arith.mulf %545, %571 : vector<8x128xf32>
    %573 = arith.mulf %553, %571 : vector<8x128xf32>
    %cst_179 = arith.constant 1.000000e+00 : f32
    %574 = vector.broadcast %cst_179 : f32 to vector<8x128xf32>
    %575 = arith.subf %574, %565 : vector<8x128xf32>
    %cst_180 = arith.constant 1.000000e+00 : f32
    %576 = vector.broadcast %cst_180 : f32 to vector<8x128xf32>
    %577 = arith.addf %576, %565 : vector<8x128xf32>
    %578 = arith.mulf %575, %577 : vector<8x128xf32>
    %cst_181 = arith.constant 0.000000e+00 : f32
    %579 = vector.broadcast %cst_181 : f32 to vector<8x128xf32>
    %580 = arith.maximumf %578, %579 : vector<8x128xf32>
    %581 = math.sqrt %580 : vector<8x128xf32>
    %cst_182 = arith.constant 1.000000e+00 : f32
    %582 = vector.broadcast %cst_182 : f32 to vector<8x128xf32>
    %cst_183 = arith.constant 1.000000e+00 : f32
    %583 = vector.broadcast %cst_183 : f32 to vector<8x128xf32>
    %584 = arith.mulf %565, %583 : vector<8x128xf32>
    %585 = arith.mulf %584, %582 : vector<8x128xf32>
    %cst_184 = arith.constant 3.000000e+00 : f32
    %586 = vector.broadcast %cst_184 : f32 to vector<8x128xf32>
    %587 = arith.mulf %586, %565 : vector<8x128xf32>
    %588 = arith.mulf %587, %585 : vector<8x128xf32>
    %cst_185 = arith.constant 1.000000e+00 : f32
    %589 = vector.broadcast %cst_185 : f32 to vector<8x128xf32>
    %590 = arith.mulf %589, %582 : vector<8x128xf32>
    %591 = arith.subf %588, %590 : vector<8x128xf32>
    %cst_186 = arith.constant 5.000000e-01 : f32
    %592 = vector.broadcast %cst_186 : f32 to vector<8x128xf32>
    %593 = arith.mulf %591, %592 : vector<8x128xf32>
    %cst_187 = arith.constant -1.000000e+00 : f32
    %594 = vector.broadcast %cst_187 : f32 to vector<8x128xf32>
    %595 = arith.mulf %582, %594 : vector<8x128xf32>
    %596 = arith.mulf %595, %581 : vector<8x128xf32>
    %cst_188 = arith.constant 3.000000e+00 : f32
    %597 = vector.broadcast %cst_188 : f32 to vector<8x128xf32>
    %598 = arith.mulf %565, %597 : vector<8x128xf32>
    %599 = arith.mulf %598, %596 : vector<8x128xf32>
    %cst_189 = arith.constant -3.000000e+00 : f32
    %600 = vector.broadcast %cst_189 : f32 to vector<8x128xf32>
    %601 = arith.mulf %596, %600 : vector<8x128xf32>
    %602 = arith.mulf %601, %581 : vector<8x128xf32>
    %cst_190 = arith.constant 1.000000e+00 : f32
    %603 = vector.broadcast %cst_190 : f32 to vector<8x128xf32>
    %cst_191 = arith.constant 0.000000e+00 : f32
    %604 = vector.broadcast %cst_191 : f32 to vector<8x128xf32>
    %605 = arith.mulf %603, %572 : vector<8x128xf32>
    %606 = arith.mulf %604, %573 : vector<8x128xf32>
    %607 = arith.subf %605, %606 : vector<8x128xf32>
    %608 = arith.mulf %604, %572 : vector<8x128xf32>
    %609 = arith.mulf %603, %573 : vector<8x128xf32>
    %610 = arith.addf %608, %609 : vector<8x128xf32>
    %611 = arith.mulf %607, %572 : vector<8x128xf32>
    %612 = arith.mulf %610, %573 : vector<8x128xf32>
    %613 = arith.subf %611, %612 : vector<8x128xf32>
    %614 = arith.mulf %610, %572 : vector<8x128xf32>
    %615 = arith.mulf %607, %573 : vector<8x128xf32>
    %616 = arith.addf %614, %615 : vector<8x128xf32>
    %cst_192 = arith.constant 0.000000e+00 : f32
    %617 = vector.broadcast %cst_192 : f32 to vector<8x128xf32>
    %cst_193 = arith.constant 0.282094806 : f32
    %618 = vector.broadcast %cst_193 : f32 to vector<8x128xf32>
    %619 = arith.mulf %618, %582 : vector<8x128xf32>
    %620 = arith.addf %617, %619 : vector<8x128xf32>
    %cst_194 = arith.constant 0.488602519 : f32
    %621 = vector.broadcast %cst_194 : f32 to vector<8x128xf32>
    %622 = arith.mulf %621, %585 : vector<8x128xf32>
    %623 = arith.addf %620, %622 : vector<8x128xf32>
    %cst_195 = arith.constant 0.488602519 : f32
    %624 = vector.broadcast %cst_195 : f32 to vector<8x128xf32>
    %625 = arith.mulf %624, %596 : vector<8x128xf32>
    %626 = arith.addf %607, %610 : vector<8x128xf32>
    %627 = arith.mulf %625, %626 : vector<8x128xf32>
    %628 = arith.addf %623, %627 : vector<8x128xf32>
    %cst_196 = arith.constant 0.63078314 : f32
    %629 = vector.broadcast %cst_196 : f32 to vector<8x128xf32>
    %630 = arith.mulf %629, %593 : vector<8x128xf32>
    %631 = arith.addf %628, %630 : vector<8x128xf32>
    %cst_197 = arith.constant 0.3641828 : f32
    %632 = vector.broadcast %cst_197 : f32 to vector<8x128xf32>
    %633 = arith.mulf %632, %599 : vector<8x128xf32>
    %634 = arith.addf %607, %610 : vector<8x128xf32>
    %635 = arith.mulf %633, %634 : vector<8x128xf32>
    %636 = arith.addf %631, %635 : vector<8x128xf32>
    %cst_198 = arith.constant 0.1820914 : f32
    %637 = vector.broadcast %cst_198 : f32 to vector<8x128xf32>
    %638 = arith.mulf %637, %602 : vector<8x128xf32>
    %639 = arith.addf %613, %616 : vector<8x128xf32>
    %640 = arith.mulf %638, %639 : vector<8x128xf32>
    %641 = arith.addf %636, %640 : vector<8x128xf32>
    %cst_199 = arith.constant -0.166606039 : f32
    %642 = vector.broadcast %cst_199 : f32 to vector<8x128xf32>
    %643 = arith.mulf %642, %14 : vector<8x128xf32>
    %cst_200 = arith.constant 0.969140291 : f32
    %644 = vector.broadcast %cst_200 : f32 to vector<8x128xf32>
    %645 = arith.mulf %644, %16 : vector<8x128xf32>
    %646 = arith.addf %643, %645 : vector<8x128xf32>
    %cst_201 = arith.constant -0.181685165 : f32
    %647 = vector.broadcast %cst_201 : f32 to vector<8x128xf32>
    %648 = arith.mulf %647, %17 : vector<8x128xf32>
    %649 = arith.addf %646, %648 : vector<8x128xf32>
    %cst_202 = arith.constant -0.655002952 : f32
    %650 = vector.broadcast %cst_202 : f32 to vector<8x128xf32>
    %651 = arith.mulf %650, %14 : vector<8x128xf32>
    %cst_203 = arith.constant -0.24650979 : f32
    %652 = vector.broadcast %cst_203 : f32 to vector<8x128xf32>
    %653 = arith.mulf %652, %16 : vector<8x128xf32>
    %654 = arith.addf %651, %653 : vector<8x128xf32>
    %cst_204 = arith.constant -0.714285731 : f32
    %655 = vector.broadcast %cst_204 : f32 to vector<8x128xf32>
    %656 = arith.mulf %655, %17 : vector<8x128xf32>
    %657 = arith.addf %654, %656 : vector<8x128xf32>
    %cst_205 = arith.constant -0.737030268 : f32
    %658 = vector.broadcast %cst_205 : f32 to vector<8x128xf32>
    %659 = arith.mulf %658, %14 : vector<8x128xf32>
    %cst_206 = arith.constant 0.000000e+00 : f32
    %660 = vector.broadcast %cst_206 : f32 to vector<8x128xf32>
    %661 = arith.mulf %660, %16 : vector<8x128xf32>
    %662 = arith.addf %659, %661 : vector<8x128xf32>
    %cst_207 = arith.constant 0.675859749 : f32
    %663 = vector.broadcast %cst_207 : f32 to vector<8x128xf32>
    %664 = arith.mulf %663, %17 : vector<8x128xf32>
    %665 = arith.addf %662, %664 : vector<8x128xf32>
    %cst_208 = arith.constant -1.000000e+00 : f32
    %cst_209 = arith.constant 1.000000e+00 : f32
    %666 = vector.broadcast %cst_208 : f32 to vector<8x128xf32>
    %667 = arith.maximumf %666, %665 : vector<8x128xf32>
    %668 = vector.broadcast %cst_209 : f32 to vector<8x128xf32>
    %669 = arith.minimumf %668, %667 : vector<8x128xf32>
    %670 = arith.mulf %649, %649 : vector<8x128xf32>
    %671 = arith.mulf %657, %657 : vector<8x128xf32>
    %672 = arith.addf %670, %671 : vector<8x128xf32>
    %cst_210 = arith.constant 9.99999968E-21 : f32
    %673 = vector.broadcast %cst_210 : f32 to vector<8x128xf32>
    %674 = arith.maximumf %672, %673 : vector<8x128xf32>
    %675 = math.rsqrt %674 : vector<8x128xf32>
    %676 = arith.mulf %649, %675 : vector<8x128xf32>
    %677 = arith.mulf %657, %675 : vector<8x128xf32>
    %cst_211 = arith.constant 1.000000e+00 : f32
    %678 = vector.broadcast %cst_211 : f32 to vector<8x128xf32>
    %679 = arith.subf %678, %669 : vector<8x128xf32>
    %cst_212 = arith.constant 1.000000e+00 : f32
    %680 = vector.broadcast %cst_212 : f32 to vector<8x128xf32>
    %681 = arith.addf %680, %669 : vector<8x128xf32>
    %682 = arith.mulf %679, %681 : vector<8x128xf32>
    %cst_213 = arith.constant 0.000000e+00 : f32
    %683 = vector.broadcast %cst_213 : f32 to vector<8x128xf32>
    %684 = arith.maximumf %682, %683 : vector<8x128xf32>
    %685 = math.sqrt %684 : vector<8x128xf32>
    %cst_214 = arith.constant 1.000000e+00 : f32
    %686 = vector.broadcast %cst_214 : f32 to vector<8x128xf32>
    %cst_215 = arith.constant 1.000000e+00 : f32
    %687 = vector.broadcast %cst_215 : f32 to vector<8x128xf32>
    %688 = arith.mulf %669, %687 : vector<8x128xf32>
    %689 = arith.mulf %688, %686 : vector<8x128xf32>
    %cst_216 = arith.constant 3.000000e+00 : f32
    %690 = vector.broadcast %cst_216 : f32 to vector<8x128xf32>
    %691 = arith.mulf %690, %669 : vector<8x128xf32>
    %692 = arith.mulf %691, %689 : vector<8x128xf32>
    %cst_217 = arith.constant 1.000000e+00 : f32
    %693 = vector.broadcast %cst_217 : f32 to vector<8x128xf32>
    %694 = arith.mulf %693, %686 : vector<8x128xf32>
    %695 = arith.subf %692, %694 : vector<8x128xf32>
    %cst_218 = arith.constant 5.000000e-01 : f32
    %696 = vector.broadcast %cst_218 : f32 to vector<8x128xf32>
    %697 = arith.mulf %695, %696 : vector<8x128xf32>
    %cst_219 = arith.constant -1.000000e+00 : f32
    %698 = vector.broadcast %cst_219 : f32 to vector<8x128xf32>
    %699 = arith.mulf %686, %698 : vector<8x128xf32>
    %700 = arith.mulf %699, %685 : vector<8x128xf32>
    %cst_220 = arith.constant 3.000000e+00 : f32
    %701 = vector.broadcast %cst_220 : f32 to vector<8x128xf32>
    %702 = arith.mulf %669, %701 : vector<8x128xf32>
    %703 = arith.mulf %702, %700 : vector<8x128xf32>
    %cst_221 = arith.constant -3.000000e+00 : f32
    %704 = vector.broadcast %cst_221 : f32 to vector<8x128xf32>
    %705 = arith.mulf %700, %704 : vector<8x128xf32>
    %706 = arith.mulf %705, %685 : vector<8x128xf32>
    %cst_222 = arith.constant 1.000000e+00 : f32
    %707 = vector.broadcast %cst_222 : f32 to vector<8x128xf32>
    %cst_223 = arith.constant 0.000000e+00 : f32
    %708 = vector.broadcast %cst_223 : f32 to vector<8x128xf32>
    %709 = arith.mulf %707, %676 : vector<8x128xf32>
    %710 = arith.mulf %708, %677 : vector<8x128xf32>
    %711 = arith.subf %709, %710 : vector<8x128xf32>
    %712 = arith.mulf %708, %676 : vector<8x128xf32>
    %713 = arith.mulf %707, %677 : vector<8x128xf32>
    %714 = arith.addf %712, %713 : vector<8x128xf32>
    %715 = arith.mulf %711, %676 : vector<8x128xf32>
    %716 = arith.mulf %714, %677 : vector<8x128xf32>
    %717 = arith.subf %715, %716 : vector<8x128xf32>
    %718 = arith.mulf %714, %676 : vector<8x128xf32>
    %719 = arith.mulf %711, %677 : vector<8x128xf32>
    %720 = arith.addf %718, %719 : vector<8x128xf32>
    %cst_224 = arith.constant 0.000000e+00 : f32
    %721 = vector.broadcast %cst_224 : f32 to vector<8x128xf32>
    %cst_225 = arith.constant 0.282094806 : f32
    %722 = vector.broadcast %cst_225 : f32 to vector<8x128xf32>
    %723 = arith.mulf %722, %686 : vector<8x128xf32>
    %724 = arith.addf %721, %723 : vector<8x128xf32>
    %cst_226 = arith.constant 0.488602519 : f32
    %725 = vector.broadcast %cst_226 : f32 to vector<8x128xf32>
    %726 = arith.mulf %725, %689 : vector<8x128xf32>
    %727 = arith.addf %724, %726 : vector<8x128xf32>
    %cst_227 = arith.constant 0.488602519 : f32
    %728 = vector.broadcast %cst_227 : f32 to vector<8x128xf32>
    %729 = arith.mulf %728, %700 : vector<8x128xf32>
    %730 = arith.addf %711, %714 : vector<8x128xf32>
    %731 = arith.mulf %729, %730 : vector<8x128xf32>
    %732 = arith.addf %727, %731 : vector<8x128xf32>
    %cst_228 = arith.constant 0.63078314 : f32
    %733 = vector.broadcast %cst_228 : f32 to vector<8x128xf32>
    %734 = arith.mulf %733, %697 : vector<8x128xf32>
    %735 = arith.addf %732, %734 : vector<8x128xf32>
    %cst_229 = arith.constant 0.3641828 : f32
    %736 = vector.broadcast %cst_229 : f32 to vector<8x128xf32>
    %737 = arith.mulf %736, %703 : vector<8x128xf32>
    %738 = arith.addf %711, %714 : vector<8x128xf32>
    %739 = arith.mulf %737, %738 : vector<8x128xf32>
    %740 = arith.addf %735, %739 : vector<8x128xf32>
    %cst_230 = arith.constant 0.1820914 : f32
    %741 = vector.broadcast %cst_230 : f32 to vector<8x128xf32>
    %742 = arith.mulf %741, %706 : vector<8x128xf32>
    %743 = arith.addf %717, %720 : vector<8x128xf32>
    %744 = arith.mulf %742, %743 : vector<8x128xf32>
    %745 = arith.addf %740, %744 : vector<8x128xf32>
    %cst_231 = arith.constant 3.74939939E-33 : f32
    %746 = vector.broadcast %cst_231 : f32 to vector<8x128xf32>
    %747 = arith.mulf %746, %14 : vector<8x128xf32>
    %cst_232 = arith.constant 1.000000e+00 : f32
    %748 = vector.broadcast %cst_232 : f32 to vector<8x128xf32>
    %749 = arith.mulf %748, %16 : vector<8x128xf32>
    %750 = arith.addf %747, %749 : vector<8x128xf32>
    %cst_233 = arith.constant 6.12323426E-17 : f32
    %751 = vector.broadcast %cst_233 : f32 to vector<8x128xf32>
    %752 = arith.mulf %751, %17 : vector<8x128xf32>
    %753 = arith.addf %750, %752 : vector<8x128xf32>
    %cst_234 = arith.constant -6.12323426E-17 : f32
    %754 = vector.broadcast %cst_234 : f32 to vector<8x128xf32>
    %755 = arith.mulf %754, %14 : vector<8x128xf32>
    %cst_235 = arith.constant 6.12323426E-17 : f32
    %756 = vector.broadcast %cst_235 : f32 to vector<8x128xf32>
    %757 = arith.mulf %756, %16 : vector<8x128xf32>
    %758 = arith.addf %755, %757 : vector<8x128xf32>
    %cst_236 = arith.constant -1.000000e+00 : f32
    %759 = vector.broadcast %cst_236 : f32 to vector<8x128xf32>
    %760 = arith.mulf %759, %17 : vector<8x128xf32>
    %761 = arith.addf %758, %760 : vector<8x128xf32>
    %cst_237 = arith.constant -1.000000e+00 : f32
    %762 = vector.broadcast %cst_237 : f32 to vector<8x128xf32>
    %763 = arith.mulf %762, %14 : vector<8x128xf32>
    %cst_238 = arith.constant 0.000000e+00 : f32
    %764 = vector.broadcast %cst_238 : f32 to vector<8x128xf32>
    %765 = arith.mulf %764, %16 : vector<8x128xf32>
    %766 = arith.addf %763, %765 : vector<8x128xf32>
    %cst_239 = arith.constant 6.12323426E-17 : f32
    %767 = vector.broadcast %cst_239 : f32 to vector<8x128xf32>
    %768 = arith.mulf %767, %17 : vector<8x128xf32>
    %769 = arith.addf %766, %768 : vector<8x128xf32>
    %cst_240 = arith.constant -1.000000e+00 : f32
    %cst_241 = arith.constant 1.000000e+00 : f32
    %770 = vector.broadcast %cst_240 : f32 to vector<8x128xf32>
    %771 = arith.maximumf %770, %769 : vector<8x128xf32>
    %772 = vector.broadcast %cst_241 : f32 to vector<8x128xf32>
    %773 = arith.minimumf %772, %771 : vector<8x128xf32>
    %774 = arith.mulf %753, %753 : vector<8x128xf32>
    %775 = arith.mulf %761, %761 : vector<8x128xf32>
    %776 = arith.addf %774, %775 : vector<8x128xf32>
    %cst_242 = arith.constant 9.99999968E-21 : f32
    %777 = vector.broadcast %cst_242 : f32 to vector<8x128xf32>
    %778 = arith.maximumf %776, %777 : vector<8x128xf32>
    %779 = math.rsqrt %778 : vector<8x128xf32>
    %780 = arith.mulf %753, %779 : vector<8x128xf32>
    %781 = arith.mulf %761, %779 : vector<8x128xf32>
    %cst_243 = arith.constant 1.000000e+00 : f32
    %782 = vector.broadcast %cst_243 : f32 to vector<8x128xf32>
    %783 = arith.subf %782, %773 : vector<8x128xf32>
    %cst_244 = arith.constant 1.000000e+00 : f32
    %784 = vector.broadcast %cst_244 : f32 to vector<8x128xf32>
    %785 = arith.addf %784, %773 : vector<8x128xf32>
    %786 = arith.mulf %783, %785 : vector<8x128xf32>
    %cst_245 = arith.constant 0.000000e+00 : f32
    %787 = vector.broadcast %cst_245 : f32 to vector<8x128xf32>
    %788 = arith.maximumf %786, %787 : vector<8x128xf32>
    %789 = math.sqrt %788 : vector<8x128xf32>
    %cst_246 = arith.constant 1.000000e+00 : f32
    %790 = vector.broadcast %cst_246 : f32 to vector<8x128xf32>
    %cst_247 = arith.constant 1.000000e+00 : f32
    %791 = vector.broadcast %cst_247 : f32 to vector<8x128xf32>
    %792 = arith.mulf %773, %791 : vector<8x128xf32>
    %793 = arith.mulf %792, %790 : vector<8x128xf32>
    %cst_248 = arith.constant 3.000000e+00 : f32
    %794 = vector.broadcast %cst_248 : f32 to vector<8x128xf32>
    %795 = arith.mulf %794, %773 : vector<8x128xf32>
    %796 = arith.mulf %795, %793 : vector<8x128xf32>
    %cst_249 = arith.constant 1.000000e+00 : f32
    %797 = vector.broadcast %cst_249 : f32 to vector<8x128xf32>
    %798 = arith.mulf %797, %790 : vector<8x128xf32>
    %799 = arith.subf %796, %798 : vector<8x128xf32>
    %cst_250 = arith.constant 5.000000e-01 : f32
    %800 = vector.broadcast %cst_250 : f32 to vector<8x128xf32>
    %801 = arith.mulf %799, %800 : vector<8x128xf32>
    %cst_251 = arith.constant -1.000000e+00 : f32
    %802 = vector.broadcast %cst_251 : f32 to vector<8x128xf32>
    %803 = arith.mulf %790, %802 : vector<8x128xf32>
    %804 = arith.mulf %803, %789 : vector<8x128xf32>
    %cst_252 = arith.constant 3.000000e+00 : f32
    %805 = vector.broadcast %cst_252 : f32 to vector<8x128xf32>
    %806 = arith.mulf %773, %805 : vector<8x128xf32>
    %807 = arith.mulf %806, %804 : vector<8x128xf32>
    %cst_253 = arith.constant -3.000000e+00 : f32
    %808 = vector.broadcast %cst_253 : f32 to vector<8x128xf32>
    %809 = arith.mulf %804, %808 : vector<8x128xf32>
    %810 = arith.mulf %809, %789 : vector<8x128xf32>
    %cst_254 = arith.constant 1.000000e+00 : f32
    %811 = vector.broadcast %cst_254 : f32 to vector<8x128xf32>
    %cst_255 = arith.constant 0.000000e+00 : f32
    %812 = vector.broadcast %cst_255 : f32 to vector<8x128xf32>
    %813 = arith.mulf %811, %780 : vector<8x128xf32>
    %814 = arith.mulf %812, %781 : vector<8x128xf32>
    %815 = arith.subf %813, %814 : vector<8x128xf32>
    %816 = arith.mulf %812, %780 : vector<8x128xf32>
    %817 = arith.mulf %811, %781 : vector<8x128xf32>
    %818 = arith.addf %816, %817 : vector<8x128xf32>
    %819 = arith.mulf %815, %780 : vector<8x128xf32>
    %820 = arith.mulf %818, %781 : vector<8x128xf32>
    %821 = arith.subf %819, %820 : vector<8x128xf32>
    %822 = arith.mulf %818, %780 : vector<8x128xf32>
    %823 = arith.mulf %815, %781 : vector<8x128xf32>
    %824 = arith.addf %822, %823 : vector<8x128xf32>
    %cst_256 = arith.constant 0.000000e+00 : f32
    %825 = vector.broadcast %cst_256 : f32 to vector<8x128xf32>
    %cst_257 = arith.constant 0.282094806 : f32
    %826 = vector.broadcast %cst_257 : f32 to vector<8x128xf32>
    %827 = arith.mulf %826, %790 : vector<8x128xf32>
    %828 = arith.addf %825, %827 : vector<8x128xf32>
    %cst_258 = arith.constant 0.488602519 : f32
    %829 = vector.broadcast %cst_258 : f32 to vector<8x128xf32>
    %830 = arith.mulf %829, %793 : vector<8x128xf32>
    %831 = arith.addf %828, %830 : vector<8x128xf32>
    %cst_259 = arith.constant 0.488602519 : f32
    %832 = vector.broadcast %cst_259 : f32 to vector<8x128xf32>
    %833 = arith.mulf %832, %804 : vector<8x128xf32>
    %834 = arith.addf %815, %818 : vector<8x128xf32>
    %835 = arith.mulf %833, %834 : vector<8x128xf32>
    %836 = arith.addf %831, %835 : vector<8x128xf32>
    %cst_260 = arith.constant 0.63078314 : f32
    %837 = vector.broadcast %cst_260 : f32 to vector<8x128xf32>
    %838 = arith.mulf %837, %801 : vector<8x128xf32>
    %839 = arith.addf %836, %838 : vector<8x128xf32>
    %cst_261 = arith.constant 0.3641828 : f32
    %840 = vector.broadcast %cst_261 : f32 to vector<8x128xf32>
    %841 = arith.mulf %840, %807 : vector<8x128xf32>
    %842 = arith.addf %815, %818 : vector<8x128xf32>
    %843 = arith.mulf %841, %842 : vector<8x128xf32>
    %844 = arith.addf %839, %843 : vector<8x128xf32>
    %cst_262 = arith.constant 0.1820914 : f32
    %845 = vector.broadcast %cst_262 : f32 to vector<8x128xf32>
    %846 = arith.mulf %845, %810 : vector<8x128xf32>
    %847 = arith.addf %821, %824 : vector<8x128xf32>
    %848 = arith.mulf %846, %847 : vector<8x128xf32>
    %849 = arith.addf %844, %848 : vector<8x128xf32>
    %cst_263 = arith.constant 3.14159274 : f32
    %850 = vector.broadcast %cst_263 : f32 to vector<8x128xf32>
    %851 = arith.subf %850, %11 : vector<8x128xf32>
    %cst_264 = arith.constant 1.000000e+00 : f32
    %852 = vector.broadcast %cst_264 : f32 to vector<8x128xf32>
    %853 = arith.mulf %852, %851 : vector<8x128xf32>
    %854 = math.sin %853 : vector<8x128xf32>
    %cst_265 = arith.constant 1.000000e+00 : f32
    %855 = vector.broadcast %cst_265 : f32 to vector<8x128xf32>
    %856 = arith.mulf %855, %854 : vector<8x128xf32>
    %857 = arith.mulf %121, %856 : vector<8x128xf32>
    %c0_266 = arith.constant 0 : index
    %c0_267 = arith.constant 0 : index
    %c0_268 = arith.constant 0 : index
    %858 = vector.load %arg2[%c0_266, %c0_267, %c0_268] : memref<32x8x128xf32, #tpu.memory_space<vmem>>, vector<1x8x128xf32>
    %859 = vector.shape_cast %858 : vector<1x8x128xf32> to vector<8x128xf32>
    %860 = vector.shape_cast %857 : vector<8x128xf32> to vector<1x8x128xf32>
    tpu.vector_store %arg2[%c0_266, %c0_267, %c0_268], %860 {strides = array<i32>} : memref<32x8x128xf32, #tpu.memory_space<vmem>>, vector<1x8x128xf32>,
    %861 = arith.mulf %225, %856 : vector<8x128xf32>
    %c1_269 = arith.constant 1 : index
    %c0_270 = arith.constant 0 : index
    %c0_271 = arith.constant 0 : index
    %862 = vector.load %arg2[%c1_269, %c0_270, %c0_271] : memref<32x8x128xf32, #tpu.memory_space<vmem>>, vector<1x8x128xf32>
    %863 = vector.shape_cast %862 : vector<1x8x128xf32> to vector<8x128xf32>
    %864 = vector.shape_cast %861 : vector<8x128xf32> to vector<1x8x128xf32>
    tpu.vector_store %arg2[%c1_269, %c0_270, %c0_271], %864 {strides = array<i32>} : memref<32x8x128xf32, #tpu.memory_space<vmem>>, vector<1x8x128xf32>,
    %865 = arith.mulf %329, %856 : vector<8x128xf32>
    %c2 = arith.constant 2 : index
    %c0_272 = arith.constant 0 : index
    %c0_273 = arith.constant 0 : index
    %866 = vector.load %arg2[%c2, %c0_272, %c0_273] : memref<32x8x128xf32, #tpu.memory_space<vmem>>, vector<1x8x128xf32>
    %867 = vector.shape_cast %866 : vector<1x8x128xf32> to vector<8x128xf32>
    %868 = vector.shape_cast %865 : vector<8x128xf32> to vector<1x8x128xf32>
    tpu.vector_store %arg2[%c2, %c0_272, %c0_273], %868 {strides = array<i32>} : memref<32x8x128xf32, #tpu.memory_space<vmem>>, vector<1x8x128xf32>,
    %869 = arith.mulf %433, %856 : vector<8x128xf32>
    %c3 = arith.constant 3 : index
    %c0_274 = arith.constant 0 : index
    %c0_275 = arith.constant 0 : index
    %870 = vector.load %arg2[%c3, %c0_274, %c0_275] : memref<32x8x128xf32, #tpu.memory_space<vmem>>, vector<1x8x128xf32>
    %871 = vector.shape_cast %870 : vector<1x8x128xf32> to vector<8x128xf32>
    %872 = vector.shape_cast %869 : vector<8x128xf32> to vector<1x8x128xf32>
    tpu.vector_store %arg2[%c3, %c0_274, %c0_275], %872 {strides = array<i32>} : memref<32x8x128xf32, #tpu.memory_space<vmem>>, vector<1x8x128xf32>,
    %873 = arith.mulf %537, %856 : vector<8x128xf32>
    %c4 = arith.constant 4 : index
    %c0_276 = arith.constant 0 : index
    %c0_277 = arith.constant 0 : index
    %874 = vector.load %arg2[%c4, %c0_276, %c0_277] : memref<32x8x128xf32, #tpu.memory_space<vmem>>, vector<1x8x128xf32>
    %875 = vector.shape_cast %874 : vector<1x8x128xf32> to vector<8x128xf32>
    %876 = vector.shape_cast %873 : vector<8x128xf32> to vector<1x8x128xf32>
    tpu.vector_store %arg2[%c4, %c0_276, %c0_277], %876 {strides = array<i32>} : memref<32x8x128xf32, #tpu.memory_space<vmem>>, vector<1x8x128xf32>,
    %877 = arith.mulf %641, %856 : vector<8x128xf32>
    %c5 = arith.constant 5 : index
    %c0_278 = arith.constant 0 : index
    %c0_279 = arith.constant 0 : index
    %878 = vector.load %arg2[%c5, %c0_278, %c0_279] : memref<32x8x128xf32, #tpu.memory_space<vmem>>, vector<1x8x128xf32>
    %879 = vector.shape_cast %878 : vector<1x8x128xf32> to vector<8x128xf32>
    %880 = vector.shape_cast %877 : vector<8x128xf32> to vector<1x8x128xf32>
    tpu.vector_store %arg2[%c5, %c0_278, %c0_279], %880 {strides = array<i32>} : memref<32x8x128xf32, #tpu.memory_space<vmem>>, vector<1x8x128xf32>,
    %881 = arith.mulf %745, %856 : vector<8x128xf32>
    %c6 = arith.constant 6 : index
    %c0_280 = arith.constant 0 : index
    %c0_281 = arith.constant 0 : index
    %882 = vector.load %arg2[%c6, %c0_280, %c0_281] : memref<32x8x128xf32, #tpu.memory_space<vmem>>, vector<1x8x128xf32>
    %883 = vector.shape_cast %882 : vector<1x8x128xf32> to vector<8x128xf32>
    %884 = vector.shape_cast %881 : vector<8x128xf32> to vector<1x8x128xf32>
    tpu.vector_store %arg2[%c6, %c0_280, %c0_281], %884 {strides = array<i32>} : memref<32x8x128xf32, #tpu.memory_space<vmem>>, vector<1x8x128xf32>,
    %885 = arith.mulf %849, %856 : vector<8x128xf32>
    %c7 = arith.constant 7 : index
    %c0_282 = arith.constant 0 : index
    %c0_283 = arith.constant 0 : index
    %886 = vector.load %arg2[%c7, %c0_282, %c0_283] : memref<32x8x128xf32, #tpu.memory_space<vmem>>, vector<1x8x128xf32>
    %887 = vector.shape_cast %886 : vector<1x8x128xf32> to vector<8x128xf32>
    %888 = vector.shape_cast %885 : vector<8x128xf32> to vector<1x8x128xf32>
    tpu.vector_store %arg2[%c7, %c0_282, %c0_283], %888 {strides = array<i32>} : memref<32x8x128xf32, #tpu.memory_space<vmem>>, vector<1x8x128xf32>,
    %cst_284 = arith.constant 3.14159274 : f32
    %889 = vector.broadcast %cst_284 : f32 to vector<8x128xf32>
    %890 = arith.subf %889, %11 : vector<8x128xf32>
    %cst_285 = arith.constant 5.000000e-01 : f32
    %891 = vector.broadcast %cst_285 : f32 to vector<8x128xf32>
    %892 = arith.mulf %891, %890 : vector<8x128xf32>
    %893 = math.sin %892 : vector<8x128xf32>
    %cst_286 = arith.constant 4.000000e+00 : f32
    %894 = vector.broadcast %cst_286 : f32 to vector<8x128xf32>
    %895 = arith.mulf %894, %893 : vector<8x128xf32>
    %896 = arith.mulf %121, %895 : vector<8x128xf32>
    %c8 = arith.constant 8 : index
    %c0_287 = arith.constant 0 : index
    %c0_288 = arith.constant 0 : index
    %897 = vector.load %arg2[%c8, %c0_287, %c0_288] : memref<32x8x128xf32, #tpu.memory_space<vmem>>, vector<1x8x128xf32>
    %898 = vector.shape_cast %897 : vector<1x8x128xf32> to vector<8x128xf32>
    %899 = vector.shape_cast %896 : vector<8x128xf32> to vector<1x8x128xf32>
    tpu.vector_store %arg2[%c8, %c0_287, %c0_288], %899 {strides = array<i32>} : memref<32x8x128xf32, #tpu.memory_space<vmem>>, vector<1x8x128xf32>,
    %900 = arith.mulf %225, %895 : vector<8x128xf32>
    %c9 = arith.constant 9 : index
    %c0_289 = arith.constant 0 : index
    %c0_290 = arith.constant 0 : index
    %901 = vector.load %arg2[%c9, %c0_289, %c0_290] : memref<32x8x128xf32, #tpu.memory_space<vmem>>, vector<1x8x128xf32>
    %902 = vector.shape_cast %901 : vector<1x8x128xf32> to vector<8x128xf32>
    %903 = vector.shape_cast %900 : vector<8x128xf32> to vector<1x8x128xf32>
    tpu.vector_store %arg2[%c9, %c0_289, %c0_290], %903 {strides = array<i32>} : memref<32x8x128xf32, #tpu.memory_space<vmem>>, vector<1x8x128xf32>,
    %904 = arith.mulf %329, %895 : vector<8x128xf32>
    %c10 = arith.constant 10 : index
    %c0_291 = arith.constant 0 : index
    %c0_292 = arith.constant 0 : index
    %905 = vector.load %arg2[%c10, %c0_291, %c0_292] : memref<32x8x128xf32, #tpu.memory_space<vmem>>, vector<1x8x128xf32>
    %906 = vector.shape_cast %905 : vector<1x8x128xf32> to vector<8x128xf32>
    %907 = vector.shape_cast %904 : vector<8x128xf32> to vector<1x8x128xf32>
    tpu.vector_store %arg2[%c10, %c0_291, %c0_292], %907 {strides = array<i32>} : memref<32x8x128xf32, #tpu.memory_space<vmem>>, vector<1x8x128xf32>,
    %908 = arith.mulf %433, %895 : vector<8x128xf32>
    %c11 = arith.constant 11 : index
    %c0_293 = arith.constant 0 : index
    %c0_294 = arith.constant 0 : index
    %909 = vector.load %arg2[%c11, %c0_293, %c0_294] : memref<32x8x128xf32, #tpu.memory_space<vmem>>, vector<1x8x128xf32>
    %910 = vector.shape_cast %909 : vector<1x8x128xf32> to vector<8x128xf32>
    %911 = vector.shape_cast %908 : vector<8x128xf32> to vector<1x8x128xf32>
    tpu.vector_store %arg2[%c11, %c0_293, %c0_294], %911 {strides = array<i32>} : memref<32x8x128xf32, #tpu.memory_space<vmem>>, vector<1x8x128xf32>,
    %912 = arith.mulf %537, %895 : vector<8x128xf32>
    %c12 = arith.constant 12 : index
    %c0_295 = arith.constant 0 : index
    %c0_296 = arith.constant 0 : index
    %913 = vector.load %arg2[%c12, %c0_295, %c0_296] : memref<32x8x128xf32, #tpu.memory_space<vmem>>, vector<1x8x128xf32>
    %914 = vector.shape_cast %913 : vector<1x8x128xf32> to vector<8x128xf32>
    %915 = vector.shape_cast %912 : vector<8x128xf32> to vector<1x8x128xf32>
    tpu.vector_store %arg2[%c12, %c0_295, %c0_296], %915 {strides = array<i32>} : memref<32x8x128xf32, #tpu.memory_space<vmem>>, vector<1x8x128xf32>,
    %916 = arith.mulf %641, %895 : vector<8x128xf32>
    %c13 = arith.constant 13 : index
    %c0_297 = arith.constant 0 : index
    %c0_298 = arith.constant 0 : index
    %917 = vector.load %arg2[%c13, %c0_297, %c0_298] : memref<32x8x128xf32, #tpu.memory_space<vmem>>, vector<1x8x128xf32>
    %918 = vector.shape_cast %917 : vector<1x8x128xf32> to vector<8x128xf32>
    %919 = vector.shape_cast %916 : vector<8x128xf32> to vector<1x8x128xf32>
    tpu.vector_store %arg2[%c13, %c0_297, %c0_298], %919 {strides = array<i32>} : memref<32x8x128xf32, #tpu.memory_space<vmem>>, vector<1x8x128xf32>,
    %920 = arith.mulf %745, %895 : vector<8x128xf32>
    %c14 = arith.constant 14 : index
    %c0_299 = arith.constant 0 : index
    %c0_300 = arith.constant 0 : index
    %921 = vector.load %arg2[%c14, %c0_299, %c0_300] : memref<32x8x128xf32, #tpu.memory_space<vmem>>, vector<1x8x128xf32>
    %922 = vector.shape_cast %921 : vector<1x8x128xf32> to vector<8x128xf32>
    %923 = vector.shape_cast %920 : vector<8x128xf32> to vector<1x8x128xf32>
    tpu.vector_store %arg2[%c14, %c0_299, %c0_300], %923 {strides = array<i32>} : memref<32x8x128xf32, #tpu.memory_space<vmem>>, vector<1x8x128xf32>,
    %924 = arith.mulf %849, %895 : vector<8x128xf32>
    %c15 = arith.constant 15 : index
    %c0_301 = arith.constant 0 : index
    %c0_302 = arith.constant 0 : index
    %925 = vector.load %arg2[%c15, %c0_301, %c0_302] : memref<32x8x128xf32, #tpu.memory_space<vmem>>, vector<1x8x128xf32>
    %926 = vector.shape_cast %925 : vector<1x8x128xf32> to vector<8x128xf32>
    %927 = vector.shape_cast %924 : vector<8x128xf32> to vector<1x8x128xf32>
    tpu.vector_store %arg2[%c15, %c0_301, %c0_302], %927 {strides = array<i32>} : memref<32x8x128xf32, #tpu.memory_space<vmem>>, vector<1x8x128xf32>,
    %cst_303 = arith.constant 3.14159274 : f32
    %928 = vector.broadcast %cst_303 : f32 to vector<8x128xf32>
    %929 = arith.subf %928, %11 : vector<8x128xf32>
    %cst_304 = arith.constant 2.500000e-01 : f32
    %930 = vector.broadcast %cst_304 : f32 to vector<8x128xf32>
    %931 = arith.mulf %930, %929 : vector<8x128xf32>
    %932 = math.sin %931 : vector<8x128xf32>
    %cst_305 = arith.constant 1.600000e+01 : f32
    %933 = vector.broadcast %cst_305 : f32 to vector<8x128xf32>
    %934 = arith.mulf %933, %932 : vector<8x128xf32>
    %935 = arith.mulf %121, %934 : vector<8x128xf32>
    %c16 = arith.constant 16 : index
    %c0_306 = arith.constant 0 : index
    %c0_307 = arith.constant 0 : index
    %936 = vector.load %arg2[%c16, %c0_306, %c0_307] : memref<32x8x128xf32, #tpu.memory_space<vmem>>, vector<1x8x128xf32>
    %937 = vector.shape_cast %936 : vector<1x8x128xf32> to vector<8x128xf32>
    %938 = vector.shape_cast %935 : vector<8x128xf32> to vector<1x8x128xf32>
    tpu.vector_store %arg2[%c16, %c0_306, %c0_307], %938 {strides = array<i32>} : memref<32x8x128xf32, #tpu.memory_space<vmem>>, vector<1x8x128xf32>,
    %939 = arith.mulf %225, %934 : vector<8x128xf32>
    %c17 = arith.constant 17 : index
    %c0_308 = arith.constant 0 : index
    %c0_309 = arith.constant 0 : index
    %940 = vector.load %arg2[%c17, %c0_308, %c0_309] : memref<32x8x128xf32, #tpu.memory_space<vmem>>, vector<1x8x128xf32>
    %941 = vector.shape_cast %940 : vector<1x8x128xf32> to vector<8x128xf32>
    %942 = vector.shape_cast %939 : vector<8x128xf32> to vector<1x8x128xf32>
    tpu.vector_store %arg2[%c17, %c0_308, %c0_309], %942 {strides = array<i32>} : memref<32x8x128xf32, #tpu.memory_space<vmem>>, vector<1x8x128xf32>,
    %943 = arith.mulf %329, %934 : vector<8x128xf32>
    %c18 = arith.constant 18 : index
    %c0_310 = arith.constant 0 : index
    %c0_311 = arith.constant 0 : index
    %944 = vector.load %arg2[%c18, %c0_310, %c0_311] : memref<32x8x128xf32, #tpu.memory_space<vmem>>, vector<1x8x128xf32>
    %945 = vector.shape_cast %944 : vector<1x8x128xf32> to vector<8x128xf32>
    %946 = vector.shape_cast %943 : vector<8x128xf32> to vector<1x8x128xf32>
    tpu.vector_store %arg2[%c18, %c0_310, %c0_311], %946 {strides = array<i32>} : memref<32x8x128xf32, #tpu.memory_space<vmem>>, vector<1x8x128xf32>,
    %947 = arith.mulf %433, %934 : vector<8x128xf32>
    %c19 = arith.constant 19 : index
    %c0_312 = arith.constant 0 : index
    %c0_313 = arith.constant 0 : index
    %948 = vector.load %arg2[%c19, %c0_312, %c0_313] : memref<32x8x128xf32, #tpu.memory_space<vmem>>, vector<1x8x128xf32>
    %949 = vector.shape_cast %948 : vector<1x8x128xf32> to vector<8x128xf32>
    %950 = vector.shape_cast %947 : vector<8x128xf32> to vector<1x8x128xf32>
    tpu.vector_store %arg2[%c19, %c0_312, %c0_313], %950 {strides = array<i32>} : memref<32x8x128xf32, #tpu.memory_space<vmem>>, vector<1x8x128xf32>,
    %951 = arith.mulf %537, %934 : vector<8x128xf32>
    %c20 = arith.constant 20 : index
    %c0_314 = arith.constant 0 : index
    %c0_315 = arith.constant 0 : index
    %952 = vector.load %arg2[%c20, %c0_314, %c0_315] : memref<32x8x128xf32, #tpu.memory_space<vmem>>, vector<1x8x128xf32>
    %953 = vector.shape_cast %952 : vector<1x8x128xf32> to vector<8x128xf32>
    %954 = vector.shape_cast %951 : vector<8x128xf32> to vector<1x8x128xf32>
    tpu.vector_store %arg2[%c20, %c0_314, %c0_315], %954 {strides = array<i32>} : memref<32x8x128xf32, #tpu.memory_space<vmem>>, vector<1x8x128xf32>,
    %955 = arith.mulf %641, %934 : vector<8x128xf32>
    %c21 = arith.constant 21 : index
    %c0_316 = arith.constant 0 : index
    %c0_317 = arith.constant 0 : index
    %956 = vector.load %arg2[%c21, %c0_316, %c0_317] : memref<32x8x128xf32, #tpu.memory_space<vmem>>, vector<1x8x128xf32>
    %957 = vector.shape_cast %956 : vector<1x8x128xf32> to vector<8x128xf32>
    %958 = vector.shape_cast %955 : vector<8x128xf32> to vector<1x8x128xf32>
    tpu.vector_store %arg2[%c21, %c0_316, %c0_317], %958 {strides = array<i32>} : memref<32x8x128xf32, #tpu.memory_space<vmem>>, vector<1x8x128xf32>,
    %959 = arith.mulf %745, %934 : vector<8x128xf32>
    %c22 = arith.constant 22 : index
    %c0_318 = arith.constant 0 : index
    %c0_319 = arith.constant 0 : index
    %960 = vector.load %arg2[%c22, %c0_318, %c0_319] : memref<32x8x128xf32, #tpu.memory_space<vmem>>, vector<1x8x128xf32>
    %961 = vector.shape_cast %960 : vector<1x8x128xf32> to vector<8x128xf32>
    %962 = vector.shape_cast %959 : vector<8x128xf32> to vector<1x8x128xf32>
    tpu.vector_store %arg2[%c22, %c0_318, %c0_319], %962 {strides = array<i32>} : memref<32x8x128xf32, #tpu.memory_space<vmem>>, vector<1x8x128xf32>,
    %963 = arith.mulf %849, %934 : vector<8x128xf32>
    %c23 = arith.constant 23 : index
    %c0_320 = arith.constant 0 : index
    %c0_321 = arith.constant 0 : index
    %964 = vector.load %arg2[%c23, %c0_320, %c0_321] : memref<32x8x128xf32, #tpu.memory_space<vmem>>, vector<1x8x128xf32>
    %965 = vector.shape_cast %964 : vector<1x8x128xf32> to vector<8x128xf32>
    %966 = vector.shape_cast %963 : vector<8x128xf32> to vector<1x8x128xf32>
    tpu.vector_store %arg2[%c23, %c0_320, %c0_321], %966 {strides = array<i32>} : memref<32x8x128xf32, #tpu.memory_space<vmem>>, vector<1x8x128xf32>,
    %cst_322 = arith.constant 3.14159274 : f32
    %967 = vector.broadcast %cst_322 : f32 to vector<8x128xf32>
    %968 = arith.subf %967, %11 : vector<8x128xf32>
    %cst_323 = arith.constant 1.250000e-01 : f32
    %969 = vector.broadcast %cst_323 : f32 to vector<8x128xf32>
    %970 = arith.mulf %969, %968 : vector<8x128xf32>
    %971 = math.sin %970 : vector<8x128xf32>
    %cst_324 = arith.constant 6.400000e+01 : f32
    %972 = vector.broadcast %cst_324 : f32 to vector<8x128xf32>
    %973 = arith.mulf %972, %971 : vector<8x128xf32>
    %974 = arith.mulf %121, %973 : vector<8x128xf32>
    %c24 = arith.constant 24 : index
    %c0_325 = arith.constant 0 : index
    %c0_326 = arith.constant 0 : index
    %975 = vector.load %arg2[%c24, %c0_325, %c0_326] : memref<32x8x128xf32, #tpu.memory_space<vmem>>, vector<1x8x128xf32>
    %976 = vector.shape_cast %975 : vector<1x8x128xf32> to vector<8x128xf32>
    %977 = vector.shape_cast %974 : vector<8x128xf32> to vector<1x8x128xf32>
    tpu.vector_store %arg2[%c24, %c0_325, %c0_326], %977 {strides = array<i32>} : memref<32x8x128xf32, #tpu.memory_space<vmem>>, vector<1x8x128xf32>,
    %978 = arith.mulf %225, %973 : vector<8x128xf32>
    %c25 = arith.constant 25 : index
    %c0_327 = arith.constant 0 : index
    %c0_328 = arith.constant 0 : index
    %979 = vector.load %arg2[%c25, %c0_327, %c0_328] : memref<32x8x128xf32, #tpu.memory_space<vmem>>, vector<1x8x128xf32>
    %980 = vector.shape_cast %979 : vector<1x8x128xf32> to vector<8x128xf32>
    %981 = vector.shape_cast %978 : vector<8x128xf32> to vector<1x8x128xf32>
    tpu.vector_store %arg2[%c25, %c0_327, %c0_328], %981 {strides = array<i32>} : memref<32x8x128xf32, #tpu.memory_space<vmem>>, vector<1x8x128xf32>,
    %982 = arith.mulf %329, %973 : vector<8x128xf32>
    %c26 = arith.constant 26 : index
    %c0_329 = arith.constant 0 : index
    %c0_330 = arith.constant 0 : index
    %983 = vector.load %arg2[%c26, %c0_329, %c0_330] : memref<32x8x128xf32, #tpu.memory_space<vmem>>, vector<1x8x128xf32>
    %984 = vector.shape_cast %983 : vector<1x8x128xf32> to vector<8x128xf32>
    %985 = vector.shape_cast %982 : vector<8x128xf32> to vector<1x8x128xf32>
    tpu.vector_store %arg2[%c26, %c0_329, %c0_330], %985 {strides = array<i32>} : memref<32x8x128xf32, #tpu.memory_space<vmem>>, vector<1x8x128xf32>,
    %986 = arith.mulf %433, %973 : vector<8x128xf32>
    %c27 = arith.constant 27 : index
    %c0_331 = arith.constant 0 : index
    %c0_332 = arith.constant 0 : index
    %987 = vector.load %arg2[%c27, %c0_331, %c0_332] : memref<32x8x128xf32, #tpu.memory_space<vmem>>, vector<1x8x128xf32>
    %988 = vector.shape_cast %987 : vector<1x8x128xf32> to vector<8x128xf32>
    %989 = vector.shape_cast %986 : vector<8x128xf32> to vector<1x8x128xf32>
    tpu.vector_store %arg2[%c27, %c0_331, %c0_332], %989 {strides = array<i32>} : memref<32x8x128xf32, #tpu.memory_space<vmem>>, vector<1x8x128xf32>,
    %990 = arith.mulf %537, %973 : vector<8x128xf32>
    %c28 = arith.constant 28 : index
    %c0_333 = arith.constant 0 : index
    %c0_334 = arith.constant 0 : index
    %991 = vector.load %arg2[%c28, %c0_333, %c0_334] : memref<32x8x128xf32, #tpu.memory_space<vmem>>, vector<1x8x128xf32>
    %992 = vector.shape_cast %991 : vector<1x8x128xf32> to vector<8x128xf32>
    %993 = vector.shape_cast %990 : vector<8x128xf32> to vector<1x8x128xf32>
    tpu.vector_store %arg2[%c28, %c0_333, %c0_334], %993 {strides = array<i32>} : memref<32x8x128xf32, #tpu.memory_space<vmem>>, vector<1x8x128xf32>,
    %994 = arith.mulf %641, %973 : vector<8x128xf32>
    %c29 = arith.constant 29 : index
    %c0_335 = arith.constant 0 : index
    %c0_336 = arith.constant 0 : index
    %995 = vector.load %arg2[%c29, %c0_335, %c0_336] : memref<32x8x128xf32, #tpu.memory_space<vmem>>, vector<1x8x128xf32>
    %996 = vector.shape_cast %995 : vector<1x8x128xf32> to vector<8x128xf32>
    %997 = vector.shape_cast %994 : vector<8x128xf32> to vector<1x8x128xf32>
    tpu.vector_store %arg2[%c29, %c0_335, %c0_336], %997 {strides = array<i32>} : memref<32x8x128xf32, #tpu.memory_space<vmem>>, vector<1x8x128xf32>,
    %998 = arith.mulf %745, %973 : vector<8x128xf32>
    %c30 = arith.constant 30 : index
    %c0_337 = arith.constant 0 : index
    %c0_338 = arith.constant 0 : index
    %999 = vector.load %arg2[%c30, %c0_337, %c0_338] : memref<32x8x128xf32, #tpu.memory_space<vmem>>, vector<1x8x128xf32>
    %1000 = vector.shape_cast %999 : vector<1x8x128xf32> to vector<8x128xf32>
    %1001 = vector.shape_cast %998 : vector<8x128xf32> to vector<1x8x128xf32>
    tpu.vector_store %arg2[%c30, %c0_337, %c0_338], %1001 {strides = array<i32>} : memref<32x8x128xf32, #tpu.memory_space<vmem>>, vector<1x8x128xf32>,
    %1002 = arith.mulf %849, %973 : vector<8x128xf32>
    %c31 = arith.constant 31 : index
    %c0_339 = arith.constant 0 : index
    %c0_340 = arith.constant 0 : index
    %1003 = vector.load %arg2[%c31, %c0_339, %c0_340] : memref<32x8x128xf32, #tpu.memory_space<vmem>>, vector<1x8x128xf32>
    %1004 = vector.shape_cast %1003 : vector<1x8x128xf32> to vector<8x128xf32>
    %1005 = vector.shape_cast %1002 : vector<8x128xf32> to vector<1x8x128xf32>
    tpu.vector_store %arg2[%c31, %c0_339, %c0_340], %1005 {strides = array<i32>} : memref<32x8x128xf32, #tpu.memory_space<vmem>>, vector<1x8x128xf32>,
    return
  }
  func.func @transform_0(%arg0: i32) -> (i32, i32, i32) {
    %c0_i32 = arith.constant 0 : i32
    %c0_i32_0 = arith.constant 0 : i32
    %c0_i32_1 = arith.constant 0 : i32
    return %c0_i32, %arg0, %c0_i32_0 : i32, i32, i32
  }
  func.func @transform_1(%arg0: i32) -> (i32, i32, i32) {
    %c0_i32 = arith.constant 0 : i32
    %c0_i32_0 = arith.constant 0 : i32
    %c0_i32_1 = arith.constant 0 : i32
    return %c0_i32, %arg0, %c0_i32_0 : i32, i32, i32
  }
}

</mosaic_0001>

<llo_original>
// kernel: tpu_custom_call.1
$region0: #{tpu_custom_call.1}
  #allocation0 [shape = 'u32[]', space=smem, size = 0x4, offset = 0x4, fixed_abs, tag = 'smem constant byte address 0x4 - core index']
  #allocation1 [shape = 'u32[72,128]{1,0:T(1,128)}', space=vmem, size = 0x9000, scoped, tag = 'internal scratch']
  %s0 = inlined_call_operand.hbm [shape: f32[2,8,128], index: 0, kind: input, shape index: {}]
  %s1 = inlined_call_operand.hbm [shape: f32[32,8,128], index: 1, kind: output, shape index: {}]
  %s2 = sld [smem:[#allocation0]]
  $region18: #{tpu_custom_call.1} parent=0
    _
  %s4 = ssub.s32 1, %s2
  %s5 = scalar_select 0, %s4, %s2
  $region1: #{tpu_custom_call.1} parent=0
    #allocation2 [shape = 'u8[8192]{0}', space=vmem, size = 0x2000, scoped, tag = 'input window, operand 0, single buffered']
    #allocation3 [shape = 's32[1]{0}', space=sflag, size = 0x4, scoped, tag = 'scoped memory for tpu_custom_call.1']
    #allocation4 [shape = 's32[1]{0}', space=sflag, size = 0x4, scoped, tag = 'scoped memory for tpu_custom_call.1']
    #allocation5 [shape = 'u8[131072]{0}', space=vmem, size = 0x20000, scoped, tag = 'output window, operand 0, single buffered']
    %6 = vsyncpa [#allocation3], 0
    %7 = vsyncpa [#allocation4], 0
    // Predicated region
    $region2: #{tpu_custom_call.1} parent=1 // pred_check
      _
    $region3: #{tpu_custom_call.1} parent=1 // pred_check_branch
      %9 = sbr.rel (0) target = $region5
    $region4: #{tpu_custom_call.1} parent=1 // pred_region
      %11 = vsyncadd [#allocation3], 0
      %s12 = sshll.u32 %s0, 4
      %s13 = int_to_ptr.hbm [resolvable:$true] %s12
      %s14 = sshll.u32 [#allocation2], 4
      %s15 = int_to_ptr.vmem [resolvable:$true] %s14
      %20 = dma.hbm_to_vmem [thread:$0]  %s13, 256, %s15, [#allocation3], 128, 128, 8
    $region5: #{tpu_custom_call.1} parent=1 // pred_fallthru
      _
    // Predicated region
    $region6: #{tpu_custom_call.1} parent=1 // pred_check
      _
    $region7: #{tpu_custom_call.1} parent=1 // pred_check_branch
      %22 = sbr.rel (0) target = $region9
    $region8: #{tpu_custom_call.1} parent=1 // pred_region
      %24 = dma.done [#allocation3], 256
    $region9: #{tpu_custom_call.1} parent=1 // pred_fallthru
      _
    %v25 = vld [vmem:[#allocation2] sm:$0xff]
    %s26 = scalar_lea.vmem [#allocation2], 8
    %v27 = vld [vmem:[%s26] sm:$0xff]
    %v28 = vadd.f32 %v25, 180.0
    %v29 = vmul.f32 %v28, 0.017453292
    %v30 = vadd.f32 %v27, 90.0
    %v31 = vmul.f32 %v30, 0.017453292
    %v32 = vand.u32 2147483647, %v31
    %vm33 = vcmp.le.f32.partialorder %v32, 0.7853982
    %vm34 = vcmp.lt.s32.totalorder %v31, 0
    %v35 = vand.u32 %v31, 2139095040
    %v36 = vshrl.u32 %v35, 23
    %v37 = vsub.s32 %v36, 127
    %v38 = vand.u32 2147483647, %v31
    %v39 = vand.u32 %v38, 8388607
    %v40 = vor.u32 %v39, 8388608
    %v41 = vsub.s32 0, %v40
    %v42 = vadd.s32 %v37, 1
    %vm43 = vcmp.gt.s32.totalorder %v42, 0
    %v44 = vsel %vm43, %v42, 0
    %v45 = vshrl.u32 %v44, 5
    %v46 = vand.u32 %v44, 31
    %v47 = vsub.s32 32, %v46
    %v48 = vshrl.u32 683565275, %v47
    %v49 = vshll.u32 683565275, %v46
    %v50 = vshrl.u32 2475754826, %v47
    %v51 = vor.u32 %v49, %v50
    %v52 = vshll.u32 2475754826, %v46
    %v53 = vshrl.u32 2131351028, %v47
    %v54 = vor.u32 %v52, %v53
    %v55 = vshll.u32 2131351028, %v46
    %v56 = vshrl.u32 2102212464, %v47
    %v57 = vor.u32 %v55, %v56
    %v58 = vshll.u32 2102212464, %v46
    %v59 = vshrl.u32 920167782, %v47
    %v60 = vor.u32 %v58, %v59
    %v61 = vshll.u32 920167782, %v46
    %v62 = vshrl.u32 1326507024, %v47
    %v63 = vor.u32 %v61, %v62
    %vm64 = vcmp.lt.s32.totalorder %v45, 1
    %vm65 = vcmp.lt.s32.totalorder %v45, 2
    %vm66 = vcmp.lt.s32.totalorder %v45, 3
    %vm67 = vcmp.lt.s32.totalorder %v45, 4
    %v68 = vsel %vm64, %v48, %v51
    %v69 = vsel %vm67, %v57, 2102212464
    %v70 = vsel %vm66, %v54, %v69
    %v71 = vsel %vm65, %v68, %v70
    %v72 = vsel %vm64, %v51, %v54
    %v73 = vsel %vm67, %v60, 920167782
    %v74 = vsel %vm66, %v57, %v73
    %v75 = vsel %vm65, %v72, %v74
    %v76 = vsel %vm64, %v54, %v57
    %v77 = vsel %vm67, %v63, 1326507024
    %v78 = vsel %vm66, %v60, %v77
    %v79 = vsel %vm65, %v76, %v78
    %v80 = vshll.u32 %v40, 8
    %v81 = vand.u32 %v80, 65535
    %v82 = vshrl.u32 %v80, 16
    %v83 = vand.u32 %v79, 65535
    %v84 = vshrl.u32 %v79, 16
    %v85 = vmul.u32 %v81, %v83
    %v86 = vmul.u32 %v81, %v84
    %v87 = vmul.u32 %v82, %v83
    %v88 = vmul.u32 %v82, %v84
    %v89 = vshll.u32 %v86, 16
    %v90 = vshrl.u32 %v86, 16
    %v91 = vshll.u32 %v87, 16
    %v92 = vshrl.u32 %v87, 16
    %vm93 = vc.u32 %v85, %v89
    %v94 = vsel %vm93, 1, 0
    %v95 = vadd.s32 %v85, %v89
    %v96 = vadd.s32 %v88, %v94
    %vm97 = vc.u32 %v95, %v91
    %v98 = vsel %vm97, 1, 0
    %v99 = vadd.s32 %v95, %v91
    %v100 = vadd.s32 %v96, %v98
    %v101 = vadd.s32 %v100, %v90
    %v102 = vadd.s32 %v101, %v92
    %v103 = vand.u32 %v80, 65535
    %v104 = vshrl.u32 %v80, 16
    %v105 = vand.u32 %v75, 65535
    %v106 = vshrl.u32 %v75, 16
    %v107 = vmul.u32 %v103, %v105
    %v108 = vmul.u32 %v103, %v106
    %v109 = vmul.u32 %v104, %v105
    %v110 = vmul.u32 %v104, %v106
    %v111 = vshll.u32 %v108, 16
    %v112 = vshrl.u32 %v108, 16
    %v113 = vshll.u32 %v109, 16
    %v114 = vshrl.u32 %v109, 16
    %vm115 = vc.u32 %v107, %v111
    %v116 = vsel %vm115, 1, 0
    %v117 = vadd.s32 %v107, %v111
    %v118 = vadd.s32 %v110, %v116
    %vm119 = vc.u32 %v117, %v113
    %v120 = vsel %vm119, 1, 0
    %v121 = vadd.s32 %v117, %v113
    %v122 = vadd.s32 %v118, %v120
    %v123 = vadd.s32 %v122, %v112
    %v124 = vadd.s32 %v123, %v114
    %v125 = vmul.u32 %v80, %v71
    %v126 = vadd.s32 %v102, %v121
    %vm127 = vc.u32 %v102, %v121
    %v128 = vadd.s32 %v124, 1
    %v129 = vsel %vm127, %v128, %v124
    %v130 = vadd.s32 %v125, %v129
    %v131 = vadd.s32 %v130, 536870912
    %v132 = vshrl.u32 %v131, 30
    %v133 = vshll.u32 %v132, 30
    %v134 = vsub.s32 %v130, %v133
    %vm135 = vcmp.lt.s32.totalorder %v134, 0
    %v136 = vsub.s32 0, %v134
    %v137 = vsel %vm135, %v136, %v134
    %v138 = vclz %v137
    %v139 = vsub.s32 %v138, 2
    %vm140 = vcmp.gt.s32.totalorder 0, %v139
    %v141 = vsel %vm140, 0, %v139
    %v142 = vsub.s32 32, %v141
    %v143 = vshll.u32 %v134, %v141
    %v144 = vshrl.u32 %v126, %v142
    %v145 = vor.u32 %v143, %v144
    %v146 = vsub.s32 4294967266, %v141
    %v147 = vadd.s32 %v146, 127
    %v148 = vshll.u32 %v147, 23
    %v149 = vor.u32 4788187, %v148
    %v150 = vand.u32 2147483647, %v149
    %v152 = vcvt.s32.f32 %v145
    %v153 = vmul.f32 %v152, %v150
    %v154 = vxor.u32 %v153, 2147483648
    %v155 = vsel %vm34, %v154, %v153
    %v156 = vsub.s32 4, %v132
    %v157 = vsel %vm34, %v156, %v132
    %v158 = vsel %vm33, %v31, %v155
    %v159 = vsel %vm33, 0, %v157
    %v160 = vmul.f32 %v158, %v158
    %v161 = vmul.f32 %v160, -0.001358992
    %v162 = vadd.f32 %v161, 0.041655596
    %v163 = vmul.f32 %v160, %v162
    %v164 = vadd.f32 %v163, -0.4999988
    %v165 = vmul.f32 %v160, %v164
    %v166 = vadd.f32 1.0, %v165
    %v167 = vmul.f32 %v158, %v158
    %v168 = vmul.f32 %v167, -0.00019511016
    %v169 = vadd.f32 %v168, 0.008332121
    %v170 = vmul.f32 %v167, %v169
    %v171 = vadd.f32 %v170, -0.16666654
    %v172 = vmul.f32 %v167, %v171
    %v173 = vadd.f32 %v172, 1.0
    %v174 = vmul.f32 %v173, %v158
    %vm175 = vweird.f32 %v31
    %v176 = vadd.s32 %v159, 3
    %v177 = vand.u32 %v176, 3
    %vm178 = vcmp.lt.s32.totalorder %v177, 2
    %vm179 = vcmp.eq.s32.totalorder %v177, 0
    %v180 = vxor.u32 %v174, 2147483648
    %v181 = vsel %vm179, %v166, %v180
    %vm182 = vcmp.eq.s32.totalorder %v177, 2
    %v183 = vxor.u32 %v166, 2147483648
    %v184 = vsel %vm182, %v183, %v174
    %v185 = vsel %vm178, %v181, %v184
    %v186 = vsel %vm175, nan, %v185
    %v187 = vand.u32 2147483647, %v29
    %vm188 = vcmp.le.f32.partialorder %v187, 0.7853982
    %vm189 = vcmp.lt.s32.totalorder %v29, 0
    %v190 = vand.u32 %v29, 2139095040
    %v191 = vshrl.u32 %v190, 23
    %v192 = vsub.s32 %v191, 127
    %v193 = vand.u32 2147483647, %v29
    %v194 = vand.u32 %v193, 8388607
    %v195 = vor.u32 %v194, 8388608
    %v196 = vsub.s32 0, %v195
    %v197 = vadd.s32 %v192, 1
    %vm198 = vcmp.gt.s32.totalorder %v197, 0
    %v199 = vsel %vm198, %v197, 0
    %v200 = vshrl.u32 %v199, 5
    %v201 = vand.u32 %v199, 31
    %v202 = vsub.s32 32, %v201
    %v203 = vshrl.u32 683565275, %v202
    %v204 = vshll.u32 683565275, %v201
    %v205 = vshrl.u32 2475754826, %v202
    %v206 = vor.u32 %v204, %v205
    %v207 = vshll.u32 2475754826, %v201
    %v208 = vshrl.u32 2131351028, %v202
    %v209 = vor.u32 %v207, %v208
    %v210 = vshll.u32 2131351028, %v201
    %v211 = vshrl.u32 2102212464, %v202
    %v212 = vor.u32 %v210, %v211
    %v213 = vshll.u32 2102212464, %v201
    %v214 = vshrl.u32 920167782, %v202
    %v215 = vor.u32 %v213, %v214
    %v216 = vshll.u32 920167782, %v201
    %v217 = vshrl.u32 1326507024, %v202
    %v218 = vor.u32 %v216, %v217
    %vm219 = vcmp.lt.s32.totalorder %v200, 1
    %vm220 = vcmp.lt.s32.totalorder %v200, 2
    %vm221 = vcmp.lt.s32.totalorder %v200, 3
    %vm222 = vcmp.lt.s32.totalorder %v200, 4
    %v223 = vsel %vm219, %v203, %v206
    %v224 = vsel %vm222, %v212, 2102212464
    %v225 = vsel %vm221, %v209, %v224
    %v226 = vsel %vm220, %v223, %v225
    %v227 = vsel %vm219, %v206, %v209
    %v228 = vsel %vm222, %v215, 920167782
    %v229 = vsel %vm221, %v212, %v228
    %v230 = vsel %vm220, %v227, %v229
    %v231 = vsel %vm219, %v209, %v212
    %v232 = vsel %vm222, %v218, 1326507024
    %v233 = vsel %vm221, %v215, %v232
    %v234 = vsel %vm220, %v231, %v233
    %v235 = vshll.u32 %v195, 8
    %v236 = vand.u32 %v235, 65535
    %v237 = vshrl.u32 %v235, 16
    %v238 = vand.u32 %v234, 65535
    %v239 = vshrl.u32 %v234, 16
    %v240 = vmul.u32 %v236, %v238
    %v241 = vmul.u32 %v236, %v239
    %v242 = vmul.u32 %v237, %v238
    %v243 = vmul.u32 %v237, %v239
    %v244 = vshll.u32 %v241, 16
    %v245 = vshrl.u32 %v241, 16
    %v246 = vshll.u32 %v242, 16
    %v247 = vshrl.u32 %v242, 16
    %vm248 = vc.u32 %v240, %v244
    %v249 = vsel %vm248, 1, 0
    %v250 = vadd.s32 %v240, %v244
    %v251 = vadd.s32 %v243, %v249
    %vm252 = vc.u32 %v250, %v246
    %v253 = vsel %vm252, 1, 0
    %v254 = vadd.s32 %v250, %v246
    %v255 = vadd.s32 %v251, %v253
    %v256 = vadd.s32 %v255, %v245
    %v257 = vadd.s32 %v256, %v247
    %v258 = vand.u32 %v235, 65535
    %v259 = vshrl.u32 %v235, 16
    %v260 = vand.u32 %v230, 65535
    %v261 = vshrl.u32 %v230, 16
    %v262 = vmul.u32 %v258, %v260
    %v263 = vmul.u32 %v258, %v261
    %v264 = vmul.u32 %v259, %v260
    %v265 = vmul.u32 %v259, %v261
    %v266 = vshll.u32 %v263, 16
    %v267 = vshrl.u32 %v263, 16
    %v268 = vshll.u32 %v264, 16
    %v269 = vshrl.u32 %v264, 16
    %vm270 = vc.u32 %v262, %v266
    %v271 = vsel %vm270, 1, 0
    %v272 = vadd.s32 %v262, %v266
    %v273 = vadd.s32 %v265, %v271
    %vm274 = vc.u32 %v272, %v268
    %v275 = vsel %vm274, 1, 0
    %v276 = vadd.s32 %v272, %v268
    %v277 = vadd.s32 %v273, %v275
    %v278 = vadd.s32 %v277, %v267
    %v279 = vadd.s32 %v278, %v269
    %v280 = vmul.u32 %v235, %v226
    %v281 = vadd.s32 %v257, %v276
    %vm282 = vc.u32 %v257, %v276
    %v283 = vadd.s32 %v279, 1
    %v284 = vsel %vm282, %v283, %v279
    %v285 = vadd.s32 %v280, %v284
    %v286 = vadd.s32 %v285, 536870912
    %v287 = vshrl.u32 %v286, 30
    %v288 = vshll.u32 %v287, 30
    %v289 = vsub.s32 %v285, %v288
    %vm290 = vcmp.lt.s32.totalorder %v289, 0
    %v291 = vsub.s32 0, %v289
    %v292 = vsel %vm290, %v291, %v289
    %v293 = vclz %v292
    %v294 = vsub.s32 %v293, 2
    %vm295 = vcmp.gt.s32.totalorder 0, %v294
    %v296 = vsel %vm295, 0, %v294
    %v297 = vsub.s32 32, %v296
    %v298 = vshll.u32 %v289, %v296
    %v299 = vshrl.u32 %v281, %v297
    %v300 = vor.u32 %v298, %v299
    %v301 = vsub.s32 4294967266, %v296
    %v302 = vadd.s32 %v301, 127
    %v303 = vshll.u32 %v302, 23
    %v304 = vor.u32 4788187, %v303
    %v305 = vand.u32 2147483647, %v304
    %v307 = vcvt.s32.f32 %v300
    %v308 = vmul.f32 %v307, %v305
    %v309 = vxor.u32 %v308, 2147483648
    %v310 = vsel %vm189, %v309, %v308
    %v311 = vsub.s32 4, %v287
    %v312 = vsel %vm189, %v311, %v287
    %v313 = vsel %vm188, %v29, %v310
    %v314 = vsel %vm188, 0, %v312
    %v315 = vmul.f32 %v313, %v313
    %v316 = vmul.f32 %v315, -0.001358992
    %v317 = vadd.f32 %v316, 0.041655596
    %v318 = vmul.f32 %v315, %v317
    %v319 = vadd.f32 %v318, -0.4999988
    %v320 = vmul.f32 %v315, %v319
    %v321 = vadd.f32 1.0, %v320
    %v322 = vmul.f32 %v313, %v313
    %v323 = vmul.f32 %v322, -0.00019511016
    %v324 = vadd.f32 %v323, 0.008332121
    %v325 = vmul.f32 %v322, %v324
    %v326 = vadd.f32 %v325, -0.16666654
    %v327 = vmul.f32 %v322, %v326
    %v328 = vadd.f32 %v327, 1.0
    %v329 = vmul.f32 %v328, %v313
    %vm330 = vweird.f32 %v29
    %v331 = vand.u32 %v314, 3
    %vm332 = vcmp.lt.s32.totalorder %v331, 2
    %vm333 = vcmp.eq.s32.totalorder %v331, 0
    %v334 = vxor.u32 %v329, 2147483648
    %v335 = vsel %vm333, %v321, %v334
    %vm336 = vcmp.eq.s32.totalorder %v331, 2
    %v337 = vxor.u32 %v321, 2147483648
    %v338 = vsel %vm336, %v337, %v329
    %v339 = vsel %vm332, %v335, %v338
    %v340 = vsel %vm330, nan, %v339
    %v341 = vmul.f32 %v186, %v340
    %v342 = vand.u32 2147483647, %v29
    %vm343 = vcmp.le.f32.partialorder %v342, 0.7853982
    %vm344 = vcmp.lt.s32.totalorder %v29, 0
    %v345 = vand.u32 %v29, 2139095040
    %v346 = vshrl.u32 %v345, 23
    %v347 = vsub.s32 %v346, 127
    %v348 = vand.u32 2147483647, %v29
    %v349 = vand.u32 %v348, 8388607
    %v350 = vor.u32 %v349, 8388608
    %v351 = vsub.s32 0, %v350
    %v352 = vadd.s32 %v347, 1
    %vm353 = vcmp.gt.s32.totalorder %v352, 0
    %v354 = vsel %vm353, %v352, 0
    %v355 = vshrl.u32 %v354, 5
    %v356 = vand.u32 %v354, 31
    %v357 = vsub.s32 32, %v356
    %v358 = vshrl.u32 683565275, %v357
    %v359 = vshll.u32 683565275, %v356
    %v360 = vshrl.u32 2475754826, %v357
    %v361 = vor.u32 %v359, %v360
    %v362 = vshll.u32 2475754826, %v356
    %v363 = vshrl.u32 2131351028, %v357
    %v364 = vor.u32 %v362, %v363
    %v365 = vshll.u32 2131351028, %v356
    %v366 = vshrl.u32 2102212464, %v357
    %v367 = vor.u32 %v365, %v366
    %v368 = vshll.u32 2102212464, %v356
    %v369 = vshrl.u32 920167782, %v357
    %v370 = vor.u32 %v368, %v369
    %v371 = vshll.u32 920167782, %v356
    %v372 = vshrl.u32 1326507024, %v357
    %v373 = vor.u32 %v371, %v372
    %vm374 = vcmp.lt.s32.totalorder %v355, 1
    %vm375 = vcmp.lt.s32.totalorder %v355, 2
    %vm376 = vcmp.lt.s32.totalorder %v355, 3
    %vm377 = vcmp.lt.s32.totalorder %v355, 4
    %v378 = vsel %vm374, %v358, %v361
    %v379 = vsel %vm377, %v367, 2102212464
    %v380 = vsel %vm376, %v364, %v379
    %v381 = vsel %vm375, %v378, %v380
    %v382 = vsel %vm374, %v361, %v364
    %v383 = vsel %vm377, %v370, 920167782
    %v384 = vsel %vm376, %v367, %v383
    %v385 = vsel %vm375, %v382, %v384
    %v386 = vsel %vm374, %v364, %v367
    %v387 = vsel %vm377, %v373, 1326507024
    %v388 = vsel %vm376, %v370, %v387
    %v389 = vsel %vm375, %v386, %v388
    %v390 = vshll.u32 %v350, 8
    %v391 = vand.u32 %v390, 65535
    %v392 = vshrl.u32 %v390, 16
    %v393 = vand.u32 %v389, 65535
    %v394 = vshrl.u32 %v389, 16
    %v395 = vmul.u32 %v391, %v393
    %v396 = vmul.u32 %v391, %v394
    %v397 = vmul.u32 %v392, %v393
    %v398 = vmul.u32 %v392, %v394
    %v399 = vshll.u32 %v396, 16
    %v400 = vshrl.u32 %v396, 16
    %v401 = vshll.u32 %v397, 16
    %v402 = vshrl.u32 %v397, 16
    %vm403 = vc.u32 %v395, %v399
    %v404 = vsel %vm403, 1, 0
    %v405 = vadd.s32 %v395, %v399
    %v406 = vadd.s32 %v398, %v404
    %vm407 = vc.u32 %v405, %v401
    %v408 = vsel %vm407, 1, 0
    %v409 = vadd.s32 %v405, %v401
    %v410 = vadd.s32 %v406, %v408
    %v411 = vadd.s32 %v410, %v400
    %v412 = vadd.s32 %v411, %v402
    %v413 = vand.u32 %v390, 65535
    %v414 = vshrl.u32 %v390, 16
    %v415 = vand.u32 %v385, 65535
    %v416 = vshrl.u32 %v385, 16
    %v417 = vmul.u32 %v413, %v415
    %v418 = vmul.u32 %v413, %v416
    %v419 = vmul.u32 %v414, %v415
    %v420 = vmul.u32 %v414, %v416
    %v421 = vshll.u32 %v418, 16
    %v422 = vshrl.u32 %v418, 16
    %v423 = vshll.u32 %v419, 16
    %v424 = vshrl.u32 %v419, 16
    %vm425 = vc.u32 %v417, %v421
    %v426 = vsel %vm425, 1, 0
    %v427 = vadd.s32 %v417, %v421
    %v428 = vadd.s32 %v420, %v426
    %vm429 = vc.u32 %v427, %v423
    %v430 = vsel %vm429, 1, 0
    %v431 = vadd.s32 %v427, %v423
    %v432 = vadd.s32 %v428, %v430
    %v433 = vadd.s32 %v432, %v422
    %v434 = vadd.s32 %v433, %v424
    %v435 = vmul.u32 %v390, %v381
    %v436 = vadd.s32 %v412, %v431
    %vm437 = vc.u32 %v412, %v431
    %v438 = vadd.s32 %v434, 1
    %v439 = vsel %vm437, %v438, %v434
    %v440 = vadd.s32 %v435, %v439
    %v441 = vadd.s32 %v440, 536870912
    %v442 = vshrl.u32 %v441, 30
    %v443 = vshll.u32 %v442, 30
    %v444 = vsub.s32 %v440, %v443
    %vm445 = vcmp.lt.s32.totalorder %v444, 0
    %v446 = vsub.s32 0, %v444
    %v447 = vsel %vm445, %v446, %v444
    %v448 = vclz %v447
    %v449 = vsub.s32 %v448, 2
    %vm450 = vcmp.gt.s32.totalorder 0, %v449
    %v451 = vsel %vm450, 0, %v449
    %v452 = vsub.s32 32, %v451
    %v453 = vshll.u32 %v444, %v451
    %v454 = vshrl.u32 %v436, %v452
    %v455 = vor.u32 %v453, %v454
    %v456 = vsub.s32 4294967266, %v451
    %v457 = vadd.s32 %v456, 127
    %v458 = vshll.u32 %v457, 23
    %v459 = vor.u32 4788187, %v458
    %v460 = vand.u32 2147483647, %v459
    %v462 = vcvt.s32.f32 %v455
    %v463 = vmul.f32 %v462, %v460
    %v464 = vxor.u32 %v463, 2147483648
    %v465 = vsel %vm344, %v464, %v463
    %v466 = vsub.s32 4, %v442
    %v467 = vsel %vm344, %v466, %v442
    %v468 = vsel %vm343, %v29, %v465
    %v469 = vsel %vm343, 0, %v467
    %v470 = vmul.f32 %v468, %v468
    %v471 = vmul.f32 %v470, -0.001358992
    %v472 = vadd.f32 %v471, 0.041655596
    %v473 = vmul.f32 %v470, %v472
    %v474 = vadd.f32 %v473, -0.4999988
    %v475 = vmul.f32 %v470, %v474
    %v476 = vadd.f32 1.0, %v475
    %v477 = vmul.f32 %v468, %v468
    %v478 = vmul.f32 %v477, -0.00019511016
    %v479 = vadd.f32 %v478, 0.008332121
    %v480 = vmul.f32 %v477, %v479
    %v481 = vadd.f32 %v480, -0.16666654
    %v482 = vmul.f32 %v477, %v481
    %v483 = vadd.f32 %v482, 1.0
    %v484 = vmul.f32 %v483, %v468
    %vm485 = vweird.f32 %v29
    %v486 = vadd.s32 %v469, 3
    %v487 = vand.u32 %v486, 3
    %vm488 = vcmp.lt.s32.totalorder %v487, 2
    %vm489 = vcmp.eq.s32.totalorder %v487, 0
    %v490 = vxor.u32 %v484, 2147483648
    %v491 = vsel %vm489, %v476, %v490
    %vm492 = vcmp.eq.s32.totalorder %v487, 2
    %v493 = vxor.u32 %v476, 2147483648
    %v494 = vsel %vm492, %v493, %v484
    %v495 = vsel %vm488, %v491, %v494
    %v496 = vsel %vm485, nan, %v495
    %v497 = vmul.f32 %v186, %v496
    %v498 = vand.u32 2147483647, %v31
    %vm499 = vcmp.le.f32.partialorder %v498, 0.7853982
    %vm500 = vcmp.lt.s32.totalorder %v31, 0
    %v501 = vand.u32 %v31, 2139095040
    %v502 = vshrl.u32 %v501, 23
    %v503 = vsub.s32 %v502, 127
    %v504 = vand.u32 2147483647, %v31
    %v505 = vand.u32 %v504, 8388607
    %v506 = vor.u32 %v505, 8388608
    %v507 = vsub.s32 0, %v506
    %v508 = vadd.s32 %v503, 1
    %vm509 = vcmp.gt.s32.totalorder %v508, 0
    %v510 = vsel %vm509, %v508, 0
    %v511 = vshrl.u32 %v510, 5
    %v512 = vand.u32 %v510, 31
    %v513 = vsub.s32 32, %v512
    %v514 = vshrl.u32 683565275, %v513
    %v515 = vshll.u32 683565275, %v512
    %v516 = vshrl.u32 2475754826, %v513
    %v517 = vor.u32 %v515, %v516
    %v518 = vshll.u32 2475754826, %v512
    %v519 = vshrl.u32 2131351028, %v513
    %v520 = vor.u32 %v518, %v519
    %v521 = vshll.u32 2131351028, %v512
    %v522 = vshrl.u32 2102212464, %v513
    %v523 = vor.u32 %v521, %v522
    %v524 = vshll.u32 2102212464, %v512
    %v525 = vshrl.u32 920167782, %v513
    %v526 = vor.u32 %v524, %v525
    %v527 = vshll.u32 920167782, %v512
    %v528 = vshrl.u32 1326507024, %v513
    %v529 = vor.u32 %v527, %v528
    %vm530 = vcmp.lt.s32.totalorder %v511, 1
    %vm531 = vcmp.lt.s32.totalorder %v511, 2
    %vm532 = vcmp.lt.s32.totalorder %v511, 3
    %vm533 = vcmp.lt.s32.totalorder %v511, 4
    %v534 = vsel %vm530, %v514, %v517
    %v535 = vsel %vm533, %v523, 2102212464
    %v536 = vsel %vm532, %v520, %v535
    %v537 = vsel %vm531, %v534, %v536
    %v538 = vsel %vm530, %v517, %v520
    %v539 = vsel %vm533, %v526, 920167782
    %v540 = vsel %vm532, %v523, %v539
    %v541 = vsel %vm531, %v538, %v540
    %v542 = vsel %vm530, %v520, %v523
    %v543 = vsel %vm533, %v529, 1326507024
    %v544 = vsel %vm532, %v526, %v543
    %v545 = vsel %vm531, %v542, %v544
    %v546 = vshll.u32 %v506, 8
    %v547 = vand.u32 %v546, 65535
    %v548 = vshrl.u32 %v546, 16
    %v549 = vand.u32 %v545, 65535
    %v550 = vshrl.u32 %v545, 16
    %v551 = vmul.u32 %v547, %v549
    %v552 = vmul.u32 %v547, %v550
    %v553 = vmul.u32 %v548, %v549
    %v554 = vmul.u32 %v548, %v550
    %v555 = vshll.u32 %v552, 16
    %v556 = vshrl.u32 %v552, 16
    %v557 = vshll.u32 %v553, 16
    %v558 = vshrl.u32 %v553, 16
    %vm559 = vc.u32 %v551, %v555
    %v560 = vsel %vm559, 1, 0
    %v561 = vadd.s32 %v551, %v555
    %v562 = vadd.s32 %v554, %v560
    %vm563 = vc.u32 %v561, %v557
    %v564 = vsel %vm563, 1, 0
    %v565 = vadd.s32 %v561, %v557
    %v566 = vadd.s32 %v562, %v564
    %v567 = vadd.s32 %v566, %v556
    %v568 = vadd.s32 %v567, %v558
    %v569 = vand.u32 %v546, 65535
    %v570 = vshrl.u32 %v546, 16
    %v571 = vand.u32 %v541, 65535
    %v572 = vshrl.u32 %v541, 16
    %v573 = vmul.u32 %v569, %v571
    %v574 = vmul.u32 %v569, %v572
    %v575 = vmul.u32 %v570, %v571
    %v576 = vmul.u32 %v570, %v572
    %v577 = vshll.u32 %v574, 16
    %v578 = vshrl.u32 %v574, 16
    %v579 = vshll.u32 %v575, 16
    %v580 = vshrl.u32 %v575, 16
    %vm581 = vc.u32 %v573, %v577
    %v582 = vsel %vm581, 1, 0
    %v583 = vadd.s32 %v573, %v577
    %v584 = vadd.s32 %v576, %v582
    %vm585 = vc.u32 %v583, %v579
    %v586 = vsel %vm585, 1, 0
    %v587 = vadd.s32 %v583, %v579
    %v588 = vadd.s32 %v584, %v586
    %v589 = vadd.s32 %v588, %v578
    %v590 = vadd.s32 %v589, %v580
    %v591 = vmul.u32 %v546, %v537
    %v592 = vadd.s32 %v568, %v587
    %vm593 = vc.u32 %v568, %v587
    %v594 = vadd.s32 %v590, 1
    %v595 = vsel %vm593, %v594, %v590
    %v596 = vadd.s32 %v591, %v595
    %v597 = vadd.s32 %v596, 536870912
    %v598 = vshrl.u32 %v597, 30
    %v599 = vshll.u32 %v598, 30
    %v600 = vsub.s32 %v596, %v599
    %vm601 = vcmp.lt.s32.totalorder %v600, 0
    %v602 = vsub.s32 0, %v600
    %v603 = vsel %vm601, %v602, %v600
    %v604 = vclz %v603
    %v605 = vsub.s32 %v604, 2
    %vm606 = vcmp.gt.s32.totalorder 0, %v605
    %v607 = vsel %vm606, 0, %v605
    %v608 = vsub.s32 32, %v607
    %v609 = vshll.u32 %v600, %v607
    %v610 = vshrl.u32 %v592, %v608
    %v611 = vor.u32 %v609, %v610
    %v612 = vsub.s32 4294967266, %v607
    %v613 = vadd.s32 %v612, 127
    %v614 = vshll.u32 %v613, 23
    %v615 = vor.u32 4788187, %v614
    %v616 = vand.u32 2147483647, %v615
    %v618 = vcvt.s32.f32 %v611
    %v619 = vmul.f32 %v618, %v616
    %v620 = vxor.u32 %v619, 2147483648
    %v621 = vsel %vm500, %v620, %v619
    %v622 = vsub.s32 4, %v598
    %v623 = vsel %vm500, %v622, %v598
    %v624 = vsel %vm499, %v31, %v621
    %v625 = vsel %vm499, 0, %v623
    %v626 = vmul.f32 %v624, %v624
    %v627 = vmul.f32 %v626, -0.001358992
    %v628 = vadd.f32 %v627, 0.041655596
    %v629 = vmul.f32 %v626, %v628
    %v630 = vadd.f32 %v629, -0.4999988
    %v631 = vmul.f32 %v626, %v630
    %v632 = vadd.f32 1.0, %v631
    %v633 = vmul.f32 %v624, %v624
    %v634 = vmul.f32 %v633, -0.00019511016
    %v635 = vadd.f32 %v634, 0.008332121
    %v636 = vmul.f32 %v633, %v635
    %v637 = vadd.f32 %v636, -0.16666654
    %v638 = vmul.f32 %v633, %v637
    %v639 = vadd.f32 %v638, 1.0
    %v640 = vmul.f32 %v639, %v624
    %vm641 = vweird.f32 %v31
    %v642 = vand.u32 %v625, 3
    %vm643 = vcmp.lt.s32.totalorder %v642, 2
    %vm644 = vcmp.eq.s32.totalorder %v642, 0
    %v645 = vxor.u32 %v640, 2147483648
    %v646 = vsel %vm644, %v632, %v645
    %vm647 = vcmp.eq.s32.totalorder %v642, 2
    %v648 = vxor.u32 %v632, 2147483648
    %v649 = vsel %vm647, %v648, %v640
    %v650 = vsel %vm643, %v646, %v649
    %v651 = vsel %vm641, nan, %v650
    %v652 = vmul.f32 %v341, 3.7493994e-33
    %v653 = vmul.f32 %v497, -1.0
    %v654 = vadd.f32 %v652, %v653
    %v655 = vmul.f32 %v651, 6.123234e-17
    %v656 = vadd.f32 %v654, %v655
    %v657 = vmul.f32 %v341, 6.123234e-17
    %v658 = vmul.f32 %v497, 6.123234e-17
    %v659 = vadd.f32 %v657, %v658
    %v660 = vadd.f32 %v659, %v651
    %v661 = vmul.f32 %v341, -1.0
    %v662 = vmul.f32 %v497, 0.0
    %v663 = vadd.f32 %v661, %v662
    %v664 = vadd.f32 %v663, %v655
    %v665 = vmax.f32 %v664, -1.0
    %v666 = vmin.f32 %v665, 1.0
    %v667 = vmul.f32 %v656, %v656
    %v668 = vmul.f32 %v660, %v660
    %v669 = vadd.f32 %v667, %v668
    %v670 = vmax.f32 %v669, 1e-20
    %v671 = vrsqrt.pop %v670
    %v672 = vmul.f32 %v671, %v670
    %v673 = vmul.f32 %v672, %v671
    %v674 = vmul.f32 0.5, %v673
    %v675 = vsub.f32 1.5, %v674
    %v676 = vmul.f32 %v671, %v675
    %vm677 = vweird.f32 %v670
    %vm678 = vweird.f32 %v671
    %vm679 = vmor %vm677, %vm678
    %v680 = vsel %vm679, %v671, %v676
    %v681 = vmul.f32 %v656, %v680
    %v682 = vmul.f32 %v660, %v680
    %v683 = vsub.f32 1.0, %v666
    %v684 = vadd.f32 %v666, 1.0
    %v685 = vmul.f32 %v683, %v684
    %v686 = vmax.f32 %v685, 0.0
    %v687 = vrsqrt.pop %v686
    %v688 = vmul.f32 %v687, %v686
    %v689 = vmul.f32 %v688, %v687
    %v690 = vmul.f32 0.5, %v689
    %v691 = vsub.f32 1.5, %v690
    %v692 = vmul.f32 %v687, %v691
    %v693 = vmul.f32 %v686, %v692
    %vm694 = vcmp.eq.f32.partialorder %v686, inf
    %v695 = vsel %vm694, %v686, %v693
    %vm696 = vcmp.eq.f32.partialorder %v686, 0.0
    %v697 = vand.u32 %v686, 2147483648
    %v698 = vsel %vm696, %v697, %v695
    %v699 = vmul.f32 %v666, 3.0
    %v700 = vmul.f32 %v699, %v666
    %v701 = vsub.f32 %v700, 1.0
    %v702 = vmul.f32 %v701, 0.5
    %v703 = vmul.f32 %v698, -1.0
    %v704 = vmul.f32 %v699, %v703
    %v705 = vmul.f32 %v703, -3.0
    %v706 = vmul.f32 %v705, %v698
    %v707 = vmul.f32 %v682, 0.0
    %v708 = vsub.f32 %v681, %v707
    %v709 = vmul.f32 %v681, 0.0
    %v710 = vadd.f32 %v709, %v682
    %v711 = vmul.f32 %v708, %v681
    %v712 = vmul.f32 %v710, %v682
    %v713 = vsub.f32 %v711, %v712
    %v714 = vmul.f32 %v710, %v681
    %v715 = vmul.f32 %v708, %v682
    %v716 = vadd.f32 %v714, %v715
    %v717 = vmul.f32 %v666, 0.48860252
    %v718 = vadd.f32 %v717, 0.2820948
    %v719 = vmul.f32 %v703, 0.48860252
    %v720 = vadd.f32 %v708, %v710
    %v721 = vmul.f32 %v719, %v720
    %v722 = vadd.f32 %v718, %v721
    %v723 = vmul.f32 %v702, 0.63078314
    %v724 = vadd.f32 %v722, %v723
    %v725 = vmul.f32 %v704, 0.3641828
    %v726 = vmul.f32 %v725, %v720
    %v727 = vadd.f32 %v724, %v726
    %v728 = vmul.f32 %v706, 0.1820914
    %v729 = vadd.f32 %v713, %v716
    %v730 = vmul.f32 %v728, %v729
    %v731 = vadd.f32 %v727, %v730
    %v732 = vmul.f32 %v341, -0.27685022
    %v733 = vmul.f32 %v497, -0.81058353
    %v734 = vadd.f32 %v732, %v733
    %v735 = vmul.f32 %v651, -0.5160507
    %v736 = vadd.f32 %v734, %v735
    %v737 = vmul.f32 %v341, 0.38319907
    %v738 = vmul.f32 %v497, -0.5856231
    %v739 = vadd.f32 %v737, %v738
    %v740 = vmul.f32 %v651, 0.71428573
    %v741 = vadd.f32 %v739, %v740
    %v742 = vmul.f32 %v341, -0.8811994
    %v743 = vadd.f32 %v742, %v662
    %v744 = vmul.f32 %v651, 0.47274473
    %v745 = vadd.f32 %v743, %v744
    %v746 = vmax.f32 %v745, -1.0
    %v747 = vmin.f32 %v746, 1.0
    %v748 = vmul.f32 %v736, %v736
    %v749 = vmul.f32 %v741, %v741
    %v750 = vadd.f32 %v748, %v749
    %v751 = vmax.f32 %v750, 1e-20
    %v752 = vrsqrt.pop %v751
    %v753 = vmul.f32 %v752, %v751
    %v754 = vmul.f32 %v753, %v752
    %v755 = vmul.f32 0.5, %v754
    %v756 = vsub.f32 1.5, %v755
    %v757 = vmul.f32 %v752, %v756
    %vm758 = vweird.f32 %v751
    %vm759 = vweird.f32 %v752
    %vm760 = vmor %vm758, %vm759
    %v761 = vsel %vm760, %v752, %v757
    %v762 = vmul.f32 %v736, %v761
    %v763 = vmul.f32 %v741, %v761
    %v764 = vsub.f32 1.0, %v747
    %v765 = vadd.f32 %v747, 1.0
    %v766 = vmul.f32 %v764, %v765
    %v767 = vmax.f32 %v766, 0.0
    %v768 = vrsqrt.pop %v767
    %v769 = vmul.f32 %v768, %v767
    %v770 = vmul.f32 %v769, %v768
    %v771 = vmul.f32 0.5, %v770
    %v772 = vsub.f32 1.5, %v771
    %v773 = vmul.f32 %v768, %v772
    %v774 = vmul.f32 %v767, %v773
    %vm775 = vcmp.eq.f32.partialorder %v767, inf
    %v776 = vsel %vm775, %v767, %v774
    %vm777 = vcmp.eq.f32.partialorder %v767, 0.0
    %v778 = vand.u32 %v767, 2147483648
    %v779 = vsel %vm777, %v778, %v776
    %v780 = vmul.f32 %v747, 3.0
    %v781 = vmul.f32 %v780, %v747
    %v782 = vsub.f32 %v781, 1.0
    %v783 = vmul.f32 %v782, 0.5
    %v784 = vmul.f32 %v779, -1.0
    %v785 = vmul.f32 %v780, %v784
    %v786 = vmul.f32 %v784, -3.0
    %v787 = vmul.f32 %v786, %v779
    %v788 = vmul.f32 %v763, 0.0
    %v789 = vsub.f32 %v762, %v788
    %v790 = vmul.f32 %v762, 0.0
    %v791 = vadd.f32 %v790, %v763
    %v792 = vmul.f32 %v789, %v762
    %v793 = vmul.f32 %v791, %v763
    %v794 = vsub.f32 %v792, %v793
    %v795 = vmul.f32 %v791, %v762
    %v796 = vmul.f32 %v789, %v763
    %v797 = vadd.f32 %v795, %v796
    %v798 = vmul.f32 %v747, 0.48860252
    %v799 = vadd.f32 %v798, 0.2820948
    %v800 = vmul.f32 %v784, 0.48860252
    %v801 = vadd.f32 %v789, %v791
    %v802 = vmul.f32 %v800, %v801
    %v803 = vadd.f32 %v799, %v802
    %v804 = vmul.f32 %v783, 0.63078314
    %v805 = vadd.f32 %v803, %v804
    %v806 = vmul.f32 %v785, 0.3641828
    %v807 = vmul.f32 %v806, %v801
    %v808 = vadd.f32 %v805, %v807
    %v809 = vmul.f32 %v787, 0.1820914
    %v810 = vadd.f32 %v794, %v797
    %v811 = vmul.f32 %v809, %v810
    %v812 = vadd.f32 %v808, %v811
    %v813 = vmul.f32 %v341, -0.16313978
    %v814 = vmul.f32 %v497, -0.9834358
    %v815 = vadd.f32 %v813, %v814
    %v816 = vmul.f32 %v651, 0.07898983
    %v817 = vadd.f32 %v815, %v816
    %v818 = vmul.f32 %v341, -0.8851398
    %v819 = vmul.f32 %v497, 0.18125667
    %v820 = vadd.f32 %v818, %v819
    %v821 = vmul.f32 %v651, 0.42857143
    %v822 = vadd.f32 %v820, %v821
    %v823 = vmul.f32 %v341, -0.43578994
    %v824 = vadd.f32 %v823, %v662
    %v825 = vmul.f32 %v651, -0.90004843
    %v826 = vadd.f32 %v824, %v825
    %v827 = vmax.f32 %v826, -1.0
    %v828 = vmin.f32 %v827, 1.0
    %v829 = vmul.f32 %v817, %v817
    %v830 = vmul.f32 %v822, %v822
    %v831 = vadd.f32 %v829, %v830
    %v832 = vmax.f32 %v831, 1e-20
    %v833 = vrsqrt.pop %v832
    %v834 = vmul.f32 %v833, %v832
    %v835 = vmul.f32 %v834, %v833
    %v836 = vmul.f32 0.5, %v835
    %v837 = vsub.f32 1.5, %v836
    %v838 = vmul.f32 %v833, %v837
    %vm839 = vweird.f32 %v832
    %vm840 = vweird.f32 %v833
    %vm841 = vmor %vm839, %vm840
    %v842 = vsel %vm841, %v833, %v838
    %v843 = vmul.f32 %v817, %v842
    %v844 = vmul.f32 %v822, %v842
    %v845 = vsub.f32 1.0, %v828
    %v846 = vadd.f32 %v828, 1.0
    %v847 = vmul.f32 %v845, %v846
    %v848 = vmax.f32 %v847, 0.0
    %v849 = vrsqrt.pop %v848
    %v850 = vmul.f32 %v849, %v848
    %v851 = vmul.f32 %v850, %v849
    %v852 = vmul.f32 0.5, %v851
    %v853 = vsub.f32 1.5, %v852
    %v854 = vmul.f32 %v849, %v853
    %v855 = vmul.f32 %v848, %v854
    %vm856 = vcmp.eq.f32.partialorder %v848, inf
    %v857 = vsel %vm856, %v848, %v855
    %vm858 = vcmp.eq.f32.partialorder %v848, 0.0
    %v859 = vand.u32 %v848, 2147483648
    %v860 = vsel %vm858, %v859, %v857
    %v861 = vmul.f32 %v828, 3.0
    %v862 = vmul.f32 %v861, %v828
    %v863 = vsub.f32 %v862, 1.0
    %v864 = vmul.f32 %v863, 0.5
    %v865 = vmul.f32 %v860, -1.0
    %v866 = vmul.f32 %v861, %v865
    %v867 = vmul.f32 %v865, -3.0
    %v868 = vmul.f32 %v867, %v860
    %v869 = vmul.f32 %v844, 0.0
    %v870 = vsub.f32 %v843, %v869
    %v871 = vmul.f32 %v843, 0.0
    %v872 = vadd.f32 %v871, %v844
    %v873 = vmul.f32 %v870, %v843
    %v874 = vmul.f32 %v872, %v844
    %v875 = vsub.f32 %v873, %v874
    %v876 = vmul.f32 %v872, %v843
    %v877 = vmul.f32 %v870, %v844
    %v878 = vadd.f32 %v876, %v877
    %v879 = vmul.f32 %v828, 0.48860252
    %v880 = vadd.f32 %v879, 0.2820948
    %v881 = vmul.f32 %v865, 0.48860252
    %v882 = vadd.f32 %v870, %v872
    %v883 = vmul.f32 %v881, %v882
    %v884 = vadd.f32 %v880, %v883
    %v885 = vmul.f32 %v864, 0.63078314
    %v886 = vadd.f32 %v884, %v885
    %v887 = vmul.f32 %v866, 0.3641828
    %v888 = vmul.f32 %v887, %v882
    %v889 = vadd.f32 %v886, %v888
    %v890 = vmul.f32 %v868, 0.1820914
    %v891 = vadd.f32 %v875, %v878
    %v892 = vmul.f32 %v890, %v891
    %v893 = vadd.f32 %v889, %v892
    %v894 = vmul.f32 %v341, 0.7642508
    %v895 = vmul.f32 %v497, -0.23082013
    %v896 = vadd.f32 %v894, %v895
    %v897 = vmul.f32 %v651, 0.6021983
    %v898 = vadd.f32 %v896, %v897
    %v899 = vmul.f32 %v341, 0.18130022
    %v900 = vmul.f32 %v497, 0.9729964
    %v901 = vadd.f32 %v899, %v900
    %v902 = vmul.f32 %v651, 0.14285715
    %v903 = vadd.f32 %v901, %v902
    %v904 = vmul.f32 %v341, -0.6189111
    %v905 = vadd.f32 %v904, %v662
    %v906 = vmul.f32 %v651, 0.78546107
    %v907 = vadd.f32 %v905, %v906
    %v908 = vmax.f32 %v907, -1.0
    %v909 = vmin.f32 %v908, 1.0
    %v910 = vmul.f32 %v898, %v898
    %v911 = vmul.f32 %v903, %v903
    %v912 = vadd.f32 %v910, %v911
    %v913 = vmax.f32 %v912, 1e-20
    %v914 = vrsqrt.pop %v913
    %v915 = vmul.f32 %v914, %v913
    %v916 = vmul.f32 %v915, %v914
    %v917 = vmul.f32 0.5, %v916
    %v918 = vsub.f32 1.5, %v917
    %v919 = vmul.f32 %v914, %v918
    %vm920 = vweird.f32 %v913
    %vm921 = vweird.f32 %v914
    %vm922 = vmor %vm920, %vm921
    %v923 = vsel %vm922, %v914, %v919
    %v924 = vmul.f32 %v898, %v923
    %v925 = vmul.f32 %v903, %v923
    %v926 = vsub.f32 1.0, %v909
    %v927 = vadd.f32 %v909, 1.0
    %v928 = vmul.f32 %v926, %v927
    %v929 = vmax.f32 %v928, 0.0
    %v930 = vrsqrt.pop %v929
    %v931 = vmul.f32 %v930, %v929
    %v932 = vmul.f32 %v931, %v930
    %v933 = vmul.f32 0.5, %v932
    %v934 = vsub.f32 1.5, %v933
    %v935 = vmul.f32 %v930, %v934
    %v936 = vmul.f32 %v929, %v935
    %vm937 = vcmp.eq.f32.partialorder %v929, inf
    %v938 = vsel %vm937, %v929, %v936
    %vm939 = vcmp.eq.f32.partialorder %v929, 0.0
    %v940 = vand.u32 %v929, 2147483648
    %v941 = vsel %vm939, %v940, %v938
    %v942 = vmul.f32 %v909, 3.0
    %v943 = vmul.f32 %v942, %v909
    %v944 = vsub.f32 %v943, 1.0
    %v945 = vmul.f32 %v944, 0.5
    %v946 = vmul.f32 %v941, -1.0
    %v947 = vmul.f32 %v942, %v946
    %v948 = vmul.f32 %v946, -3.0
    %v949 = vmul.f32 %v948, %v941
    %v950 = vmul.f32 %v925, 0.0
    %v951 = vsub.f32 %v924, %v950
    %v952 = vmul.f32 %v924, 0.0
    %v953 = vadd.f32 %v952, %v925
    %v954 = vmul.f32 %v951, %v924
    %v955 = vmul.f32 %v953, %v925
    %v956 = vsub.f32 %v954, %v955
    %v957 = vmul.f32 %v953, %v924
    %v958 = vmul.f32 %v951, %v925
    %v959 = vadd.f32 %v957, %v958
    %v960 = vmul.f32 %v909, 0.48860252
    %v961 = vadd.f32 %v960, 0.2820948
    %v962 = vmul.f32 %v946, 0.48860252
    %v963 = vadd.f32 %v951, %v953
    %v964 = vmul.f32 %v962, %v963
    %v965 = vadd.f32 %v961, %v964
    %v966 = vmul.f32 %v945, 0.63078314
    %v967 = vadd.f32 %v965, %v966
    %v968 = vmul.f32 %v947, 0.3641828
    %v969 = vmul.f32 %v968, %v963
    %v970 = vadd.f32 %v967, %v969
    %v971 = vmul.f32 %v949, 0.1820914
    %v972 = vadd.f32 %v956, %v959
    %v973 = vmul.f32 %v971, %v972
    %v974 = vadd.f32 %v970, %v973
    %v975 = vmul.f32 %v341, 0.17057277
    %v976 = vmul.f32 %v497, 0.14502853
    %v977 = vadd.f32 %v975, %v976
    %v978 = vmul.f32 %v651, -0.9746136
    %v979 = vadd.f32 %v977, %v978
    %v980 = vmul.f32 %v341, 0.025002256
    %v981 = vmul.f32 %v497, -0.98942745
    %v982 = vadd.f32 %v980, %v981
    %v983 = vmul.f32 %v651, -0.14285715
    %v984 = vadd.f32 %v982, %v983
    %v985 = vmul.f32 %v341, -0.98502785
    %v986 = vadd.f32 %v985, %v662
    %v987 = vmul.f32 %v651, -0.17239542
    %v988 = vadd.f32 %v986, %v987
    %v989 = vmax.f32 %v988, -1.0
    %v990 = vmin.f32 %v989, 1.0
    %v991 = vmul.f32 %v979, %v979
    %v992 = vmul.f32 %v984, %v984
    %v993 = vadd.f32 %v991, %v992
    %v994 = vmax.f32 %v993, 1e-20
    %v995 = vrsqrt.pop %v994
    %v996 = vmul.f32 %v995, %v994
    %v997 = vmul.f32 %v996, %v995
    %v998 = vmul.f32 0.5, %v997
    %v999 = vsub.f32 1.5, %v998
    %v1000 = vmul.f32 %v995, %v999
    %vm1001 = vweird.f32 %v994
    %vm1002 = vweird.f32 %v995
    %vm1003 = vmor %vm1001, %vm1002
    %v1004 = vsel %vm1003, %v995, %v1000
    %v1005 = vmul.f32 %v979, %v1004
    %v1006 = vmul.f32 %v984, %v1004
    %v1007 = vsub.f32 1.0, %v990
    %v1008 = vadd.f32 %v990, 1.0
    %v1009 = vmul.f32 %v1007, %v1008
    %v1010 = vmax.f32 %v1009, 0.0
    %v1011 = vrsqrt.pop %v1010
    %v1012 = vmul.f32 %v1011, %v1010
    %v1013 = vmul.f32 %v1012, %v1011
    %v1014 = vmul.f32 0.5, %v1013
    %v1015 = vsub.f32 1.5, %v1014
    %v1016 = vmul.f32 %v1011, %v1015
    %v1017 = vmul.f32 %v1010, %v1016
    %vm1018 = vcmp.eq.f32.partialorder %v1010, inf
    %v1019 = vsel %vm1018, %v1010, %v1017
    %vm1020 = vcmp.eq.f32.partialorder %v1010, 0.0
    %v1021 = vand.u32 %v1010, 2147483648
    %v1022 = vsel %vm1020, %v1021, %v1019
    %v1023 = vmul.f32 %v990, 3.0
    %v1024 = vmul.f32 %v1023, %v990
    %v1025 = vsub.f32 %v1024, 1.0
    %v1026 = vmul.f32 %v1025, 0.5
    %v1027 = vmul.f32 %v1022, -1.0
    %v1028 = vmul.f32 %v1023, %v1027
    %v1029 = vmul.f32 %v1027, -3.0
    %v1030 = vmul.f32 %v1029, %v1022
    %v1031 = vmul.f32 %v1006, 0.0
    %v1032 = vsub.f32 %v1005, %v1031
    %v1033 = vmul.f32 %v1005, 0.0
    %v1034 = vadd.f32 %v1033, %v1006
    %v1035 = vmul.f32 %v1032, %v1005
    %v1036 = vmul.f32 %v1034, %v1006
    %v1037 = vsub.f32 %v1035, %v1036
    %v1038 = vmul.f32 %v1034, %v1005
    %v1039 = vmul.f32 %v1032, %v1006
    %v1040 = vadd.f32 %v1038, %v1039
    %v1041 = vmul.f32 %v990, 0.48860252
    %v1042 = vadd.f32 %v1041, 0.2820948
    %v1043 = vmul.f32 %v1027, 0.48860252
    %v1044 = vadd.f32 %v1032, %v1034
    %v1045 = vmul.f32 %v1043, %v1044
    %v1046 = vadd.f32 %v1042, %v1045
    %v1047 = vmul.f32 %v1026, 0.63078314
    %v1048 = vadd.f32 %v1046, %v1047
    %v1049 = vmul.f32 %v1028, 0.3641828
    %v1050 = vmul.f32 %v1049, %v1044
    %v1051 = vadd.f32 %v1048, %v1050
    %v1052 = vmul.f32 %v1030, 0.1820914
    %v1053 = vadd.f32 %v1037, %v1040
    %v1054 = vmul.f32 %v1052, %v1053
    %v1055 = vadd.f32 %v1051, %v1054
    %v1056 = vmul.f32 %v341, -0.42271808
    %v1057 = vmul.f32 %v497, 0.49004877
    %v1058 = vadd.f32 %v1056, %v1057
    %v1059 = vmul.f32 %v651, 0.7623396
    %v1060 = vadd.f32 %v1058, %v1059
    %v1061 = vmul.f32 %v341, 0.23764329
    %v1062 = vmul.f32 %v497, 0.87169504
    %v1063 = vadd.f32 %v1061, %v1062
    %v1064 = vmul.f32 %v651, -0.42857143
    %v1065 = vadd.f32 %v1063, %v1064
    %v1066 = vmul.f32 %v341, -0.8745485
    %v1067 = vadd.f32 %v1066, %v662
    %v1068 = vmul.f32 %v651, -0.48493803
    %v1069 = vadd.f32 %v1067, %v1068
    %v1070 = vmax.f32 %v1069, -1.0
    %v1071 = vmin.f32 %v1070, 1.0
    %v1072 = vmul.f32 %v1060, %v1060
    %v1073 = vmul.f32 %v1065, %v1065
    %v1074 = vadd.f32 %v1072, %v1073
    %v1075 = vmax.f32 %v1074, 1e-20
    %v1076 = vrsqrt.pop %v1075
    %v1077 = vmul.f32 %v1076, %v1075
    %v1078 = vmul.f32 %v1077, %v1076
    %v1079 = vmul.f32 0.5, %v1078
    %v1080 = vsub.f32 1.5, %v1079
    %v1081 = vmul.f32 %v1076, %v1080
    %vm1082 = vweird.f32 %v1075
    %vm1083 = vweird.f32 %v1076
    %vm1084 = vmor %vm1082, %vm1083
    %v1085 = vsel %vm1084, %v1076, %v1081
    %v1086 = vmul.f32 %v1060, %v1085
    %v1087 = vmul.f32 %v1065, %v1085
    %v1088 = vsub.f32 1.0, %v1071
    %v1089 = vadd.f32 %v1071, 1.0
    %v1090 = vmul.f32 %v1088, %v1089
    %v1091 = vmax.f32 %v1090, 0.0
    %v1092 = vrsqrt.pop %v1091
    %v1093 = vmul.f32 %v1092, %v1091
    %v1094 = vmul.f32 %v1093, %v1092
    %v1095 = vmul.f32 0.5, %v1094
    %v1096 = vsub.f32 1.5, %v1095
    %v1097 = vmul.f32 %v1092, %v1096
    %v1098 = vmul.f32 %v1091, %v1097
    %vm1099 = vcmp.eq.f32.partialorder %v1091, inf
    %v1100 = vsel %vm1099, %v1091, %v1098
    %vm1101 = vcmp.eq.f32.partialorder %v1091, 0.0
    %v1102 = vand.u32 %v1091, 2147483648
    %v1103 = vsel %vm1101, %v1102, %v1100
    %v1104 = vmul.f32 %v1071, 3.0
    %v1105 = vmul.f32 %v1104, %v1071
    %v1106 = vsub.f32 %v1105, 1.0
    %v1107 = vmul.f32 %v1106, 0.5
    %v1108 = vmul.f32 %v1103, -1.0
    %v1109 = vmul.f32 %v1104, %v1108
    %v1110 = vmul.f32 %v1108, -3.0
    %v1111 = vmul.f32 %v1110, %v1103
    %v1112 = vmul.f32 %v1087, 0.0
    %v1113 = vsub.f32 %v1086, %v1112
    %v1114 = vmul.f32 %v1086, 0.0
    %v1115 = vadd.f32 %v1114, %v1087
    %v1116 = vmul.f32 %v1113, %v1086
    %v1117 = vmul.f32 %v1115, %v1087
    %v1118 = vsub.f32 %v1116, %v1117
    %v1119 = vmul.f32 %v1115, %v1086
    %v1120 = vmul.f32 %v1113, %v1087
    %v1121 = vadd.f32 %v1119, %v1120
    %v1122 = vmul.f32 %v1071, 0.48860252
    %v1123 = vadd.f32 %v1122, 0.2820948
    %v1124 = vmul.f32 %v1108, 0.48860252
    %v1125 = vadd.f32 %v1113, %v1115
    %v1126 = vmul.f32 %v1124, %v1125
    %v1127 = vadd.f32 %v1123, %v1126
    %v1128 = vmul.f32 %v1107, 0.63078314
    %v1129 = vadd.f32 %v1127, %v1128
    %v1130 = vmul.f32 %v1109, 0.3641828
    %v1131 = vmul.f32 %v1130, %v1125
    %v1132 = vadd.f32 %v1129, %v1131
    %v1133 = vmul.f32 %v1111, 0.1820914
    %v1134 = vadd.f32 %v1118, %v1121
    %v1135 = vmul.f32 %v1133, %v1134
    %v1136 = vadd.f32 %v1132, %v1135
    %v1137 = vmul.f32 %v341, -0.16660604
    %v1138 = vmul.f32 %v497, 0.9691403
    %v1139 = vadd.f32 %v1137, %v1138
    %v1140 = vmul.f32 %v651, -0.18168516
    %v1141 = vadd.f32 %v1139, %v1140
    %v1142 = vmul.f32 %v341, -0.65500295
    %v1143 = vmul.f32 %v497, -0.24650979
    %v1144 = vadd.f32 %v1142, %v1143
    %v1145 = vmul.f32 %v651, -0.71428573
    %v1146 = vadd.f32 %v1144, %v1145
    %v1147 = vmul.f32 %v341, -0.73703027
    %v1148 = vadd.f32 %v1147, %v662
    %v1149 = vmul.f32 %v651, 0.67585975
    %v1150 = vadd.f32 %v1148, %v1149
    %v1151 = vmax.f32 %v1150, -1.0
    %v1152 = vmin.f32 %v1151, 1.0
    %v1153 = vmul.f32 %v1141, %v1141
    %v1154 = vmul.f32 %v1146, %v1146
    %v1155 = vadd.f32 %v1153, %v1154
    %v1156 = vmax.f32 %v1155, 1e-20
    %v1157 = vrsqrt.pop %v1156
    %v1158 = vmul.f32 %v1157, %v1156
    %v1159 = vmul.f32 %v1158, %v1157
    %v1160 = vmul.f32 0.5, %v1159
    %v1161 = vsub.f32 1.5, %v1160
    %v1162 = vmul.f32 %v1157, %v1161
    %vm1163 = vweird.f32 %v1156
    %vm1164 = vweird.f32 %v1157
    %vm1165 = vmor %vm1163, %vm1164
    %v1166 = vsel %vm1165, %v1157, %v1162
    %v1167 = vmul.f32 %v1141, %v1166
    %v1168 = vmul.f32 %v1146, %v1166
    %v1169 = vsub.f32 1.0, %v1152
    %v1170 = vadd.f32 %v1152, 1.0
    %v1171 = vmul.f32 %v1169, %v1170
    %v1172 = vmax.f32 %v1171, 0.0
    %v1173 = vrsqrt.pop %v1172
    %v1174 = vmul.f32 %v1173, %v1172
    %v1175 = vmul.f32 %v1174, %v1173
    %v1176 = vmul.f32 0.5, %v1175
    %v1177 = vsub.f32 1.5, %v1176
    %v1178 = vmul.f32 %v1173, %v1177
    %v1179 = vmul.f32 %v1172, %v1178
    %vm1180 = vcmp.eq.f32.partialorder %v1172, inf
    %v1181 = vsel %vm1180, %v1172, %v1179
    %vm1182 = vcmp.eq.f32.partialorder %v1172, 0.0
    %v1183 = vand.u32 %v1172, 2147483648
    %v1184 = vsel %vm1182, %v1183, %v1181
    %v1185 = vmul.f32 %v1152, 3.0
    %v1186 = vmul.f32 %v1185, %v1152
    %v1187 = vsub.f32 %v1186, 1.0
    %v1188 = vmul.f32 %v1187, 0.5
    %v1189 = vmul.f32 %v1184, -1.0
    %v1190 = vmul.f32 %v1185, %v1189
    %v1191 = vmul.f32 %v1189, -3.0
    %v1192 = vmul.f32 %v1191, %v1184
    %v1193 = vmul.f32 %v1168, 0.0
    %v1194 = vsub.f32 %v1167, %v1193
    %v1195 = vmul.f32 %v1167, 0.0
    %v1196 = vadd.f32 %v1195, %v1168
    %v1197 = vmul.f32 %v1194, %v1167
    %v1198 = vmul.f32 %v1196, %v1168
    %v1199 = vsub.f32 %v1197, %v1198
    %v1200 = vmul.f32 %v1196, %v1167
    %v1201 = vmul.f32 %v1194, %v1168
    %v1202 = vadd.f32 %v1200, %v1201
    %v1203 = vmul.f32 %v1152, 0.48860252
    %v1204 = vadd.f32 %v1203, 0.2820948
    %v1205 = vmul.f32 %v1189, 0.48860252
    %v1206 = vadd.f32 %v1194, %v1196
    %v1207 = vmul.f32 %v1205, %v1206
    %v1208 = vadd.f32 %v1204, %v1207
    %v1209 = vmul.f32 %v1188, 0.63078314
    %v1210 = vadd.f32 %v1208, %v1209
    %v1211 = vmul.f32 %v1190, 0.3641828
    %v1212 = vmul.f32 %v1211, %v1206
    %v1213 = vadd.f32 %v1210, %v1212
    %v1214 = vmul.f32 %v1192, 0.1820914
    %v1215 = vadd.f32 %v1199, %v1202
    %v1216 = vmul.f32 %v1214, %v1215
    %v1217 = vadd.f32 %v1213, %v1216
    %v1218 = vadd.f32 %v652, %v497
    %v1219 = vadd.f32 %v1218, %v655
    %v1220 = vmul.f32 %v341, -6.123234e-17
    %v1221 = vadd.f32 %v1220, %v658
    %v1222 = vmul.f32 %v651, -1.0
    %v1223 = vadd.f32 %v1221, %v1222
    %v1224 = vmul.f32 %v1219, %v1219
    %v1225 = vmul.f32 %v1223, %v1223
    %v1226 = vadd.f32 %v1224, %v1225
    %v1227 = vmax.f32 %v1226, 1e-20
    %v1228 = vrsqrt.pop %v1227
    %v1229 = vmul.f32 %v1228, %v1227
    %v1230 = vmul.f32 %v1229, %v1228
    %v1231 = vmul.f32 0.5, %v1230
    %v1232 = vsub.f32 1.5, %v1231
    %v1233 = vmul.f32 %v1228, %v1232
    %vm1234 = vweird.f32 %v1227
    %vm1235 = vweird.f32 %v1228
    %vm1236 = vmor %vm1234, %vm1235
    %v1237 = vsel %vm1236, %v1228, %v1233
    %v1238 = vmul.f32 %v1219, %v1237
    %v1239 = vmul.f32 %v1223, %v1237
    %v1240 = vmul.f32 %v1239, 0.0
    %v1241 = vsub.f32 %v1238, %v1240
    %v1242 = vmul.f32 %v1238, 0.0
    %v1243 = vadd.f32 %v1242, %v1239
    %v1244 = vmul.f32 %v1241, %v1238
    %v1245 = vmul.f32 %v1243, %v1239
    %v1246 = vsub.f32 %v1244, %v1245
    %v1247 = vmul.f32 %v1243, %v1238
    %v1248 = vmul.f32 %v1241, %v1239
    %v1249 = vadd.f32 %v1247, %v1248
    %v1250 = vadd.f32 %v1241, %v1243
    %v1251 = vmul.f32 %v719, %v1250
    %v1252 = vadd.f32 %v718, %v1251
    %v1253 = vadd.f32 %v1252, %v723
    %v1254 = vmul.f32 %v725, %v1250
    %v1255 = vadd.f32 %v1253, %v1254
    %v1256 = vadd.f32 %v1246, %v1249
    %v1257 = vmul.f32 %v728, %v1256
    %v1258 = vadd.f32 %v1255, %v1257
    %v1259 = vsub.f32 3.1415927, %v31
    %v1260 = vand.u32 2147483647, %v1259
    %vm1261 = vcmp.le.f32.partialorder %v1260, 0.7853982
    %vm1262 = vcmp.lt.s32.totalorder %v1259, 0
    %v1263 = vand.u32 %v1259, 2139095040
    %v1264 = vshrl.u32 %v1263, 23
    %v1265 = vsub.s32 %v1264, 127
    %v1266 = vand.u32 2147483647, %v1259
    %v1267 = vand.u32 %v1266, 8388607
    %v1268 = vor.u32 %v1267, 8388608
    %v1269 = vsub.s32 0, %v1268
    %v1270 = vadd.s32 %v1265, 1
    %vm1271 = vcmp.gt.s32.totalorder %v1270, 0
    %v1272 = vsel %vm1271, %v1270, 0
    %v1273 = vshrl.u32 %v1272, 5
    %v1274 = vand.u32 %v1272, 31
    %v1275 = vsub.s32 32, %v1274
    %v1276 = vshrl.u32 683565275, %v1275
    %v1277 = vshll.u32 683565275, %v1274
    %v1278 = vshrl.u32 2475754826, %v1275
    %v1279 = vor.u32 %v1277, %v1278
    %v1280 = vshll.u32 2475754826, %v1274
    %v1281 = vshrl.u32 2131351028, %v1275
    %v1282 = vor.u32 %v1280, %v1281
    %v1283 = vshll.u32 2131351028, %v1274
    %v1284 = vshrl.u32 2102212464, %v1275
    %v1285 = vor.u32 %v1283, %v1284
    %v1286 = vshll.u32 2102212464, %v1274
    %v1287 = vshrl.u32 920167782, %v1275
    %v1288 = vor.u32 %v1286, %v1287
    %v1289 = vshll.u32 920167782, %v1274
    %v1290 = vshrl.u32 1326507024, %v1275
    %v1291 = vor.u32 %v1289, %v1290
    %vm1292 = vcmp.lt.s32.totalorder %v1273, 1
    %vm1293 = vcmp.lt.s32.totalorder %v1273, 2
    %vm1294 = vcmp.lt.s32.totalorder %v1273, 3
    %vm1295 = vcmp.lt.s32.totalorder %v1273, 4
    %v1296 = vsel %vm1292, %v1276, %v1279
    %v1297 = vsel %vm1295, %v1285, 2102212464
    %v1298 = vsel %vm1294, %v1282, %v1297
    %v1299 = vsel %vm1293, %v1296, %v1298
    %v1300 = vsel %vm1292, %v1279, %v1282
    %v1301 = vsel %vm1295, %v1288, 920167782
    %v1302 = vsel %vm1294, %v1285, %v1301
    %v1303 = vsel %vm1293, %v1300, %v1302
    %v1304 = vsel %vm1292, %v1282, %v1285
    %v1305 = vsel %vm1295, %v1291, 1326507024
    %v1306 = vsel %vm1294, %v1288, %v1305
    %v1307 = vsel %vm1293, %v1304, %v1306
    %v1308 = vshll.u32 %v1268, 8
    %v1309 = vand.u32 %v1308, 65535
    %v1310 = vshrl.u32 %v1308, 16
    %v1311 = vand.u32 %v1307, 65535
    %v1312 = vshrl.u32 %v1307, 16
    %v1313 = vmul.u32 %v1309, %v1311
    %v1314 = vmul.u32 %v1309, %v1312
    %v1315 = vmul.u32 %v1310, %v1311
    %v1316 = vmul.u32 %v1310, %v1312
    %v1317 = vshll.u32 %v1314, 16
    %v1318 = vshrl.u32 %v1314, 16
    %v1319 = vshll.u32 %v1315, 16
    %v1320 = vshrl.u32 %v1315, 16
    %vm1321 = vc.u32 %v1313, %v1317
    %v1322 = vsel %vm1321, 1, 0
    %v1323 = vadd.s32 %v1313, %v1317
    %v1324 = vadd.s32 %v1316, %v1322
    %vm1325 = vc.u32 %v1323, %v1319
    %v1326 = vsel %vm1325, 1, 0
    %v1327 = vadd.s32 %v1323, %v1319
    %v1328 = vadd.s32 %v1324, %v1326
    %v1329 = vadd.s32 %v1328, %v1318
    %v1330 = vadd.s32 %v1329, %v1320
    %v1331 = vand.u32 %v1308, 65535
    %v1332 = vshrl.u32 %v1308, 16
    %v1333 = vand.u32 %v1303, 65535
    %v1334 = vshrl.u32 %v1303, 16
    %v1335 = vmul.u32 %v1331, %v1333
    %v1336 = vmul.u32 %v1331, %v1334
    %v1337 = vmul.u32 %v1332, %v1333
    %v1338 = vmul.u32 %v1332, %v1334
    %v1339 = vshll.u32 %v1336, 16
    %v1340 = vshrl.u32 %v1336, 16
    %v1341 = vshll.u32 %v1337, 16
    %v1342 = vshrl.u32 %v1337, 16
    %vm1343 = vc.u32 %v1335, %v1339
    %v1344 = vsel %vm1343, 1, 0
    %v1345 = vadd.s32 %v1335, %v1339
    %v1346 = vadd.s32 %v1338, %v1344
    %vm1347 = vc.u32 %v1345, %v1341
    %v1348 = vsel %vm1347, 1, 0
    %v1349 = vadd.s32 %v1345, %v1341
    %v1350 = vadd.s32 %v1346, %v1348
    %v1351 = vadd.s32 %v1350, %v1340
    %v1352 = vadd.s32 %v1351, %v1342
    %v1353 = vmul.u32 %v1308, %v1299
    %v1354 = vadd.s32 %v1330, %v1349
    %vm1355 = vc.u32 %v1330, %v1349
    %v1356 = vadd.s32 %v1352, 1
    %v1357 = vsel %vm1355, %v1356, %v1352
    %v1358 = vadd.s32 %v1353, %v1357
    %v1359 = vadd.s32 %v1358, 536870912
    %v1360 = vshrl.u32 %v1359, 30
    %v1361 = vshll.u32 %v1360, 30
    %v1362 = vsub.s32 %v1358, %v1361
    %vm1363 = vcmp.lt.s32.totalorder %v1362, 0
    %v1364 = vsub.s32 0, %v1362
    %v1365 = vsel %vm1363, %v1364, %v1362
    %v1366 = vclz %v1365
    %v1367 = vsub.s32 %v1366, 2
    %vm1368 = vcmp.gt.s32.totalorder 0, %v1367
    %v1369 = vsel %vm1368, 0, %v1367
    %v1370 = vsub.s32 32, %v1369
    %v1371 = vshll.u32 %v1362, %v1369
    %v1372 = vshrl.u32 %v1354, %v1370
    %v1373 = vor.u32 %v1371, %v1372
    %v1374 = vsub.s32 4294967266, %v1369
    %v1375 = vadd.s32 %v1374, 127
    %v1376 = vshll.u32 %v1375, 23
    %v1377 = vor.u32 4788187, %v1376
    %v1378 = vand.u32 2147483647, %v1377
    %v1380 = vcvt.s32.f32 %v1373
    %v1381 = vmul.f32 %v1380, %v1378
    %v1382 = vxor.u32 %v1381, 2147483648
    %v1383 = vsel %vm1262, %v1382, %v1381
    %v1384 = vsub.s32 4, %v1360
    %v1385 = vsel %vm1262, %v1384, %v1360
    %v1386 = vsel %vm1261, %v1259, %v1383
    %v1387 = vsel %vm1261, 0, %v1385
    %v1388 = vmul.f32 %v1386, %v1386
    %v1389 = vmul.f32 %v1388, -0.001358992
    %v1390 = vadd.f32 %v1389, 0.041655596
    %v1391 = vmul.f32 %v1388, %v1390
    %v1392 = vadd.f32 %v1391, -0.4999988
    %v1393 = vmul.f32 %v1388, %v1392
    %v1394 = vadd.f32 1.0, %v1393
    %v1395 = vmul.f32 %v1386, %v1386
    %v1396 = vmul.f32 %v1395, -0.00019511016
    %v1397 = vadd.f32 %v1396, 0.008332121
    %v1398 = vmul.f32 %v1395, %v1397
    %v1399 = vadd.f32 %v1398, -0.16666654
    %v1400 = vmul.f32 %v1395, %v1399
    %v1401 = vadd.f32 %v1400, 1.0
    %v1402 = vmul.f32 %v1401, %v1386
    %vm1403 = vweird.f32 %v1259
    %v1404 = vadd.s32 %v1387, 3
    %v1405 = vand.u32 %v1404, 3
    %vm1406 = vcmp.lt.s32.totalorder %v1405, 2
    %vm1407 = vcmp.eq.s32.totalorder %v1405, 0
    %v1408 = vxor.u32 %v1402, 2147483648
    %v1409 = vsel %vm1407, %v1394, %v1408
    %vm1410 = vcmp.eq.s32.totalorder %v1405, 2
    %v1411 = vxor.u32 %v1394, 2147483648
    %v1412 = vsel %vm1410, %v1411, %v1402
    %v1413 = vsel %vm1406, %v1409, %v1412
    %v1414 = vsel %vm1403, nan, %v1413
    %v1415 = vmul.f32 %v731, %v1414
    %1416 = vst [vmem:[#allocation5] sm:$0xff] %v1415
    %v1417 = vmul.f32 %v812, %v1414
    %s1418 = scalar_lea.vmem [#allocation5], 8
    %1419 = vst [vmem:[%s1418] sm:$0xff] %v1417
    %v1420 = vmul.f32 %v893, %v1414
    %s1421 = scalar_lea.vmem [#allocation5], 16
    %1422 = vst [vmem:[%s1421] sm:$0xff] %v1420
    %v1423 = vmul.f32 %v974, %v1414
    %s1424 = scalar_lea.vmem [#allocation5], 24
    %1425 = vst [vmem:[%s1424] sm:$0xff] %v1423
    %v1426 = vmul.f32 %v1055, %v1414
    %s1427 = scalar_lea.vmem [#allocation5], 32
    %1428 = vst [vmem:[%s1427] sm:$0xff] %v1426
    %v1429 = vmul.f32 %v1136, %v1414
    %s1430 = scalar_lea.vmem [#allocation5], 40
    %1431 = vst [vmem:[%s1430] sm:$0xff] %v1429
    %v1432 = vmul.f32 %v1217, %v1414
    %s1433 = scalar_lea.vmem [#allocation5], 48
    %1434 = vst [vmem:[%s1433] sm:$0xff] %v1432
    %v1435 = vmul.f32 %v1258, %v1414
    %s1436 = scalar_lea.vmem [#allocation5], 56
    %1437 = vst [vmem:[%s1436] sm:$0xff] %v1435
    %v1438 = vmul.f32 %v1259, 0.5
    %v1439 = vand.u32 2147483647, %v1438
    %vm1440 = vcmp.le.f32.partialorder %v1439, 0.7853982
    %vm1441 = vcmp.lt.s32.totalorder %v1438, 0
    %v1442 = vand.u32 %v1438, 2139095040
    %v1443 = vshrl.u32 %v1442, 23
    %v1444 = vsub.s32 %v1443, 127
    %v1445 = vand.u32 2147483647, %v1438
    %v1446 = vand.u32 %v1445, 8388607
    %v1447 = vor.u32 %v1446, 8388608
    %v1448 = vsub.s32 0, %v1447
    %v1449 = vadd.s32 %v1444, 1
    %vm1450 = vcmp.gt.s32.totalorder %v1449, 0
    %v1451 = vsel %vm1450, %v1449, 0
    %v1452 = vshrl.u32 %v1451, 5
    %v1453 = vand.u32 %v1451, 31
    %v1454 = vsub.s32 32, %v1453
    %v1455 = vshrl.u32 683565275, %v1454
    %v1456 = vshll.u32 683565275, %v1453
    %v1457 = vshrl.u32 2475754826, %v1454
    %v1458 = vor.u32 %v1456, %v1457
    %v1459 = vshll.u32 2475754826, %v1453
    %v1460 = vshrl.u32 2131351028, %v1454
    %v1461 = vor.u32 %v1459, %v1460
    %v1462 = vshll.u32 2131351028, %v1453
    %v1463 = vshrl.u32 2102212464, %v1454
    %v1464 = vor.u32 %v1462, %v1463
    %v1465 = vshll.u32 2102212464, %v1453
    %v1466 = vshrl.u32 920167782, %v1454
    %v1467 = vor.u32 %v1465, %v1466
    %v1468 = vshll.u32 920167782, %v1453
    %v1469 = vshrl.u32 1326507024, %v1454
    %v1470 = vor.u32 %v1468, %v1469
    %vm1471 = vcmp.lt.s32.totalorder %v1452, 1
    %vm1472 = vcmp.lt.s32.totalorder %v1452, 2
    %vm1473 = vcmp.lt.s32.totalorder %v1452, 3
    %vm1474 = vcmp.lt.s32.totalorder %v1452, 4
    %v1475 = vsel %vm1471, %v1455, %v1458
    %v1476 = vsel %vm1474, %v1464, 2102212464
    %v1477 = vsel %vm1473, %v1461, %v1476
    %v1478 = vsel %vm1472, %v1475, %v1477
    %v1479 = vsel %vm1471, %v1458, %v1461
    %v1480 = vsel %vm1474, %v1467, 920167782
    %v1481 = vsel %vm1473, %v1464, %v1480
    %v1482 = vsel %vm1472, %v1479, %v1481
    %v1483 = vsel %vm1471, %v1461, %v1464
    %v1484 = vsel %vm1474, %v1470, 1326507024
    %v1485 = vsel %vm1473, %v1467, %v1484
    %v1486 = vsel %vm1472, %v1483, %v1485
    %v1487 = vshll.u32 %v1447, 8
    %v1488 = vand.u32 %v1487, 65535
    %v1489 = vshrl.u32 %v1487, 16
    %v1490 = vand.u32 %v1486, 65535
    %v1491 = vshrl.u32 %v1486, 16
    %v1492 = vmul.u32 %v1488, %v1490
    %v1493 = vmul.u32 %v1488, %v1491
    %v1494 = vmul.u32 %v1489, %v1490
    %v1495 = vmul.u32 %v1489, %v1491
    %v1496 = vshll.u32 %v1493, 16
    %v1497 = vshrl.u32 %v1493, 16
    %v1498 = vshll.u32 %v1494, 16
    %v1499 = vshrl.u32 %v1494, 16
    %vm1500 = vc.u32 %v1492, %v1496
    %v1501 = vsel %vm1500, 1, 0
    %v1502 = vadd.s32 %v1492, %v1496
    %v1503 = vadd.s32 %v1495, %v1501
    %vm1504 = vc.u32 %v1502, %v1498
    %v1505 = vsel %vm1504, 1, 0
    %v1506 = vadd.s32 %v1502, %v1498
    %v1507 = vadd.s32 %v1503, %v1505
    %v1508 = vadd.s32 %v1507, %v1497
    %v1509 = vadd.s32 %v1508, %v1499
    %v1510 = vand.u32 %v1487, 65535
    %v1511 = vshrl.u32 %v1487, 16
    %v1512 = vand.u32 %v1482, 65535
    %v1513 = vshrl.u32 %v1482, 16
    %v1514 = vmul.u32 %v1510, %v1512
    %v1515 = vmul.u32 %v1510, %v1513
    %v1516 = vmul.u32 %v1511, %v1512
    %v1517 = vmul.u32 %v1511, %v1513
    %v1518 = vshll.u32 %v1515, 16
    %v1519 = vshrl.u32 %v1515, 16
    %v1520 = vshll.u32 %v1516, 16
    %v1521 = vshrl.u32 %v1516, 16
    %vm1522 = vc.u32 %v1514, %v1518
    %v1523 = vsel %vm1522, 1, 0
    %v1524 = vadd.s32 %v1514, %v1518
    %v1525 = vadd.s32 %v1517, %v1523
    %vm1526 = vc.u32 %v1524, %v1520
    %v1527 = vsel %vm1526, 1, 0
    %v1528 = vadd.s32 %v1524, %v1520
    %v1529 = vadd.s32 %v1525, %v1527
    %v1530 = vadd.s32 %v1529, %v1519
    %v1531 = vadd.s32 %v1530, %v1521
    %v1532 = vmul.u32 %v1487, %v1478
    %v1533 = vadd.s32 %v1509, %v1528
    %vm1534 = vc.u32 %v1509, %v1528
    %v1535 = vadd.s32 %v1531, 1
    %v1536 = vsel %vm1534, %v1535, %v1531
    %v1537 = vadd.s32 %v1532, %v1536
    %v1538 = vadd.s32 %v1537, 536870912
    %v1539 = vshrl.u32 %v1538, 30
    %v1540 = vshll.u32 %v1539, 30
    %v1541 = vsub.s32 %v1537, %v1540
    %vm1542 = vcmp.lt.s32.totalorder %v1541, 0
    %v1543 = vsub.s32 0, %v1541
    %v1544 = vsel %vm1542, %v1543, %v1541
    %v1545 = vclz %v1544
    %v1546 = vsub.s32 %v1545, 2
    %vm1547 = vcmp.gt.s32.totalorder 0, %v1546
    %v1548 = vsel %vm1547, 0, %v1546
    %v1549 = vsub.s32 32, %v1548
    %v1550 = vshll.u32 %v1541, %v1548
    %v1551 = vshrl.u32 %v1533, %v1549
    %v1552 = vor.u32 %v1550, %v1551
    %v1553 = vsub.s32 4294967266, %v1548
    %v1554 = vadd.s32 %v1553, 127
    %v1555 = vshll.u32 %v1554, 23
    %v1556 = vor.u32 4788187, %v1555
    %v1557 = vand.u32 2147483647, %v1556
    %v1559 = vcvt.s32.f32 %v1552
    %v1560 = vmul.f32 %v1559, %v1557
    %v1561 = vxor.u32 %v1560, 2147483648
    %v1562 = vsel %vm1441, %v1561, %v1560
    %v1563 = vsub.s32 4, %v1539
    %v1564 = vsel %vm1441, %v1563, %v1539
    %v1565 = vsel %vm1440, %v1438, %v1562
    %v1566 = vsel %vm1440, 0, %v1564
    %v1567 = vmul.f32 %v1565, %v1565
    %v1568 = vmul.f32 %v1567, -0.001358992
    %v1569 = vadd.f32 %v1568, 0.041655596
    %v1570 = vmul.f32 %v1567, %v1569
    %v1571 = vadd.f32 %v1570, -0.4999988
    %v1572 = vmul.f32 %v1567, %v1571
    %v1573 = vadd.f32 1.0, %v1572
    %v1574 = vmul.f32 %v1565, %v1565
    %v1575 = vmul.f32 %v1574, -0.00019511016
    %v1576 = vadd.f32 %v1575, 0.008332121
    %v1577 = vmul.f32 %v1574, %v1576
    %v1578 = vadd.f32 %v1577, -0.16666654
    %v1579 = vmul.f32 %v1574, %v1578
    %v1580 = vadd.f32 %v1579, 1.0
    %v1581 = vmul.f32 %v1580, %v1565
    %vm1582 = vweird.f32 %v1438
    %v1583 = vadd.s32 %v1566, 3
    %v1584 = vand.u32 %v1583, 3
    %vm1585 = vcmp.lt.s32.totalorder %v1584, 2
    %vm1586 = vcmp.eq.s32.totalorder %v1584, 0
    %v1587 = vxor.u32 %v1581, 2147483648
    %v1588 = vsel %vm1586, %v1573, %v1587
    %vm1589 = vcmp.eq.s32.totalorder %v1584, 2
    %v1590 = vxor.u32 %v1573, 2147483648
    %v1591 = vsel %vm1589, %v1590, %v1581
    %v1592 = vsel %vm1585, %v1588, %v1591
    %v1593 = vsel %vm1582, nan, %v1592
    %v1594 = vmul.f32 %v1593, 4.0
    %v1595 = vmul.f32 %v731, %v1594
    %s1596 = scalar_lea.vmem [#allocation5], 64
    %1597 = vst [vmem:[%s1596] sm:$0xff] %v1595
    %v1598 = vmul.f32 %v812, %v1594
    %s1599 = scalar_lea.vmem [#allocation5], 72
    %1600 = vst [vmem:[%s1599] sm:$0xff] %v1598
    %v1601 = vmul.f32 %v893, %v1594
    %s1602 = scalar_lea.vmem [#allocation5], 80
    %1603 = vst [vmem:[%s1602] sm:$0xff] %v1601
    %v1604 = vmul.f32 %v974, %v1594
    %s1605 = scalar_lea.vmem [#allocation5], 88
    %1606 = vst [vmem:[%s1605] sm:$0xff] %v1604
    %v1607 = vmul.f32 %v1055, %v1594
    %s1608 = scalar_lea.vmem [#allocation5], 96
    %1609 = vst [vmem:[%s1608] sm:$0xff] %v1607
    %v1610 = vmul.f32 %v1136, %v1594
    %s1611 = scalar_lea.vmem [#allocation5], 104
    %1612 = vst [vmem:[%s1611] sm:$0xff] %v1610
    %v1613 = vmul.f32 %v1217, %v1594
    %s1614 = scalar_lea.vmem [#allocation5], 112
    %1615 = vst [vmem:[%s1614] sm:$0xff] %v1613
    %v1616 = vmul.f32 %v1258, %v1594
    %s1617 = scalar_lea.vmem [#allocation5], 120
    %1618 = vst [vmem:[%s1617] sm:$0xff] %v1616
    %v1619 = vmul.f32 %v1259, 0.25
    %v1620 = vand.u32 2147483647, %v1619
    %vm1621 = vcmp.le.f32.partialorder %v1620, 0.7853982
    %vm1622 = vcmp.lt.s32.totalorder %v1619, 0
    %v1623 = vand.u32 %v1619, 2139095040
    %v1624 = vshrl.u32 %v1623, 23
    %v1625 = vsub.s32 %v1624, 127
    %v1626 = vand.u32 2147483647, %v1619
    %v1627 = vand.u32 %v1626, 8388607
    %v1628 = vor.u32 %v1627, 8388608
    %v1629 = vsub.s32 0, %v1628
    %v1630 = vadd.s32 %v1625, 1
    %vm1631 = vcmp.gt.s32.totalorder %v1630, 0
    %v1632 = vsel %vm1631, %v1630, 0
    %v1633 = vshrl.u32 %v1632, 5
    %v1634 = vand.u32 %v1632, 31
    %v1635 = vsub.s32 32, %v1634
    %v1636 = vshrl.u32 683565275, %v1635
    %v1637 = vshll.u32 683565275, %v1634
    %v1638 = vshrl.u32 2475754826, %v1635
    %v1639 = vor.u32 %v1637, %v1638
    %v1640 = vshll.u32 2475754826, %v1634
    %v1641 = vshrl.u32 2131351028, %v1635
    %v1642 = vor.u32 %v1640, %v1641
    %v1643 = vshll.u32 2131351028, %v1634
    %v1644 = vshrl.u32 2102212464, %v1635
    %v1645 = vor.u32 %v1643, %v1644
    %v1646 = vshll.u32 2102212464, %v1634
    %v1647 = vshrl.u32 920167782, %v1635
    %v1648 = vor.u32 %v1646, %v1647
    %v1649 = vshll.u32 920167782, %v1634
    %v1650 = vshrl.u32 1326507024, %v1635
    %v1651 = vor.u32 %v1649, %v1650
    %vm1652 = vcmp.lt.s32.totalorder %v1633, 1
    %vm1653 = vcmp.lt.s32.totalorder %v1633, 2
    %vm1654 = vcmp.lt.s32.totalorder %v1633, 3
    %vm1655 = vcmp.lt.s32.totalorder %v1633, 4
    %v1656 = vsel %vm1652, %v1636, %v1639
    %v1657 = vsel %vm1655, %v1645, 2102212464
    %v1658 = vsel %vm1654, %v1642, %v1657
    %v1659 = vsel %vm1653, %v1656, %v1658
    %v1660 = vsel %vm1652, %v1639, %v1642
    %v1661 = vsel %vm1655, %v1648, 920167782
    %v1662 = vsel %vm1654, %v1645, %v1661
    %v1663 = vsel %vm1653, %v1660, %v1662
    %v1664 = vsel %vm1652, %v1642, %v1645
    %v1665 = vsel %vm1655, %v1651, 1326507024
    %v1666 = vsel %vm1654, %v1648, %v1665
    %v1667 = vsel %vm1653, %v1664, %v1666
    %v1668 = vshll.u32 %v1628, 8
    %v1669 = vand.u32 %v1668, 65535
    %v1670 = vshrl.u32 %v1668, 16
    %v1671 = vand.u32 %v1667, 65535
    %v1672 = vshrl.u32 %v1667, 16
    %v1673 = vmul.u32 %v1669, %v1671
    %v1674 = vmul.u32 %v1669, %v1672
    %v1675 = vmul.u32 %v1670, %v1671
    %v1676 = vmul.u32 %v1670, %v1672
    %v1677 = vshll.u32 %v1674, 16
    %v1678 = vshrl.u32 %v1674, 16
    %v1679 = vshll.u32 %v1675, 16
    %v1680 = vshrl.u32 %v1675, 16
    %vm1681 = vc.u32 %v1673, %v1677
    %v1682 = vsel %vm1681, 1, 0
    %v1683 = vadd.s32 %v1673, %v1677
    %v1684 = vadd.s32 %v1676, %v1682
    %vm1685 = vc.u32 %v1683, %v1679
    %v1686 = vsel %vm1685, 1, 0
    %v1687 = vadd.s32 %v1683, %v1679
    %v1688 = vadd.s32 %v1684, %v1686
    %v1689 = vadd.s32 %v1688, %v1678
    %v1690 = vadd.s32 %v1689, %v1680
    %v1691 = vand.u32 %v1668, 65535
    %v1692 = vshrl.u32 %v1668, 16
    %v1693 = vand.u32 %v1663, 65535
    %v1694 = vshrl.u32 %v1663, 16
    %v1695 = vmul.u32 %v1691, %v1693
    %v1696 = vmul.u32 %v1691, %v1694
    %v1697 = vmul.u32 %v1692, %v1693
    %v1698 = vmul.u32 %v1692, %v1694
    %v1699 = vshll.u32 %v1696, 16
    %v1700 = vshrl.u32 %v1696, 16
    %v1701 = vshll.u32 %v1697, 16
    %v1702 = vshrl.u32 %v1697, 16
    %vm1703 = vc.u32 %v1695, %v1699
    %v1704 = vsel %vm1703, 1, 0
    %v1705 = vadd.s32 %v1695, %v1699
    %v1706 = vadd.s32 %v1698, %v1704
    %vm1707 = vc.u32 %v1705, %v1701
    %v1708 = vsel %vm1707, 1, 0
    %v1709 = vadd.s32 %v1705, %v1701
    %v1710 = vadd.s32 %v1706, %v1708
    %v1711 = vadd.s32 %v1710, %v1700
    %v1712 = vadd.s32 %v1711, %v1702
    %v1713 = vmul.u32 %v1668, %v1659
    %v1714 = vadd.s32 %v1690, %v1709
    %vm1715 = vc.u32 %v1690, %v1709
    %v1716 = vadd.s32 %v1712, 1
    %v1717 = vsel %vm1715, %v1716, %v1712
    %v1718 = vadd.s32 %v1713, %v1717
    %v1719 = vadd.s32 %v1718, 536870912
    %v1720 = vshrl.u32 %v1719, 30
    %v1721 = vshll.u32 %v1720, 30
    %v1722 = vsub.s32 %v1718, %v1721
    %vm1723 = vcmp.lt.s32.totalorder %v1722, 0
    %v1724 = vsub.s32 0, %v1722
    %v1725 = vsel %vm1723, %v1724, %v1722
    %v1726 = vclz %v1725
    %v1727 = vsub.s32 %v1726, 2
    %vm1728 = vcmp.gt.s32.totalorder 0, %v1727
    %v1729 = vsel %vm1728, 0, %v1727
    %v1730 = vsub.s32 32, %v1729
    %v1731 = vshll.u32 %v1722, %v1729
    %v1732 = vshrl.u32 %v1714, %v1730
    %v1733 = vor.u32 %v1731, %v1732
    %v1734 = vsub.s32 4294967266, %v1729
    %v1735 = vadd.s32 %v1734, 127
    %v1736 = vshll.u32 %v1735, 23
    %v1737 = vor.u32 4788187, %v1736
    %v1738 = vand.u32 2147483647, %v1737
    %v1740 = vcvt.s32.f32 %v1733
    %v1741 = vmul.f32 %v1740, %v1738
    %v1742 = vxor.u32 %v1741, 2147483648
    %v1743 = vsel %vm1622, %v1742, %v1741
    %v1744 = vsub.s32 4, %v1720
    %v1745 = vsel %vm1622, %v1744, %v1720
    %v1746 = vsel %vm1621, %v1619, %v1743
    %v1747 = vsel %vm1621, 0, %v1745
    %v1748 = vmul.f32 %v1746, %v1746
    %v1749 = vmul.f32 %v1748, -0.001358992
    %v1750 = vadd.f32 %v1749, 0.041655596
    %v1751 = vmul.f32 %v1748, %v1750
    %v1752 = vadd.f32 %v1751, -0.4999988
    %v1753 = vmul.f32 %v1748, %v1752
    %v1754 = vadd.f32 1.0, %v1753
    %v1755 = vmul.f32 %v1746, %v1746
    %v1756 = vmul.f32 %v1755, -0.00019511016
    %v1757 = vadd.f32 %v1756, 0.008332121
    %v1758 = vmul.f32 %v1755, %v1757
    %v1759 = vadd.f32 %v1758, -0.16666654
    %v1760 = vmul.f32 %v1755, %v1759
    %v1761 = vadd.f32 %v1760, 1.0
    %v1762 = vmul.f32 %v1761, %v1746
    %vm1763 = vweird.f32 %v1619
    %v1764 = vadd.s32 %v1747, 3
    %v1765 = vand.u32 %v1764, 3
    %vm1766 = vcmp.lt.s32.totalorder %v1765, 2
    %vm1767 = vcmp.eq.s32.totalorder %v1765, 0
    %v1768 = vxor.u32 %v1762, 2147483648
    %v1769 = vsel %vm1767, %v1754, %v1768
    %vm1770 = vcmp.eq.s32.totalorder %v1765, 2
    %v1771 = vxor.u32 %v1754, 2147483648
    %v1772 = vsel %vm1770, %v1771, %v1762
    %v1773 = vsel %vm1766, %v1769, %v1772
    %v1774 = vsel %vm1763, nan, %v1773
    %v1775 = vmul.f32 %v1774, 16.0
    %v1776 = vmul.f32 %v731, %v1775
    %s1777 = scalar_lea.vmem [#allocation5], 128
    %1778 = vst [vmem:[%s1777] sm:$0xff] %v1776
    %v1779 = vmul.f32 %v812, %v1775
    %s1780 = scalar_lea.vmem [#allocation5], 136
    %1781 = vst [vmem:[%s1780] sm:$0xff] %v1779
    %v1782 = vmul.f32 %v893, %v1775
    %s1783 = scalar_lea.vmem [#allocation5], 144
    %1784 = vst [vmem:[%s1783] sm:$0xff] %v1782
    %v1785 = vmul.f32 %v974, %v1775
    %s1786 = scalar_lea.vmem [#allocation5], 152
    %1787 = vst [vmem:[%s1786] sm:$0xff] %v1785
    %v1788 = vmul.f32 %v1055, %v1775
    %s1789 = scalar_lea.vmem [#allocation5], 160
    %1790 = vst [vmem:[%s1789] sm:$0xff] %v1788
    %v1791 = vmul.f32 %v1136, %v1775
    %s1792 = scalar_lea.vmem [#allocation5], 168
    %1793 = vst [vmem:[%s1792] sm:$0xff] %v1791
    %v1794 = vmul.f32 %v1217, %v1775
    %s1795 = scalar_lea.vmem [#allocation5], 176
    %1796 = vst [vmem:[%s1795] sm:$0xff] %v1794
    %v1797 = vmul.f32 %v1258, %v1775
    %s1798 = scalar_lea.vmem [#allocation5], 184
    %1799 = vst [vmem:[%s1798] sm:$0xff] %v1797
    %v1800 = vmul.f32 %v1259, 0.125
    %v1801 = vand.u32 2147483647, %v1800
    %vm1802 = vcmp.le.f32.partialorder %v1801, 0.7853982
    %vm1803 = vcmp.lt.s32.totalorder %v1800, 0
    %v1804 = vand.u32 %v1800, 2139095040
    %v1805 = vshrl.u32 %v1804, 23
    %v1806 = vsub.s32 %v1805, 127
    %v1807 = vand.u32 2147483647, %v1800
    %v1808 = vand.u32 %v1807, 8388607
    %v1809 = vor.u32 %v1808, 8388608
    %v1810 = vsub.s32 0, %v1809
    %v1811 = vadd.s32 %v1806, 1
    %vm1812 = vcmp.gt.s32.totalorder %v1811, 0
    %v1813 = vsel %vm1812, %v1811, 0
    %v1814 = vshrl.u32 %v1813, 5
    %v1815 = vand.u32 %v1813, 31
    %v1816 = vsub.s32 32, %v1815
    %v1817 = vshrl.u32 683565275, %v1816
    %v1818 = vshll.u32 683565275, %v1815
    %v1819 = vshrl.u32 2475754826, %v1816
    %v1820 = vor.u32 %v1818, %v1819
    %v1821 = vshll.u32 2475754826, %v1815
    %v1822 = vshrl.u32 2131351028, %v1816
    %v1823 = vor.u32 %v1821, %v1822
    %v1824 = vshll.u32 2131351028, %v1815
    %v1825 = vshrl.u32 2102212464, %v1816
    %v1826 = vor.u32 %v1824, %v1825
    %v1827 = vshll.u32 2102212464, %v1815
    %v1828 = vshrl.u32 920167782, %v1816
    %v1829 = vor.u32 %v1827, %v1828
    %v1830 = vshll.u32 920167782, %v1815
    %v1831 = vshrl.u32 1326507024, %v1816
    %v1832 = vor.u32 %v1830, %v1831
    %vm1833 = vcmp.lt.s32.totalorder %v1814, 1
    %vm1834 = vcmp.lt.s32.totalorder %v1814, 2
    %vm1835 = vcmp.lt.s32.totalorder %v1814, 3
    %vm1836 = vcmp.lt.s32.totalorder %v1814, 4
    %v1837 = vsel %vm1833, %v1817, %v1820
    %v1838 = vsel %vm1836, %v1826, 2102212464
    %v1839 = vsel %vm1835, %v1823, %v1838
    %v1840 = vsel %vm1834, %v1837, %v1839
    %v1841 = vsel %vm1833, %v1820, %v1823
    %v1842 = vsel %vm1836, %v1829, 920167782
    %v1843 = vsel %vm1835, %v1826, %v1842
    %v1844 = vsel %vm1834, %v1841, %v1843
    %v1845 = vsel %vm1833, %v1823, %v1826
    %v1846 = vsel %vm1836, %v1832, 1326507024
    %v1847 = vsel %vm1835, %v1829, %v1846
    %v1848 = vsel %vm1834, %v1845, %v1847
    %v1849 = vshll.u32 %v1809, 8
    %v1850 = vand.u32 %v1849, 65535
    %v1851 = vshrl.u32 %v1849, 16
    %v1852 = vand.u32 %v1848, 65535
    %v1853 = vshrl.u32 %v1848, 16
    %v1854 = vmul.u32 %v1850, %v1852
    %v1855 = vmul.u32 %v1850, %v1853
    %v1856 = vmul.u32 %v1851, %v1852
    %v1857 = vmul.u32 %v1851, %v1853
    %v1858 = vshll.u32 %v1855, 16
    %v1859 = vshrl.u32 %v1855, 16
    %v1860 = vshll.u32 %v1856, 16
    %v1861 = vshrl.u32 %v1856, 16
    %vm1862 = vc.u32 %v1854, %v1858
    %v1863 = vsel %vm1862, 1, 0
    %v1864 = vadd.s32 %v1854, %v1858
    %v1865 = vadd.s32 %v1857, %v1863
    %vm1866 = vc.u32 %v1864, %v1860
    %v1867 = vsel %vm1866, 1, 0
    %v1868 = vadd.s32 %v1864, %v1860
    %v1869 = vadd.s32 %v1865, %v1867
    %v1870 = vadd.s32 %v1869, %v1859
    %v1871 = vadd.s32 %v1870, %v1861
    %v1872 = vand.u32 %v1849, 65535
    %v1873 = vshrl.u32 %v1849, 16
    %v1874 = vand.u32 %v1844, 65535
    %v1875 = vshrl.u32 %v1844, 16
    %v1876 = vmul.u32 %v1872, %v1874
    %v1877 = vmul.u32 %v1872, %v1875
    %v1878 = vmul.u32 %v1873, %v1874
    %v1879 = vmul.u32 %v1873, %v1875
    %v1880 = vshll.u32 %v1877, 16
    %v1881 = vshrl.u32 %v1877, 16
    %v1882 = vshll.u32 %v1878, 16
    %v1883 = vshrl.u32 %v1878, 16
    %vm1884 = vc.u32 %v1876, %v1880
    %v1885 = vsel %vm1884, 1, 0
    %v1886 = vadd.s32 %v1876, %v1880
    %v1887 = vadd.s32 %v1879, %v1885
    %vm1888 = vc.u32 %v1886, %v1882
    %v1889 = vsel %vm1888, 1, 0
    %v1890 = vadd.s32 %v1886, %v1882
    %v1891 = vadd.s32 %v1887, %v1889
    %v1892 = vadd.s32 %v1891, %v1881
    %v1893 = vadd.s32 %v1892, %v1883
    %v1894 = vmul.u32 %v1849, %v1840
    %v1895 = vadd.s32 %v1871, %v1890
    %vm1896 = vc.u32 %v1871, %v1890
    %v1897 = vadd.s32 %v1893, 1
    %v1898 = vsel %vm1896, %v1897, %v1893
    %v1899 = vadd.s32 %v1894, %v1898
    %v1900 = vadd.s32 %v1899, 536870912
    %v1901 = vshrl.u32 %v1900, 30
    %v1902 = vshll.u32 %v1901, 30
    %v1903 = vsub.s32 %v1899, %v1902
    %vm1904 = vcmp.lt.s32.totalorder %v1903, 0
    %v1905 = vsub.s32 0, %v1903
    %v1906 = vsel %vm1904, %v1905, %v1903
    %v1907 = vclz %v1906
    %v1908 = vsub.s32 %v1907, 2
    %vm1909 = vcmp.gt.s32.totalorder 0, %v1908
    %v1910 = vsel %vm1909, 0, %v1908
    %v1911 = vsub.s32 32, %v1910
    %v1912 = vshll.u32 %v1903, %v1910
    %v1913 = vshrl.u32 %v1895, %v1911
    %v1914 = vor.u32 %v1912, %v1913
    %v1915 = vsub.s32 4294967266, %v1910
    %v1916 = vadd.s32 %v1915, 127
    %v1917 = vshll.u32 %v1916, 23
    %v1918 = vor.u32 4788187, %v1917
    %v1919 = vand.u32 2147483647, %v1918
    %v1921 = vcvt.s32.f32 %v1914
    %v1922 = vmul.f32 %v1921, %v1919
    %v1923 = vxor.u32 %v1922, 2147483648
    %v1924 = vsel %vm1803, %v1923, %v1922
    %v1925 = vsub.s32 4, %v1901
    %v1926 = vsel %vm1803, %v1925, %v1901
    %v1927 = vsel %vm1802, %v1800, %v1924
    %v1928 = vsel %vm1802, 0, %v1926
    %v1929 = vmul.f32 %v1927, %v1927
    %v1930 = vmul.f32 %v1929, -0.001358992
    %v1931 = vadd.f32 %v1930, 0.041655596
    %v1932 = vmul.f32 %v1929, %v1931
    %v1933 = vadd.f32 %v1932, -0.4999988
    %v1934 = vmul.f32 %v1929, %v1933
    %v1935 = vadd.f32 1.0, %v1934
    %v1936 = vmul.f32 %v1927, %v1927
    %v1937 = vmul.f32 %v1936, -0.00019511016
    %v1938 = vadd.f32 %v1937, 0.008332121
    %v1939 = vmul.f32 %v1936, %v1938
    %v1940 = vadd.f32 %v1939, -0.16666654
    %v1941 = vmul.f32 %v1936, %v1940
    %v1942 = vadd.f32 %v1941, 1.0
    %v1943 = vmul.f32 %v1942, %v1927
    %vm1944 = vweird.f32 %v1800
    %v1945 = vadd.s32 %v1928, 3
    %v1946 = vand.u32 %v1945, 3
    %vm1947 = vcmp.lt.s32.totalorder %v1946, 2
    %vm1948 = vcmp.eq.s32.totalorder %v1946, 0
    %v1949 = vxor.u32 %v1943, 2147483648
    %v1950 = vsel %vm1948, %v1935, %v1949
    %vm1951 = vcmp.eq.s32.totalorder %v1946, 2
    %v1952 = vxor.u32 %v1935, 2147483648
    %v1953 = vsel %vm1951, %v1952, %v1943
    %v1954 = vsel %vm1947, %v1950, %v1953
    %v1955 = vsel %vm1944, nan, %v1954
    %v1956 = vmul.f32 %v1955, 64.0
    %v1957 = vmul.f32 %v731, %v1956
    %s1958 = scalar_lea.vmem [#allocation5], 192
    %1959 = vst [vmem:[%s1958] sm:$0xff] %v1957
    %v1960 = vmul.f32 %v812, %v1956
    %s1961 = scalar_lea.vmem [#allocation5], 200
    %1962 = vst [vmem:[%s1961] sm:$0xff] %v1960
    %v1963 = vmul.f32 %v893, %v1956
    %s1964 = scalar_lea.vmem [#allocation5], 208
    %1965 = vst [vmem:[%s1964] sm:$0xff] %v1963
    %v1966 = vmul.f32 %v974, %v1956
    %s1967 = scalar_lea.vmem [#allocation5], 216
    %1968 = vst [vmem:[%s1967] sm:$0xff] %v1966
    %v1969 = vmul.f32 %v1055, %v1956
    %s1970 = scalar_lea.vmem [#allocation5], 224
    %1971 = vst [vmem:[%s1970] sm:$0xff] %v1969
    %v1972 = vmul.f32 %v1136, %v1956
    %s1973 = scalar_lea.vmem [#allocation5], 232
    %1974 = vst [vmem:[%s1973] sm:$0xff] %v1972
    %v1975 = vmul.f32 %v1217, %v1956
    %s1976 = scalar_lea.vmem [#allocation5], 240
    %1977 = vst [vmem:[%s1976] sm:$0xff] %v1975
    %v1978 = vmul.f32 %v1258, %v1956
    %s1979 = scalar_lea.vmem [#allocation5], 248
    %1980 = vst [vmem:[%s1979] sm:$0xff] %v1978
    // Predicated region
    $region10: #{tpu_custom_call.1} parent=1 // pred_check
      _
    $region11: #{tpu_custom_call.1} parent=1 // pred_check_branch
      %1982 = sbr.rel (0) target = $region13
    $region12: #{tpu_custom_call.1} parent=1 // pred_region
      %1984 = vsyncadd [#allocation4], 0
      %s1985 = sshll.u32 [#allocation5], 4
      %s1986 = int_to_ptr.vmem [resolvable:$true] %s1985
      %s1987 = sshll.u32 %s1, 4
      %s1988 = int_to_ptr.hbm [resolvable:$true] %s1987
      %1993 = dma.vmem_to_hbm [thread:$0]  %s1986, 4096, %s1988, [#allocation4], 128, 128, 8
    $region13: #{tpu_custom_call.1} parent=1 // pred_fallthru
      _
    // Predicated region
    $region14: #{tpu_custom_call.1} parent=1 // pred_check
      _
    $region15: #{tpu_custom_call.1} parent=1 // pred_check_branch
      %1995 = sbr.rel (0) target = $region17
    $region16: #{tpu_custom_call.1} parent=1 // pred_region
      %1997 = dma.done [#allocation4], 4096
    $region17: #{tpu_custom_call.1} parent=1 // pred_fallthru
      _
    %1998 = vsyncpa [#allocation3], 1
    %1999 = vsyncpa [#allocation4], 1

</llo_original>
